<compile_context>
chip_gen: v5e
topology: v5e:2x2
jax: 0.10.0
libtpu: 0.0.40
codegen_flags: <defaults>
</compile_context>

<pallas_src>
import jax
import jax.numpy as jnp
from jax.experimental import pallas as pl
from jax.experimental.pallas import tpu as pltpu

LN_EPS = 1e-5


def _round_up(x, m):
    return ((x + m - 1) // m) * m


def _make_decoder_kernel(n_hidden):
    """Fused kernel: n_hidden ReLU FF layers + one fused (spect|pcm) head matmul.

    Kernel args: x_ref, then (w, b) per layer (n_hidden + 1 pairs, the last
    pair being the fused/padded head), then the single fused output ref.
    """
    n_pairs = n_hidden + 1

    def kernel(*refs):
        x_ref = refs[0]
        param_refs = refs[1:1 + 2 * n_pairs]
        out_ref = refs[1 + 2 * n_pairs]

        def ln_core(x):
            # gamma/beta are folded into W/b by the wrapper; only the core stays.
            # Two *independent* lane reductions (mean, mean of squares) that can
            # overlap on the XLUs; var = E[x^2] - mu^2 (f32, magnitudes ~O(1)).
            mu = jnp.mean(x, axis=-1, keepdims=True)
            ex2 = jnp.mean(x * x, axis=-1, keepdims=True)
            var = ex2 - mu * mu
            return (x - mu) * jax.lax.rsqrt(var + LN_EPS)

        def ff(x, idx, relu):
            w = param_refs[2 * idx][...]            # [in, out], matmul dtype
            b = param_refs[2 * idx + 1][...]        # [1, out], f32 (lane axis)
            y = jnp.dot(ln_core(x).astype(w.dtype), w,
                        preferred_element_type=jnp.float32) + b
            return jnp.maximum(y, 0.0) if relu else y

        x = x_ref[...].astype(jnp.float32)
        for i in range(n_hidden):
            x = ff(x, i, relu=True)                 # activation='relu'
        out_ref[...] = ff(x, n_hidden, relu=False).astype(out_ref.dtype)

    return kernel


def decoder_forward(latents, layer_params, *, row_tile=512,
                    matmul_dtype=jnp.bfloat16, kernel_out_dtype=jnp.bfloat16):
    """layer_params: list of (gamma, beta, W[in,out], b) per FFLayer
    (intermediate layers first, then the spect head, then the pcm head).

    Returns ((spect, pcm), mask) in float32 — mirrors the PyTorch output.
    """
    N, L = latents.shape
    n_ff = len(layer_params)
    n_hidden = n_ff - 2
    spect_size = layer_params[-2][2].shape[1]
    pcm_size = layer_params[-1][2].shape[1]

    # --- Fold LayerNorm affine into the Linear (exact algebra). -------------
    def fold(gamma, beta, w, b):
        return gamma[:, None] * w, beta @ w + b

    folded = [fold(*p) for p in layer_params]

    # --- Fuse spect & pcm heads into one matmul; pad out-dim to x128. -------
    head_w = jnp.concatenate([folded[-2][0], folded[-1][0]], axis=1)
    head_b = jnp.concatenate([folded[-2][1], folded[-1][1]], axis=0)
    head_dim = spect_size + pcm_size
    head_pad = _round_up(head_dim, 128)
    if head_pad != head_dim:
        head_w = jnp.pad(head_w, ((0, 0), (0, head_pad - head_dim)))
        head_b = jnp.pad(head_b, ((0, head_pad - head_dim),))

    flat_params = []
    for w, b in folded[:n_hidden] + [(head_w, head_b)]:
        flat_params.append(w.astype(matmul_dtype))                  # MXU operand
        flat_params.append(b.reshape(1, -1).astype(jnp.float32))    # lane-axis bias

    # --- Row tiling: big tiles amortize the ~0.35us/step fixed cost, but keep
    # >= 2 grid steps when possible so both v7x TensorCores get work.  No input
    # pad copy: cdiv grid + ragged last block.
    if N > 8:
        row_tile = min(row_tile, _round_up(pl.cdiv(N, 2), 8))
    row_tile = max(8, min(_round_up(row_tile, 8), _round_up(N, 8)))
    grid = pl.cdiv(N, row_tile)

    out_shape = jax.ShapeDtypeStruct((N, head_pad), kernel_out_dtype)
    out_isize = jnp.dtype(kernel_out_dtype).itemsize

    # --- VMEM budget + cost estimate. ----------------------------------------
    param_bytes = sum(int(p.size) * p.dtype.itemsize for p in flat_params)
    block_bytes = (2 * row_tile * L * latents.dtype.itemsize          # x (2 bufs)
                   + 2 * row_tile * head_pad * out_isize)             # out (2 bufs)
    vmem_limit = int(min(max(2 * (2 * param_bytes + block_bytes) + (4 << 20),
                             16 << 20), 48 << 20))

    flops = 0
    for w, _ in folded[:n_hidden]:
        flops += 2 * N * w.shape[0] * w.shape[1]
    flops += 2 * N * head_w.shape[0] * head_pad
    cost = pl.CostEstimate(
        flops=int(flops),
        transcendentals=int(N * (n_hidden + 1)),          # one rsqrt per row/layer
        bytes_accessed=int(latents.size * latents.dtype.itemsize
                           + param_bytes + N * head_pad * out_isize))

    def build(single_buffer_params):
        x_spec = pl.BlockSpec((row_tile, L), lambda i: (i, 0))
        if single_buffer_params:
            # Constant block index -> double-buffering buys nothing; keep one copy.
            param_specs = [pl.BlockSpec(p.shape, lambda i: (0, 0),
                                        pipeline_mode=pl.Buffered(1))
                           for p in flat_params]
        else:
            param_specs = [pl.BlockSpec(p.shape, lambda i: (0, 0))
                           for p in flat_params]
        out_spec = pl.BlockSpec((row_tile, head_pad), lambda i: (i, 0))
        return pl.pallas_call(
            _make_decoder_kernel(n_hidden),
            grid=(grid,),
            in_specs=[x_spec] + param_specs,
            out_specs=out_spec,
            out_shape=out_shape,
            compiler_params=pltpu.CompilerParams(
                dimension_semantics=("parallel",),
                vmem_limit_bytes=vmem_limit),
            cost_estimate=cost,
        )

    try:
        fused = build(True)(latents, *flat_params)
    except Exception:
        # Fallback for jax builds where single-buffered (Buffered(1)) constant
        # blocks are not accepted by the grid pipeliner — correctness identical.
        fused = build(False)(latents, *flat_params)

    spect = fused[:, :spect_size].astype(jnp.float32)
    pcm = fused[:, spect_size:head_dim].astype(jnp.float32)
    # mask is a constant tensor of ones: produced here, never DMA'd by the kernel.
    mask = jnp.ones_like(spect)
    return (spect, pcm), mask


def init_decoder_params(key, latent_size, hidden_sizes, spect_size, pcm_size):
    """Synthetic init matching Decoder.__init__ layer shapes.

    gamma/beta are randomly perturbed (instead of torch's 1/0 init) so the
    gamma/beta -> W/b folding is actually exercised by the test.
    """
    sizes = [latent_size] + hidden_sizes
    layer_dims = [(sizes[i], sizes[i + 1]) for i in range(len(sizes) - 2)]
    layer_dims.append((sizes[-1], spect_size))   # spect head
    layer_dims.append((sizes[-1], pcm_size))     # pcm head

    params = []
    for d_in, d_out in layer_dims:
        key, kg, kbt, kw, kb = jax.random.split(key, 5)
        gamma = 1.0 + 0.1 * jax.random.normal(kg, (d_in,), jnp.float32)
        beta = 0.1 * jax.random.normal(kbt, (d_in,), jnp.float32)
        w = 0.1 * jax.random.normal(kw, (d_in, d_out), jnp.float32)
        b = 0.1 * jax.random.normal(kb, (d_out,), jnp.float32)
        params.append((gamma, beta, w, b))
    return params


def _reference_forward(latents, layer_params):
    """Pure-JAX reference of the PyTorch forward (backprop_pcm=True), unfolded."""
    def ff(x, p, relu):
        g, b, w, c = p
        mu = jnp.mean(x, axis=-1, keepdims=True)
        var = jnp.mean((x - mu) ** 2, axis=-1, keepdims=True)
        normed = (x - mu) / jnp.sqrt(var + LN_EPS) * g + b
        out = jnp.dot(normed, w, precision=jax.lax.Precision.HIGHEST) + c
        return jnp.maximum(out, 0.0) if relu else out

    x = latents
    for p in layer_params[:-2]:
        x = ff(x, p, relu=True)
    spect = ff(x, layer_params[-2], relu=False)
    pcm = ff(x, layer_params[-1], relu=False)
    return (spect, pcm), jnp.ones_like(spect)


if __name__ == "__main__":
    # Small config consistent with the module: sizes = [latent] + hidden_sizes.
    # The last two hidden sizes must match so the spect/pcm heads (input =
    # sizes[-1]) compose with the intermediate stack (output = sizes[-2]).
    latent_size = 16
    hidden_sizes = [32, 48, 48]
    spect_size = 24
    pcm_size = 40
    N = 300  # exercises the row-tile cap (>=2 grid steps) and a ragged last block

    key = jax.random.PRNGKey(0)
    key, k_lat = jax.random.split(key)
    latents = jax.random.normal(k_lat, (N, latent_size), jnp.float32)
    params = init_decoder_params(key, latent_size, hidden_sizes,
                                 spect_size, pcm_size)

    (spect_ref, pcm_ref), mask_ref = _reference_forward(latents, params)

    def rel_err(a, b):
        return float(jnp.linalg.norm(a - b) / (jnp.linalg.norm(b) + 1e-12))

    # ---- f32 MXU operands + f32 writeback: tight check vs unfolded reference.
    (spect, pcm), mask = decoder_forward(
        latents, params, matmul_dtype=jnp.float32, kernel_out_dtype=jnp.float32)
    jax.block_until_ready((spect, pcm, mask))
    assert spect.shape == (N, spect_size) and pcm.shape == (N, pcm_size)
    assert rel_err(spect, spect_ref) < 2e-3, rel_err(spect, spect_ref)
    assert rel_err(pcm, pcm_ref) < 2e-3, rel_err(pcm, pcm_ref)
    assert bool(jnp.all(mask == mask_ref))

    # ---- Default fast path: bf16 MXU operands + bf16 writeback, f32 accumulate.
    (spect_bf, pcm_bf), mask_bf = decoder_forward(latents, params)
    jax.block_until_ready((spect_bf, pcm_bf, mask_bf))
    assert spect_bf.shape == (N, spect_size) and pcm_bf.shape == (N, pcm_size)
    assert rel_err(spect_bf, spect_ref) < 5e-2, rel_err(spect_bf, spect_ref)
    assert rel_err(pcm_bf, pcm_ref) < 5e-2, rel_err(pcm_bf, pcm_ref)

    print("KERNEL_OK")
</pallas_src>

<mosaic_0001>
module attributes {stable_mosaic.version = 11 : i64} {
  func.func @kernel(%arg0: i32, %arg1: memref<152x16xf32, #tpu.memory_space<vmem>>, %arg2: memref<16x32xf32, #tpu.memory_space<vmem>>, %arg3: memref<1x32xf32, #tpu.memory_space<vmem>>, %arg4: memref<32x48xf32, #tpu.memory_space<vmem>>, %arg5: memref<1x48xf32, #tpu.memory_space<vmem>>, %arg6: memref<48x128xf32, #tpu.memory_space<vmem>>, %arg7: memref<1x128xf32, #tpu.memory_space<vmem>>, %arg8: memref<152x128xf32, #tpu.memory_space<vmem>>) attributes {dimension_semantics = [#tpu.dimension_semantics<parallel>], iteration_bounds = array<i64: 2>, scalar_prefetch = 0 : i64, scratch_operands = 0 : i64, tpu.core_type = #tpu.core_type<tc>, window_params = [{transform_indices = @transform_0, window_bounds = array<i64: 152, 16>}, {pipeline_mode = #tpu.pipeline_mode<synchronous>, transform_indices = @transform_1, window_bounds = array<i64: 16, 32>}, {pipeline_mode = #tpu.pipeline_mode<synchronous>, transform_indices = @transform_2, window_bounds = array<i64: 1, 32>}, {pipeline_mode = #tpu.pipeline_mode<synchronous>, transform_indices = @transform_3, window_bounds = array<i64: 32, 48>}, {pipeline_mode = #tpu.pipeline_mode<synchronous>, transform_indices = @transform_4, window_bounds = array<i64: 1, 48>}, {pipeline_mode = #tpu.pipeline_mode<synchronous>, transform_indices = @transform_5, window_bounds = array<i64: 48, 128>}, {pipeline_mode = #tpu.pipeline_mode<synchronous>, transform_indices = @transform_6, window_bounds = array<i64: 1, 128>}, {transform_indices = @transform_7, window_bounds = array<i64: 152, 128>}]} {
    %c0 = arith.constant 0 : index
    %c0_0 = arith.constant 0 : index
    %0 = vector.load %arg1[%c0, %c0_0] : memref<152x16xf32, #tpu.memory_space<vmem>>, vector<152x16xf32>
    %c0_1 = arith.constant 0 : index
    %c0_2 = arith.constant 0 : index
    %1 = vector.load %arg2[%c0_1, %c0_2] : memref<16x32xf32, #tpu.memory_space<vmem>>, vector<16x32xf32>
    %c0_3 = arith.constant 0 : index
    %c0_4 = arith.constant 0 : index
    %2 = vector.load %arg3[%c0_3, %c0_4] : memref<1x32xf32, #tpu.memory_space<vmem>>, vector<1x32xf32>
    %cst = arith.constant dense<0.000000e+00> : vector<152xf32>
    %3 = vector.multi_reduction <add>, %0, %cst [1] : vector<152x16xf32> to vector<152xf32>
    %4 = vector.shape_cast %3 : vector<152xf32> to vector<152x1xf32>
    %cst_5 = arith.constant 1.600000e+01 : f32
    %5 = vector.broadcast %cst_5 : f32 to vector<152x1xf32>
    %6 = arith.divf %4, %5 : vector<152x1xf32>
    %7 = arith.mulf %0, %0 : vector<152x16xf32>
    %cst_6 = arith.constant dense<0.000000e+00> : vector<152xf32>
    %8 = vector.multi_reduction <add>, %7, %cst_6 [1] : vector<152x16xf32> to vector<152xf32>
    %9 = vector.shape_cast %8 : vector<152xf32> to vector<152x1xf32>
    %cst_7 = arith.constant 1.600000e+01 : f32
    %10 = vector.broadcast %cst_7 : f32 to vector<152x1xf32>
    %11 = arith.divf %9, %10 : vector<152x1xf32>
    %12 = arith.mulf %6, %6 : vector<152x1xf32>
    %13 = arith.subf %11, %12 : vector<152x1xf32>
    %14 = vector.broadcast %6 : vector<152x1xf32> to vector<152x16xf32>
    %15 = arith.subf %0, %14 : vector<152x16xf32>
    %cst_8 = arith.constant 9.99999974E-6 : f32
    %16 = vector.broadcast %cst_8 : f32 to vector<152x1xf32>
    %17 = arith.addf %13, %16 : vector<152x1xf32>
    %18 = math.rsqrt %17 : vector<152x1xf32>
    %19 = vector.broadcast %18 : vector<152x1xf32> to vector<152x16xf32>
    %20 = arith.mulf %15, %19 : vector<152x16xf32>
    %cst_9 = arith.constant dense<0.000000e+00> : vector<152x32xf32>
    %21 = tpu.matmul %20, %1, %cst_9 {dimension_numbers = #tpu.dot_dimension_numbers<[1], [0], [0], [1], [0, 0, 1, 1], [], []>} : vector<152x16xf32>, vector<16x32xf32>, vector<152x32xf32> -> vector<152x32xf32>
    %22 = vector.broadcast %2 : vector<1x32xf32> to vector<152x32xf32>
    %23 = arith.addf %21, %22 : vector<152x32xf32>
    %cst_10 = arith.constant 0.000000e+00 : f32
    %24 = vector.broadcast %cst_10 : f32 to vector<152x32xf32>
    %25 = arith.maximumf %23, %24 : vector<152x32xf32>
    %c0_11 = arith.constant 0 : index
    %c0_12 = arith.constant 0 : index
    %26 = vector.load %arg4[%c0_11, %c0_12] : memref<32x48xf32, #tpu.memory_space<vmem>>, vector<32x48xf32>
    %c0_13 = arith.constant 0 : index
    %c0_14 = arith.constant 0 : index
    %27 = vector.load %arg5[%c0_13, %c0_14] : memref<1x48xf32, #tpu.memory_space<vmem>>, vector<1x48xf32>
    %cst_15 = arith.constant dense<0.000000e+00> : vector<152xf32>
    %28 = vector.multi_reduction <add>, %25, %cst_15 [1] : vector<152x32xf32> to vector<152xf32>
    %29 = vector.shape_cast %28 : vector<152xf32> to vector<152x1xf32>
    %cst_16 = arith.constant 3.200000e+01 : f32
    %30 = vector.broadcast %cst_16 : f32 to vector<152x1xf32>
    %31 = arith.divf %29, %30 : vector<152x1xf32>
    %32 = arith.mulf %25, %25 : vector<152x32xf32>
    %cst_17 = arith.constant dense<0.000000e+00> : vector<152xf32>
    %33 = vector.multi_reduction <add>, %32, %cst_17 [1] : vector<152x32xf32> to vector<152xf32>
    %34 = vector.shape_cast %33 : vector<152xf32> to vector<152x1xf32>
    %cst_18 = arith.constant 3.200000e+01 : f32
    %35 = vector.broadcast %cst_18 : f32 to vector<152x1xf32>
    %36 = arith.divf %34, %35 : vector<152x1xf32>
    %37 = arith.mulf %31, %31 : vector<152x1xf32>
    %38 = arith.subf %36, %37 : vector<152x1xf32>
    %39 = vector.broadcast %31 : vector<152x1xf32> to vector<152x32xf32>
    %40 = arith.subf %25, %39 : vector<152x32xf32>
    %cst_19 = arith.constant 9.99999974E-6 : f32
    %41 = vector.broadcast %cst_19 : f32 to vector<152x1xf32>
    %42 = arith.addf %38, %41 : vector<152x1xf32>
    %43 = math.rsqrt %42 : vector<152x1xf32>
    %44 = vector.broadcast %43 : vector<152x1xf32> to vector<152x32xf32>
    %45 = arith.mulf %40, %44 : vector<152x32xf32>
    %cst_20 = arith.constant dense<0.000000e+00> : vector<152x48xf32>
    %46 = tpu.matmul %45, %26, %cst_20 {dimension_numbers = #tpu.dot_dimension_numbers<[1], [0], [0], [1], [0, 0, 1, 1], [], []>} : vector<152x32xf32>, vector<32x48xf32>, vector<152x48xf32> -> vector<152x48xf32>
    %47 = vector.broadcast %27 : vector<1x48xf32> to vector<152x48xf32>
    %48 = arith.addf %46, %47 : vector<152x48xf32>
    %cst_21 = arith.constant 0.000000e+00 : f32
    %49 = vector.broadcast %cst_21 : f32 to vector<152x48xf32>
    %50 = arith.maximumf %48, %49 : vector<152x48xf32>
    %c0_22 = arith.constant 0 : index
    %c0_23 = arith.constant 0 : index
    %51 = vector.load %arg6[%c0_22, %c0_23] : memref<48x128xf32, #tpu.memory_space<vmem>>, vector<48x128xf32>
    %c0_24 = arith.constant 0 : index
    %c0_25 = arith.constant 0 : index
    %52 = vector.load %arg7[%c0_24, %c0_25] : memref<1x128xf32, #tpu.memory_space<vmem>>, vector<1x128xf32>
    %cst_26 = arith.constant dense<0.000000e+00> : vector<152xf32>
    %53 = vector.multi_reduction <add>, %50, %cst_26 [1] : vector<152x48xf32> to vector<152xf32>
    %54 = vector.shape_cast %53 : vector<152xf32> to vector<152x1xf32>
    %cst_27 = arith.constant 4.800000e+01 : f32
    %55 = vector.broadcast %cst_27 : f32 to vector<152x1xf32>
    %56 = arith.divf %54, %55 : vector<152x1xf32>
    %57 = arith.mulf %50, %50 : vector<152x48xf32>
    %cst_28 = arith.constant dense<0.000000e+00> : vector<152xf32>
    %58 = vector.multi_reduction <add>, %57, %cst_28 [1] : vector<152x48xf32> to vector<152xf32>
    %59 = vector.shape_cast %58 : vector<152xf32> to vector<152x1xf32>
    %cst_29 = arith.constant 4.800000e+01 : f32
    %60 = vector.broadcast %cst_29 : f32 to vector<152x1xf32>
    %61 = arith.divf %59, %60 : vector<152x1xf32>
    %62 = arith.mulf %56, %56 : vector<152x1xf32>
    %63 = arith.subf %61, %62 : vector<152x1xf32>
    %64 = vector.broadcast %56 : vector<152x1xf32> to vector<152x48xf32>
    %65 = arith.subf %50, %64 : vector<152x48xf32>
    %cst_30 = arith.constant 9.99999974E-6 : f32
    %66 = vector.broadcast %cst_30 : f32 to vector<152x1xf32>
    %67 = arith.addf %63, %66 : vector<152x1xf32>
    %68 = math.rsqrt %67 : vector<152x1xf32>
    %69 = vector.broadcast %68 : vector<152x1xf32> to vector<152x48xf32>
    %70 = arith.mulf %65, %69 : vector<152x48xf32>
    %cst_31 = arith.constant dense<0.000000e+00> : vector<152x128xf32>
    %71 = tpu.matmul %70, %51, %cst_31 {dimension_numbers = #tpu.dot_dimension_numbers<[1], [0], [0], [1], [0, 0, 1, 1], [], []>} : vector<152x48xf32>, vector<48x128xf32>, vector<152x128xf32> -> vector<152x128xf32>
    %72 = vector.broadcast %52 : vector<1x128xf32> to vector<152x128xf32>
    %73 = arith.addf %71, %72 : vector<152x128xf32>
    %c0_32 = arith.constant 0 : index
    %c0_33 = arith.constant 0 : index
    %74 = vector.load %arg8[%c0_32, %c0_33] : memref<152x128xf32, #tpu.memory_space<vmem>>, vector<152x128xf32>
    tpu.vector_store %arg8[%c0_32, %c0_33], %73 {strides = array<i32>} : memref<152x128xf32, #tpu.memory_space<vmem>>, vector<152x128xf32>,
    return
  }
  func.func @transform_0(%arg0: i32) -> (i32, i32) {
    %c0_i32 = arith.constant 0 : i32
    %c0_i32_0 = arith.constant 0 : i32
    return %arg0, %c0_i32 : i32, i32
  }
  func.func @transform_1(%arg0: i32) -> (i32, i32) {
    %c0_i32 = arith.constant 0 : i32
    %c0_i32_0 = arith.constant 0 : i32
    %c0_i32_1 = arith.constant 0 : i32
    return %c0_i32, %c0_i32_0 : i32, i32
  }
  func.func @transform_2(%arg0: i32) -> (i32, i32) {
    %c0_i32 = arith.constant 0 : i32
    %c0_i32_0 = arith.constant 0 : i32
    %c0_i32_1 = arith.constant 0 : i32
    return %c0_i32, %c0_i32_0 : i32, i32
  }
  func.func @transform_3(%arg0: i32) -> (i32, i32) {
    %c0_i32 = arith.constant 0 : i32
    %c0_i32_0 = arith.constant 0 : i32
    %c0_i32_1 = arith.constant 0 : i32
    return %c0_i32, %c0_i32_0 : i32, i32
  }
  func.func @transform_4(%arg0: i32) -> (i32, i32) {
    %c0_i32 = arith.constant 0 : i32
    %c0_i32_0 = arith.constant 0 : i32
    %c0_i32_1 = arith.constant 0 : i32
    return %c0_i32, %c0_i32_0 : i32, i32
  }
  func.func @transform_5(%arg0: i32) -> (i32, i32) {
    %c0_i32 = arith.constant 0 : i32
    %c0_i32_0 = arith.constant 0 : i32
    %c0_i32_1 = arith.constant 0 : i32
    return %c0_i32, %c0_i32_0 : i32, i32
  }
  func.func @transform_6(%arg0: i32) -> (i32, i32) {
    %c0_i32 = arith.constant 0 : i32
    %c0_i32_0 = arith.constant 0 : i32
    %c0_i32_1 = arith.constant 0 : i32
    return %c0_i32, %c0_i32_0 : i32, i32
  }
  func.func @transform_7(%arg0: i32) -> (i32, i32) {
    %c0_i32 = arith.constant 0 : i32
    %c0_i32_0 = arith.constant 0 : i32
    return %arg0, %c0_i32 : i32, i32
  }
}

module attributes {stable_mosaic.version = 11 : i64} {
  func.func @kernel(%arg0: i32, %arg1: memref<152x16xf32, #tpu.memory_space<vmem>>, %arg2: memref<16x32xf32, #tpu.memory_space<vmem>>, %arg3: memref<1x32xf32, #tpu.memory_space<vmem>>, %arg4: memref<32x48xf32, #tpu.memory_space<vmem>>, %arg5: memref<1x48xf32, #tpu.memory_space<vmem>>, %arg6: memref<48x128xf32, #tpu.memory_space<vmem>>, %arg7: memref<1x128xf32, #tpu.memory_space<vmem>>, %arg8: memref<152x128xf32, #tpu.memory_space<vmem>>) attributes {dimension_semantics = [#tpu.dimension_semantics<parallel>], iteration_bounds = array<i64: 2>, scalar_prefetch = 0 : i64, scratch_operands = 0 : i64, tpu.core_type = #tpu.core_type<tc>, window_params = [{transform_indices = @transform_0, window_bounds = array<i64: 152, 16>}, {pipeline_mode = #tpu.pipeline_mode<synchronous>, transform_indices = @transform_1, window_bounds = array<i64: 16, 32>}, {pipeline_mode = #tpu.pipeline_mode<synchronous>, transform_indices = @transform_2, window_bounds = array<i64: 1, 32>}, {pipeline_mode = #tpu.pipeline_mode<synchronous>, transform_indices = @transform_3, window_bounds = array<i64: 32, 48>}, {pipeline_mode = #tpu.pipeline_mode<synchronous>, transform_indices = @transform_4, window_bounds = array<i64: 1, 48>}, {pipeline_mode = #tpu.pipeline_mode<synchronous>, transform_indices = @transform_5, window_bounds = array<i64: 48, 128>}, {pipeline_mode = #tpu.pipeline_mode<synchronous>, transform_indices = @transform_6, window_bounds = array<i64: 1, 128>}, {transform_indices = @transform_7, window_bounds = array<i64: 152, 128>}]} {
    %c0 = arith.constant 0 : index
    %c0_0 = arith.constant 0 : index
    %0 = vector.load %arg1[%c0, %c0_0] : memref<152x16xf32, #tpu.memory_space<vmem>>, vector<152x16xf32>
    %c0_1 = arith.constant 0 : index
    %c0_2 = arith.constant 0 : index
    %1 = vector.load %arg2[%c0_1, %c0_2] : memref<16x32xf32, #tpu.memory_space<vmem>>, vector<16x32xf32>
    %c0_3 = arith.constant 0 : index
    %c0_4 = arith.constant 0 : index
    %2 = vector.load %arg3[%c0_3, %c0_4] : memref<1x32xf32, #tpu.memory_space<vmem>>, vector<1x32xf32>
    %cst = arith.constant dense<0.000000e+00> : vector<152xf32>
    %3 = vector.multi_reduction <add>, %0, %cst [1] : vector<152x16xf32> to vector<152xf32>
    %4 = vector.shape_cast %3 : vector<152xf32> to vector<152x1xf32>
    %cst_5 = arith.constant 1.600000e+01 : f32
    %5 = vector.broadcast %cst_5 : f32 to vector<152x1xf32>
    %6 = arith.divf %4, %5 : vector<152x1xf32>
    %7 = arith.mulf %0, %0 : vector<152x16xf32>
    %cst_6 = arith.constant dense<0.000000e+00> : vector<152xf32>
    %8 = vector.multi_reduction <add>, %7, %cst_6 [1] : vector<152x16xf32> to vector<152xf32>
    %9 = vector.shape_cast %8 : vector<152xf32> to vector<152x1xf32>
    %cst_7 = arith.constant 1.600000e+01 : f32
    %10 = vector.broadcast %cst_7 : f32 to vector<152x1xf32>
    %11 = arith.divf %9, %10 : vector<152x1xf32>
    %12 = arith.mulf %6, %6 : vector<152x1xf32>
    %13 = arith.subf %11, %12 : vector<152x1xf32>
    %14 = vector.broadcast %6 : vector<152x1xf32> to vector<152x16xf32>
    %15 = arith.subf %0, %14 : vector<152x16xf32>
    %cst_8 = arith.constant 9.99999974E-6 : f32
    %16 = vector.broadcast %cst_8 : f32 to vector<152x1xf32>
    %17 = arith.addf %13, %16 : vector<152x1xf32>
    %18 = math.rsqrt %17 : vector<152x1xf32>
    %19 = vector.broadcast %18 : vector<152x1xf32> to vector<152x16xf32>
    %20 = arith.mulf %15, %19 : vector<152x16xf32>
    %cst_9 = arith.constant dense<0.000000e+00> : vector<152x32xf32>
    %21 = tpu.matmul %20, %1, %cst_9 {dimension_numbers = #tpu.dot_dimension_numbers<[1], [0], [0], [1], [0, 0, 1, 1], [], []>} : vector<152x16xf32>, vector<16x32xf32>, vector<152x32xf32> -> vector<152x32xf32>
    %22 = vector.broadcast %2 : vector<1x32xf32> to vector<152x32xf32>
    %23 = arith.addf %21, %22 : vector<152x32xf32>
    %cst_10 = arith.constant 0.000000e+00 : f32
    %24 = vector.broadcast %cst_10 : f32 to vector<152x32xf32>
    %25 = arith.maximumf %23, %24 : vector<152x32xf32>
    %c0_11 = arith.constant 0 : index
    %c0_12 = arith.constant 0 : index
    %26 = vector.load %arg4[%c0_11, %c0_12] : memref<32x48xf32, #tpu.memory_space<vmem>>, vector<32x48xf32>
    %c0_13 = arith.constant 0 : index
    %c0_14 = arith.constant 0 : index
    %27 = vector.load %arg5[%c0_13, %c0_14] : memref<1x48xf32, #tpu.memory_space<vmem>>, vector<1x48xf32>
    %cst_15 = arith.constant dense<0.000000e+00> : vector<152xf32>
    %28 = vector.multi_reduction <add>, %25, %cst_15 [1] : vector<152x32xf32> to vector<152xf32>
    %29 = vector.shape_cast %28 : vector<152xf32> to vector<152x1xf32>
    %cst_16 = arith.constant 3.200000e+01 : f32
    %30 = vector.broadcast %cst_16 : f32 to vector<152x1xf32>
    %31 = arith.divf %29, %30 : vector<152x1xf32>
    %32 = arith.mulf %25, %25 : vector<152x32xf32>
    %cst_17 = arith.constant dense<0.000000e+00> : vector<152xf32>
    %33 = vector.multi_reduction <add>, %32, %cst_17 [1] : vector<152x32xf32> to vector<152xf32>
    %34 = vector.shape_cast %33 : vector<152xf32> to vector<152x1xf32>
    %cst_18 = arith.constant 3.200000e+01 : f32
    %35 = vector.broadcast %cst_18 : f32 to vector<152x1xf32>
    %36 = arith.divf %34, %35 : vector<152x1xf32>
    %37 = arith.mulf %31, %31 : vector<152x1xf32>
    %38 = arith.subf %36, %37 : vector<152x1xf32>
    %39 = vector.broadcast %31 : vector<152x1xf32> to vector<152x32xf32>
    %40 = arith.subf %25, %39 : vector<152x32xf32>
    %cst_19 = arith.constant 9.99999974E-6 : f32
    %41 = vector.broadcast %cst_19 : f32 to vector<152x1xf32>
    %42 = arith.addf %38, %41 : vector<152x1xf32>
    %43 = math.rsqrt %42 : vector<152x1xf32>
    %44 = vector.broadcast %43 : vector<152x1xf32> to vector<152x32xf32>
    %45 = arith.mulf %40, %44 : vector<152x32xf32>
    %cst_20 = arith.constant dense<0.000000e+00> : vector<152x48xf32>
    %46 = tpu.matmul %45, %26, %cst_20 {dimension_numbers = #tpu.dot_dimension_numbers<[1], [0], [0], [1], [0, 0, 1, 1], [], []>} : vector<152x32xf32>, vector<32x48xf32>, vector<152x48xf32> -> vector<152x48xf32>
    %47 = vector.broadcast %27 : vector<1x48xf32> to vector<152x48xf32>
    %48 = arith.addf %46, %47 : vector<152x48xf32>
    %cst_21 = arith.constant 0.000000e+00 : f32
    %49 = vector.broadcast %cst_21 : f32 to vector<152x48xf32>
    %50 = arith.maximumf %48, %49 : vector<152x48xf32>
    %c0_22 = arith.constant 0 : index
    %c0_23 = arith.constant 0 : index
    %51 = vector.load %arg6[%c0_22, %c0_23] : memref<48x128xf32, #tpu.memory_space<vmem>>, vector<48x128xf32>
    %c0_24 = arith.constant 0 : index
    %c0_25 = arith.constant 0 : index
    %52 = vector.load %arg7[%c0_24, %c0_25] : memref<1x128xf32, #tpu.memory_space<vmem>>, vector<1x128xf32>
    %cst_26 = arith.constant dense<0.000000e+00> : vector<152xf32>
    %53 = vector.multi_reduction <add>, %50, %cst_26 [1] : vector<152x48xf32> to vector<152xf32>
    %54 = vector.shape_cast %53 : vector<152xf32> to vector<152x1xf32>
    %cst_27 = arith.constant 4.800000e+01 : f32
    %55 = vector.broadcast %cst_27 : f32 to vector<152x1xf32>
    %56 = arith.divf %54, %55 : vector<152x1xf32>
    %57 = arith.mulf %50, %50 : vector<152x48xf32>
    %cst_28 = arith.constant dense<0.000000e+00> : vector<152xf32>
    %58 = vector.multi_reduction <add>, %57, %cst_28 [1] : vector<152x48xf32> to vector<152xf32>
    %59 = vector.shape_cast %58 : vector<152xf32> to vector<152x1xf32>
    %cst_29 = arith.constant 4.800000e+01 : f32
    %60 = vector.broadcast %cst_29 : f32 to vector<152x1xf32>
    %61 = arith.divf %59, %60 : vector<152x1xf32>
    %62 = arith.mulf %56, %56 : vector<152x1xf32>
    %63 = arith.subf %61, %62 : vector<152x1xf32>
    %64 = vector.broadcast %56 : vector<152x1xf32> to vector<152x48xf32>
    %65 = arith.subf %50, %64 : vector<152x48xf32>
    %cst_30 = arith.constant 9.99999974E-6 : f32
    %66 = vector.broadcast %cst_30 : f32 to vector<152x1xf32>
    %67 = arith.addf %63, %66 : vector<152x1xf32>
    %68 = math.rsqrt %67 : vector<152x1xf32>
    %69 = vector.broadcast %68 : vector<152x1xf32> to vector<152x48xf32>
    %70 = arith.mulf %65, %69 : vector<152x48xf32>
    %cst_31 = arith.constant dense<0.000000e+00> : vector<152x128xf32>
    %71 = tpu.matmul %70, %51, %cst_31 {dimension_numbers = #tpu.dot_dimension_numbers<[1], [0], [0], [1], [0, 0, 1, 1], [], []>} : vector<152x48xf32>, vector<48x128xf32>, vector<152x128xf32> -> vector<152x128xf32>
    %72 = vector.broadcast %52 : vector<1x128xf32> to vector<152x128xf32>
    %73 = arith.addf %71, %72 : vector<152x128xf32>
    %c0_32 = arith.constant 0 : index
    %c0_33 = arith.constant 0 : index
    %74 = vector.load %arg8[%c0_32, %c0_33] : memref<152x128xf32, #tpu.memory_space<vmem>>, vector<152x128xf32>
    tpu.vector_store %arg8[%c0_32, %c0_33], %73 {strides = array<i32>} : memref<152x128xf32, #tpu.memory_space<vmem>>, vector<152x128xf32>,
    return
  }
  func.func @transform_0(%arg0: i32) -> (i32, i32) {
    %c0_i32 = arith.constant 0 : i32
    %c0_i32_0 = arith.constant 0 : i32
    return %arg0, %c0_i32 : i32, i32
  }
  func.func @transform_1(%arg0: i32) -> (i32, i32) {
    %c0_i32 = arith.constant 0 : i32
    %c0_i32_0 = arith.constant 0 : i32
    %c0_i32_1 = arith.constant 0 : i32
    return %c0_i32, %c0_i32_0 : i32, i32
  }
  func.func @transform_2(%arg0: i32) -> (i32, i32) {
    %c0_i32 = arith.constant 0 : i32
    %c0_i32_0 = arith.constant 0 : i32
    %c0_i32_1 = arith.constant 0 : i32
    return %c0_i32, %c0_i32_0 : i32, i32
  }
  func.func @transform_3(%arg0: i32) -> (i32, i32) {
    %c0_i32 = arith.constant 0 : i32
    %c0_i32_0 = arith.constant 0 : i32
    %c0_i32_1 = arith.constant 0 : i32
    return %c0_i32, %c0_i32_0 : i32, i32
  }
  func.func @transform_4(%arg0: i32) -> (i32, i32) {
    %c0_i32 = arith.constant 0 : i32
    %c0_i32_0 = arith.constant 0 : i32
    %c0_i32_1 = arith.constant 0 : i32
    return %c0_i32, %c0_i32_0 : i32, i32
  }
  func.func @transform_5(%arg0: i32) -> (i32, i32) {
    %c0_i32 = arith.constant 0 : i32
    %c0_i32_0 = arith.constant 0 : i32
    %c0_i32_1 = arith.constant 0 : i32
    return %c0_i32, %c0_i32_0 : i32, i32
  }
  func.func @transform_6(%arg0: i32) -> (i32, i32) {
    %c0_i32 = arith.constant 0 : i32
    %c0_i32_0 = arith.constant 0 : i32
    %c0_i32_1 = arith.constant 0 : i32
    return %c0_i32, %c0_i32_0 : i32, i32
  }
  func.func @transform_7(%arg0: i32) -> (i32, i32) {
    %c0_i32 = arith.constant 0 : i32
    %c0_i32_0 = arith.constant 0 : i32
    return %arg0, %c0_i32 : i32, i32
  }
}

</mosaic_0001>

<llo_original>
// kernel: tpu_custom_call.1
$region0: #{tpu_custom_call.1}
  #allocation0 [shape = 'u32[]', space=smem, size = 0x4, offset = 0x4, fixed_abs, tag = 'smem constant byte address 0x4 - core index']
  #allocation1 [shape = 'u32[72,128]{1,0:T(1,128)}', space=vmem, size = 0x9000, scoped, tag = 'internal scratch']
  %s0 = inlined_call_operand.vmem [shape: f32[300,16], index: 0, kind: input, shape index: {}]
  %s1 = inlined_call_operand.vmem [shape: f32[16,32], index: 1, kind: input, shape index: {}]
  %s2 = inlined_call_operand.vmem [shape: f32[1,32], index: 2, kind: input, shape index: {}]
  %s3 = inlined_call_operand.vmem [shape: f32[32,48], index: 3, kind: input, shape index: {}]
  %s4 = inlined_call_operand.vmem [shape: f32[1,48], index: 4, kind: input, shape index: {}]
  %s5 = inlined_call_operand.vmem [shape: f32[48,128], index: 5, kind: input, shape index: {}]
  %s6 = inlined_call_operand.vmem [shape: f32[1,128], index: 6, kind: input, shape index: {}]
  %s7 = inlined_call_operand.hbm [shape: f32[300,128], index: 7, kind: output, shape index: {}]
  %s8 = sld [smem:[#allocation0]]
  $region61: #{tpu_custom_call.1} parent=0
    _
  %s10 = ssub.s32 1, %s8
  %s11 = scalar_select 0, %s10, %s8
  $region1: #{tpu_custom_call.1} parent=0
    #allocation2 [shape = 'u8[155648]{0}', space=vmem, size = 0x26000, scoped, tag = 'output window, operand 0']
    #allocation3 [shape = 's32[2]{0}', space=sflag, size = 0x8, scoped, tag = 'scoped memory for tpu_custom_call.1']
    %12 = vsyncpa [#allocation3], 0
    %s13 = scalar_lea.sflag [#allocation3], 1
    %14 = vsyncpa %s13, 0
    loop: start=0, step=1, limit=4
    $region2: #{tpu_custom_call.1} parent=1 // loop_pre_header
      _
    $region3: #{tpu_custom_call.1} parent=1 // loop_header
      %s16 = sphi 0, %s20
      %p17 = scmp.ge.s32.totalorder %s16, 4
      %s26 = sphi 0, %s28
      %s29 = sphi 0, %s26
      %s30 = sphi 0, %s29
      %s46 = sphi 0, %s30
      %s50 = sphi 0, %s50
      %s52 = sphi 0, %s50
      %s53 = sphi 0, %s52
      %s67 = sphi 0, %s53
      %s71 = sphi 0, %s71
      %s73 = sphi 0, %s71
      %s74 = sphi 0, %s73
      %s88 = sphi 0, %s74
      %s92 = sphi 0, %s92
      %s94 = sphi 0, %s92
      %s95 = sphi 0, %s94
      %s109 = sphi 0, %s95
      %s113 = sphi 0, %s113
      %s115 = sphi 0, %s113
      %s116 = sphi 0, %s115
      %s130 = sphi 0, %s116
      %s134 = sphi 0, %s134
      %s136 = sphi 0, %s134
      %s137 = sphi 0, %s136
      %s151 = sphi 0, %s137
      %s155 = sphi 0, %s155
      %s157 = sphi 0, %s155
      %s158 = sphi 0, %s157
      %s172 = sphi 0, %s158
      %s178 = sphi 0, %s180
      %s181 = sphi 0, %s178
      %s182 = sphi 0, %s181
      %s198 = sphi 0, %s182
    $region4: #{tpu_custom_call.1} parent=1 // loop_header_branch
      %19 = sbr.rel (%p17) target = $region8
    $region5: #{tpu_custom_call.1} parent=1 // loop_body
      %s21 = ssub.s32 %s16, 1
      %s22 = ssub.s32 %s16, 2
      %s23 = sadd.s32 %s16, 1
      %s24 = ssub.s32 %s16, %s23
      %p25 = scmp.eq.s32.totalorder %s24, 0
      %s27 = sadd.s32 %s26, 1
      %s28 = scalar_select %p25, %s26, %s27
      %p31 = pneg %p25
      %p32 = scmp.eq.s32.totalorder %s16, 1
      %p33 = por %p31, %p32
      %p34 = scmp.ne.s32.totalorder %s26, %s29
      %p35 = scmp.eq.s32.totalorder %s16, 0
      %p36 = por %p34, %p35
      %p37 = scmp.ne.s32.totalorder %s26, %s29
      %p38 = scmp.eq.s32.totalorder %s21, 1
      %p39 = por %p37, %p38
      %p40 = scmp.ne.s32.totalorder %s29, %s30
      %p41 = scmp.eq.s32.totalorder %s21, 0
      %p42 = por %p40, %p41
      %p43 = scmp.ne.s32.totalorder %s29, %s30
      %p44 = scmp.eq.s32.totalorder %s22, 1
      %p45 = por %p43, %p44
      %p47 = scmp.ne.s32.totalorder %s30, %s46
      %p48 = scmp.eq.s32.totalorder %s22, 0
      %p49 = por %p47, %p48
      %s51 = sadd.s32 %s50, 1
      %p54 = scmp.eq.s32.totalorder %s16, 1
      %p55 = scmp.ne.s32.totalorder %s50, %s52
      %p56 = scmp.eq.s32.totalorder %s16, 0
      %p57 = por %p55, %p56
      %p58 = scmp.ne.s32.totalorder %s50, %s52
      %p59 = scmp.eq.s32.totalorder %s21, 1
      %p60 = por %p58, %p59
      %p61 = scmp.ne.s32.totalorder %s52, %s53
      %p62 = scmp.eq.s32.totalorder %s21, 0
      %p63 = por %p61, %p62
      %p64 = scmp.ne.s32.totalorder %s52, %s53
      %p65 = scmp.eq.s32.totalorder %s22, 1
      %p66 = por %p64, %p65
      %p68 = scmp.ne.s32.totalorder %s53, %s67
      %p69 = scmp.eq.s32.totalorder %s22, 0
      %p70 = por %p68, %p69
      %s72 = sadd.s32 %s71, 1
      %p75 = scmp.eq.s32.totalorder %s16, 1
      %p76 = scmp.ne.s32.totalorder %s71, %s73
      %p77 = scmp.eq.s32.totalorder %s16, 0
      %p78 = por %p76, %p77
      %p79 = scmp.ne.s32.totalorder %s71, %s73
      %p80 = scmp.eq.s32.totalorder %s21, 1
      %p81 = por %p79, %p80
      %p82 = scmp.ne.s32.totalorder %s73, %s74
      %p83 = scmp.eq.s32.totalorder %s21, 0
      %p84 = por %p82, %p83
      %p85 = scmp.ne.s32.totalorder %s73, %s74
      %p86 = scmp.eq.s32.totalorder %s22, 1
      %p87 = por %p85, %p86
      %p89 = scmp.ne.s32.totalorder %s74, %s88
      %p90 = scmp.eq.s32.totalorder %s22, 0
      %p91 = por %p89, %p90
      %s93 = sadd.s32 %s92, 1
      %p96 = scmp.eq.s32.totalorder %s16, 1
      %p97 = scmp.ne.s32.totalorder %s92, %s94
      %p98 = scmp.eq.s32.totalorder %s16, 0
      %p99 = por %p97, %p98
      %p100 = scmp.ne.s32.totalorder %s92, %s94
      %p101 = scmp.eq.s32.totalorder %s21, 1
      %p102 = por %p100, %p101
      %p103 = scmp.ne.s32.totalorder %s94, %s95
      %p104 = scmp.eq.s32.totalorder %s21, 0
      %p105 = por %p103, %p104
      %p106 = scmp.ne.s32.totalorder %s94, %s95
      %p107 = scmp.eq.s32.totalorder %s22, 1
      %p108 = por %p106, %p107
      %p110 = scmp.ne.s32.totalorder %s95, %s109
      %p111 = scmp.eq.s32.totalorder %s22, 0
      %p112 = por %p110, %p111
      %s114 = sadd.s32 %s113, 1
      %p117 = scmp.eq.s32.totalorder %s16, 1
      %p118 = scmp.ne.s32.totalorder %s113, %s115
      %p119 = scmp.eq.s32.totalorder %s16, 0
      %p120 = por %p118, %p119
      %p121 = scmp.ne.s32.totalorder %s113, %s115
      %p122 = scmp.eq.s32.totalorder %s21, 1
      %p123 = por %p121, %p122
      %p124 = scmp.ne.s32.totalorder %s115, %s116
      %p125 = scmp.eq.s32.totalorder %s21, 0
      %p126 = por %p124, %p125
      %p127 = scmp.ne.s32.totalorder %s115, %s116
      %p128 = scmp.eq.s32.totalorder %s22, 1
      %p129 = por %p127, %p128
      %p131 = scmp.ne.s32.totalorder %s116, %s130
      %p132 = scmp.eq.s32.totalorder %s22, 0
      %p133 = por %p131, %p132
      %s135 = sadd.s32 %s134, 1
      %p138 = scmp.eq.s32.totalorder %s16, 1
      %p139 = scmp.ne.s32.totalorder %s134, %s136
      %p140 = scmp.eq.s32.totalorder %s16, 0
      %p141 = por %p139, %p140
      %p142 = scmp.ne.s32.totalorder %s134, %s136
      %p143 = scmp.eq.s32.totalorder %s21, 1
      %p144 = por %p142, %p143
      %p145 = scmp.ne.s32.totalorder %s136, %s137
      %p146 = scmp.eq.s32.totalorder %s21, 0
      %p147 = por %p145, %p146
      %p148 = scmp.ne.s32.totalorder %s136, %s137
      %p149 = scmp.eq.s32.totalorder %s22, 1
      %p150 = por %p148, %p149
      %p152 = scmp.ne.s32.totalorder %s137, %s151
      %p153 = scmp.eq.s32.totalorder %s22, 0
      %p154 = por %p152, %p153
      %s156 = sadd.s32 %s155, 1
      %p159 = scmp.eq.s32.totalorder %s16, 1
      %p160 = scmp.ne.s32.totalorder %s155, %s157
      %p161 = scmp.eq.s32.totalorder %s16, 0
      %p162 = por %p160, %p161
      %p163 = scmp.ne.s32.totalorder %s155, %s157
      %p164 = scmp.eq.s32.totalorder %s21, 1
      %p165 = por %p163, %p164
      %p166 = scmp.ne.s32.totalorder %s157, %s158
      %p167 = scmp.eq.s32.totalorder %s21, 0
      %p168 = por %p166, %p167
      %p169 = scmp.ne.s32.totalorder %s157, %s158
      %p170 = scmp.eq.s32.totalorder %s22, 1
      %p171 = por %p169, %p170
      %p173 = scmp.ne.s32.totalorder %s158, %s172
      %p174 = scmp.eq.s32.totalorder %s22, 0
      %p175 = por %p173, %p174
      %s176 = ssub.s32 %s16, %s23
      %p177 = scmp.eq.s32.totalorder %s176, 0
      %s179 = sadd.s32 %s178, 1
      %s180 = scalar_select %p177, %s178, %s179
      %p183 = pneg %p177
      %p184 = scmp.eq.s32.totalorder %s16, 1
      %p185 = por %p183, %p184
      %p186 = scmp.ne.s32.totalorder %s178, %s181
      %p187 = scmp.eq.s32.totalorder %s16, 0
      %p188 = por %p186, %p187
      %p189 = scmp.ne.s32.totalorder %s178, %s181
      %p190 = scmp.eq.s32.totalorder %s21, 1
      %p191 = por %p189, %p190
      %p192 = scmp.ne.s32.totalorder %s181, %s182
      %p193 = scmp.eq.s32.totalorder %s21, 0
      %p194 = por %p192, %p193
      %p195 = scmp.ne.s32.totalorder %s181, %s182
      %p196 = scmp.eq.s32.totalorder %s22, 1
      %p197 = por %p195, %p196
      %p199 = scmp.ne.s32.totalorder %s182, %s198
      %p200 = scmp.eq.s32.totalorder %s22, 0
      %p201 = por %p199, %p200
      %p202 = scmp.le.s32.totalorder 1, %s16
      %p203 = scmp.lt.s32.totalorder %s16, 3
      %p204 = pnand %p202, %p203
      %p205 = pneg %p204
      // Predicated region
      $region9: #{tpu_custom_call.1} parent=5 // pred_check
        _
      $region10: #{tpu_custom_call.1} parent=5 // pred_check_branch
        %207 = sbr.rel (%p204) target = $region12
      $region11: #{tpu_custom_call.1} parent=5 // pred_region
        %s208 = ssub.s32 %s16, 1
        // Predicated region
        $region13: #{tpu_custom_call.1} parent=11 // pred_check
          %p209 = pneg %p63
        $region14: #{tpu_custom_call.1} parent=11 // pred_check_branch
          %211 = sbr.rel (%p209) target = $region16
        $region15: #{tpu_custom_call.1} parent=11 // pred_region
          _
        $region16: #{tpu_custom_call.1} parent=11 // pred_fallthru
          _
        // Predicated region
        $region17: #{tpu_custom_call.1} parent=11 // pred_check
          %p212 = pneg %p84
        $region18: #{tpu_custom_call.1} parent=11 // pred_check_branch
          %214 = sbr.rel (%p212) target = $region20
        $region19: #{tpu_custom_call.1} parent=11 // pred_region
          _
        $region20: #{tpu_custom_call.1} parent=11 // pred_fallthru
          _
        // Predicated region
        $region21: #{tpu_custom_call.1} parent=11 // pred_check
          %p215 = pneg %p105
        $region22: #{tpu_custom_call.1} parent=11 // pred_check_branch
          %217 = sbr.rel (%p215) target = $region24
        $region23: #{tpu_custom_call.1} parent=11 // pred_region
          _
        $region24: #{tpu_custom_call.1} parent=11 // pred_fallthru
          _
        // Predicated region
        $region25: #{tpu_custom_call.1} parent=11 // pred_check
          %p218 = pneg %p126
        $region26: #{tpu_custom_call.1} parent=11 // pred_check_branch
          %220 = sbr.rel (%p218) target = $region28
        $region27: #{tpu_custom_call.1} parent=11 // pred_region
          _
        $region28: #{tpu_custom_call.1} parent=11 // pred_fallthru
          _
        // Predicated region
        $region29: #{tpu_custom_call.1} parent=11 // pred_check
          %p221 = pneg %p147
        $region30: #{tpu_custom_call.1} parent=11 // pred_check_branch
          %223 = sbr.rel (%p221) target = $region32
        $region31: #{tpu_custom_call.1} parent=11 // pred_region
          _
        $region32: #{tpu_custom_call.1} parent=11 // pred_fallthru
          _
        // Predicated region
        $region33: #{tpu_custom_call.1} parent=11 // pred_check
          %p224 = pneg %p168
        $region34: #{tpu_custom_call.1} parent=11 // pred_check_branch
          %226 = sbr.rel (%p224) target = $region36
        $region35: #{tpu_custom_call.1} parent=11 // pred_region
          _
        $region36: #{tpu_custom_call.1} parent=11 // pred_fallthru
          _
      $region12: #{tpu_custom_call.1} parent=5 // pred_fallthru
        _
      %p227 = scmp.lt.s32.totalorder %s16, 2
      // Predicated region
      $region37: #{tpu_custom_call.1} parent=5 // pred_check
        %p228 = pneg %p227
      $region38: #{tpu_custom_call.1} parent=5 // pred_check_branch
        %230 = sbr.rel (%p228) target = $region40
      $region39: #{tpu_custom_call.1} parent=5 // pred_region
        // Predicated region
        $region41: #{tpu_custom_call.1} parent=39 // pred_check
          %p231 = pneg %p36
        $region42: #{tpu_custom_call.1} parent=39 // pred_check_branch
          %233 = sbr.rel (%p231) target = $region44
        $region43: #{tpu_custom_call.1} parent=39 // pred_region
          %s234 = smul.u32 19, %s16
          %p235 = scmp.lt.s32.totalorder %s234, 37
          %s236 = scalar_select %p235, %s234, 37
          %s237 = smul.addr %s236, 8
          %s238 = scalar_lea.vmem %s0, %s237
          %s239 = smul.u32 19, %s16
        $region44: #{tpu_custom_call.1} parent=39 // pred_fallthru
          _
      $region40: #{tpu_custom_call.1} parent=5 // pred_fallthru
        _
      %p240 = scmp.le.s32.totalorder 1, %s16
      %p241 = scmp.lt.s32.totalorder %s16, 3
      %p242 = pnand %p240, %p241
      %p243 = pneg %p242
      // Predicated region
      $region45: #{tpu_custom_call.1} parent=5 // pred_check
        _
      $region46: #{tpu_custom_call.1} parent=5 // pred_check_branch
        %245 = sbr.rel (%p242) target = $region48
      $region47: #{tpu_custom_call.1} parent=5 // pred_region
        %s246 = ssub.s32 %s16, 1
        %s247 = smul.u32 19, %s21
        %p248 = scmp.lt.s32.totalorder %s247, 37
        %s249 = scalar_select %p248, %s247, 37
        %s250 = smul.addr %s249, 8
        %s251 = scalar_lea.vmem %s0, %s250
        %p252 = pneg %p42
        %p253 = pneg %p39
        %p254 = pneg %p63
        %p255 = pneg %p60
        %p256 = pneg %p84
        %p257 = pneg %p81
        %p258 = pneg %p105
        %p259 = pneg %p102
        %p260 = pneg %p126
        %p261 = pneg %p123
        %p262 = pneg %p147
        %p263 = pneg %p144
        %p264 = pneg %p168
        %p265 = pneg %p165
        %p266 = pneg %p194
        %p267 = pneg %p191
        %s268 = sand.u32 %s181, 1
        %s269 = scalar_lea.sflag [#allocation3], %s268
        %s270 = sand.u32 %s181, 1
        %s271 = smul.addr %s270, 152
        %s272 = scalar_lea.vmem [#allocation2], %s271
        %s273 = smul.u32 19, %s21
        %p274 = scmp.lt.s32.totalorder %s273, 37
        %s275 = scalar_select %p274, %s273, 37
        %s276 = smul.addr %s275, 8
        %s277 = scalar_lea.vmem %s0, %s276
        %s278 = smul.u32 19, %s21
        %s279 = smul.u32 19, %s21
        %v280 = vld [vmem:[%s277] sm:$0xff]
        %v281 = vld [vmem:[%s277 + $0x8] sm:$0xff]
        %v282 = vld [vmem:[%s277 + $0x10] sm:$0xff]
        %v283 = vld [vmem:[%s277 + $0x18] sm:$0xff]
        %v284 = vld [vmem:[%s277 + $0x20] sm:$0xff]
        %v285 = vld [vmem:[%s277 + $0x28] sm:$0xff]
        %v286 = vld [vmem:[%s277 + $0x30] sm:$0xff]
        %v287 = vld [vmem:[%s277 + $0x38] sm:$0xff]
        %v288 = vld [vmem:[%s277 + $0x40] sm:$0xff]
        %v289 = vld [vmem:[%s277 + $0x48] sm:$0xff]
        %v290 = vld [vmem:[%s277 + $0x50] sm:$0xff]
        %v291 = vld [vmem:[%s277 + $0x58] sm:$0xff]
        %v292 = vld [vmem:[%s277 + $0x60] sm:$0xff]
        %v293 = vld [vmem:[%s277 + $0x68] sm:$0xff]
        %v294 = vld [vmem:[%s277 + $0x70] sm:$0xff]
        %v295 = vld [vmem:[%s277 + $0x78] sm:$0xff]
        %v296 = vld [vmem:[%s277 + $0x80] sm:$0xff]
        %v297 = vld [vmem:[%s277 + $0x88] sm:$0xff]
        %v298 = vld [vmem:[%s277 + $0x90] sm:$0xff]
        %v299 = vld [vmem:[%s1] sm:$0xff]
        %v300 = vld [vmem:[%s1 + $0x8] sm:$0xff]
        %v301 = vld [vmem:[%s2] sm:$0x1]
        %vm302 = vcmask 130048
        %v303 = vsel %vm302, %v280, 0.0
        %304 = vadd.xlane.f32.xlu0 %v303
        %v305 = vpop.xlane.xlu0 %304
        %v306 = vsel %vm302, %v281, 0.0
        %307 = vadd.xlane.f32.xlu0 %v306
        %v308 = vpop.xlane.xlu0 %307
        %v309 = vsel %vm302, %v282, 0.0
        %310 = vadd.xlane.f32.xlu0 %v309
        %v311 = vpop.xlane.xlu0 %310
        %v312 = vsel %vm302, %v283, 0.0
        %313 = vadd.xlane.f32.xlu0 %v312
        %v314 = vpop.xlane.xlu0 %313
        %v315 = vsel %vm302, %v284, 0.0
        %316 = vadd.xlane.f32.xlu0 %v315
        %v317 = vpop.xlane.xlu0 %316
        %v318 = vsel %vm302, %v285, 0.0
        %319 = vadd.xlane.f32.xlu0 %v318
        %v320 = vpop.xlane.xlu0 %319
        %v321 = vsel %vm302, %v286, 0.0
        %322 = vadd.xlane.f32.xlu0 %v321
        %v323 = vpop.xlane.xlu0 %322
        %v324 = vsel %vm302, %v287, 0.0
        %325 = vadd.xlane.f32.xlu0 %v324
        %v326 = vpop.xlane.xlu0 %325
        %v327 = vsel %vm302, %v288, 0.0
        %328 = vadd.xlane.f32.xlu0 %v327
        %v329 = vpop.xlane.xlu0 %328
        %v330 = vsel %vm302, %v289, 0.0
        %331 = vadd.xlane.f32.xlu0 %v330
        %v332 = vpop.xlane.xlu0 %331
        %v333 = vsel %vm302, %v290, 0.0
        %334 = vadd.xlane.f32.xlu0 %v333
        %v335 = vpop.xlane.xlu0 %334
        %v336 = vsel %vm302, %v291, 0.0
        %337 = vadd.xlane.f32.xlu0 %v336
        %v338 = vpop.xlane.xlu0 %337
        %v339 = vsel %vm302, %v292, 0.0
        %340 = vadd.xlane.f32.xlu0 %v339
        %v341 = vpop.xlane.xlu0 %340
        %v342 = vsel %vm302, %v293, 0.0
        %343 = vadd.xlane.f32.xlu0 %v342
        %v344 = vpop.xlane.xlu0 %343
        %v345 = vsel %vm302, %v294, 0.0
        %346 = vadd.xlane.f32.xlu0 %v345
        %v347 = vpop.xlane.xlu0 %346
        %v348 = vsel %vm302, %v295, 0.0
        %349 = vadd.xlane.f32.xlu0 %v348
        %v350 = vpop.xlane.xlu0 %349
        %v351 = vsel %vm302, %v296, 0.0
        %352 = vadd.xlane.f32.xlu0 %v351
        %v353 = vpop.xlane.xlu0 %352
        %v354 = vsel %vm302, %v297, 0.0
        %355 = vadd.xlane.f32.xlu0 %v354
        %v356 = vpop.xlane.xlu0 %355
        %v357 = vsel %vm302, %v298, 0.0
        %358 = vadd.xlane.f32.xlu0 %v357
        %v359 = vpop.xlane.xlu0 %358
        %v360 = vrcp.pop 16.0
        %v361 = vmul.f32 16.0, %v360
        %v362 = vsub.f32 1.0, %v361
        %v363 = vmul.f32 %v360, %v362
        %v364 = vadd.f32 %v360, %v363
        %vm365 = vweird.f32 %v360
        %v366 = vsel %vm365, %v360, %v364
        %v367 = vmul.f32 %v305, %v366
        %v368 = vmul.f32 %v308, %v366
        %v369 = vmul.f32 %v311, %v366
        %v370 = vmul.f32 %v314, %v366
        %v371 = vmul.f32 %v317, %v366
        %v372 = vmul.f32 %v320, %v366
        %v373 = vmul.f32 %v323, %v366
        %v374 = vmul.f32 %v326, %v366
        %v375 = vmul.f32 %v329, %v366
        %v376 = vmul.f32 %v332, %v366
        %v377 = vmul.f32 %v335, %v366
        %v378 = vmul.f32 %v338, %v366
        %v379 = vmul.f32 %v341, %v366
        %v380 = vmul.f32 %v344, %v366
        %v381 = vmul.f32 %v347, %v366
        %v382 = vmul.f32 %v350, %v366
        %v383 = vmul.f32 %v353, %v366
        %v384 = vmul.f32 %v356, %v366
        %v385 = vmul.f32 %v359, %v366
        %v386 = vmul.f32 %v280, %v280
        %v387 = vmul.f32 %v281, %v281
        %v388 = vmul.f32 %v282, %v282
        %v389 = vmul.f32 %v283, %v283
        %v390 = vmul.f32 %v284, %v284
        %v391 = vmul.f32 %v285, %v285
        %v392 = vmul.f32 %v286, %v286
        %v393 = vmul.f32 %v287, %v287
        %v394 = vmul.f32 %v288, %v288
        %v395 = vmul.f32 %v289, %v289
        %v396 = vmul.f32 %v290, %v290
        %v397 = vmul.f32 %v291, %v291
        %v398 = vmul.f32 %v292, %v292
        %v399 = vmul.f32 %v293, %v293
        %v400 = vmul.f32 %v294, %v294
        %v401 = vmul.f32 %v295, %v295
        %v402 = vmul.f32 %v296, %v296
        %v403 = vmul.f32 %v297, %v297
        %v404 = vmul.f32 %v298, %v298
        %v405 = vsel %vm302, %v386, 0.0
        %406 = vadd.xlane.f32.xlu0 %v405
        %v407 = vpop.xlane.xlu0 %406
        %v408 = vsel %vm302, %v387, 0.0
        %409 = vadd.xlane.f32.xlu0 %v408
        %v410 = vpop.xlane.xlu0 %409
        %v411 = vsel %vm302, %v388, 0.0
        %412 = vadd.xlane.f32.xlu0 %v411
        %v413 = vpop.xlane.xlu0 %412
        %v414 = vsel %vm302, %v389, 0.0
        %415 = vadd.xlane.f32.xlu0 %v414
        %v416 = vpop.xlane.xlu0 %415
        %v417 = vsel %vm302, %v390, 0.0
        %418 = vadd.xlane.f32.xlu0 %v417
        %v419 = vpop.xlane.xlu0 %418
        %v420 = vsel %vm302, %v391, 0.0
        %421 = vadd.xlane.f32.xlu0 %v420
        %v422 = vpop.xlane.xlu0 %421
        %v423 = vsel %vm302, %v392, 0.0
        %424 = vadd.xlane.f32.xlu0 %v423
        %v425 = vpop.xlane.xlu0 %424
        %v426 = vsel %vm302, %v393, 0.0
        %427 = vadd.xlane.f32.xlu0 %v426
        %v428 = vpop.xlane.xlu0 %427
        %v429 = vsel %vm302, %v394, 0.0
        %430 = vadd.xlane.f32.xlu0 %v429
        %v431 = vpop.xlane.xlu0 %430
        %v432 = vsel %vm302, %v395, 0.0
        %433 = vadd.xlane.f32.xlu0 %v432
        %v434 = vpop.xlane.xlu0 %433
        %v435 = vsel %vm302, %v396, 0.0
        %436 = vadd.xlane.f32.xlu0 %v435
        %v437 = vpop.xlane.xlu0 %436
        %v438 = vsel %vm302, %v397, 0.0
        %439 = vadd.xlane.f32.xlu0 %v438
        %v440 = vpop.xlane.xlu0 %439
        %v441 = vsel %vm302, %v398, 0.0
        %442 = vadd.xlane.f32.xlu0 %v441
        %v443 = vpop.xlane.xlu0 %442
        %v444 = vsel %vm302, %v399, 0.0
        %445 = vadd.xlane.f32.xlu0 %v444
        %v446 = vpop.xlane.xlu0 %445
        %v447 = vsel %vm302, %v400, 0.0
        %448 = vadd.xlane.f32.xlu0 %v447
        %v449 = vpop.xlane.xlu0 %448
        %v450 = vsel %vm302, %v401, 0.0
        %451 = vadd.xlane.f32.xlu0 %v450
        %v452 = vpop.xlane.xlu0 %451
        %v453 = vsel %vm302, %v402, 0.0
        %454 = vadd.xlane.f32.xlu0 %v453
        %v455 = vpop.xlane.xlu0 %454
        %v456 = vsel %vm302, %v403, 0.0
        %457 = vadd.xlane.f32.xlu0 %v456
        %v458 = vpop.xlane.xlu0 %457
        %v459 = vsel %vm302, %v404, 0.0
        %460 = vadd.xlane.f32.xlu0 %v459
        %v461 = vpop.xlane.xlu0 %460
        %v462 = vmul.f32 %v407, %v366
        %v463 = vmul.f32 %v410, %v366
        %v464 = vmul.f32 %v413, %v366
        %v465 = vmul.f32 %v416, %v366
        %v466 = vmul.f32 %v419, %v366
        %v467 = vmul.f32 %v422, %v366
        %v468 = vmul.f32 %v425, %v366
        %v469 = vmul.f32 %v428, %v366
        %v470 = vmul.f32 %v431, %v366
        %v471 = vmul.f32 %v434, %v366
        %v472 = vmul.f32 %v437, %v366
        %v473 = vmul.f32 %v440, %v366
        %v474 = vmul.f32 %v443, %v366
        %v475 = vmul.f32 %v446, %v366
        %v476 = vmul.f32 %v449, %v366
        %v477 = vmul.f32 %v452, %v366
        %v478 = vmul.f32 %v455, %v366
        %v479 = vmul.f32 %v458, %v366
        %v480 = vmul.f32 %v461, %v366
        %v481 = vmul.f32 %v367, %v367
        %v482 = vmul.f32 %v368, %v368
        %v483 = vmul.f32 %v369, %v369
        %v484 = vmul.f32 %v370, %v370
        %v485 = vmul.f32 %v371, %v371
        %v486 = vmul.f32 %v372, %v372
        %v487 = vmul.f32 %v373, %v373
        %v488 = vmul.f32 %v374, %v374
        %v489 = vmul.f32 %v375, %v375
        %v490 = vmul.f32 %v376, %v376
        %v491 = vmul.f32 %v377, %v377
        %v492 = vmul.f32 %v378, %v378
        %v493 = vmul.f32 %v379, %v379
        %v494 = vmul.f32 %v380, %v380
        %v495 = vmul.f32 %v381, %v381
        %v496 = vmul.f32 %v382, %v382
        %v497 = vmul.f32 %v383, %v383
        %v498 = vmul.f32 %v384, %v384
        %v499 = vmul.f32 %v385, %v385
        %v500 = vsub.f32 %v462, %v481
        %v501 = vsub.f32 %v463, %v482
        %v502 = vsub.f32 %v464, %v483
        %v503 = vsub.f32 %v465, %v484
        %v504 = vsub.f32 %v466, %v485
        %v505 = vsub.f32 %v467, %v486
        %v506 = vsub.f32 %v468, %v487
        %v507 = vsub.f32 %v469, %v488
        %v508 = vsub.f32 %v470, %v489
        %v509 = vsub.f32 %v471, %v490
        %v510 = vsub.f32 %v472, %v491
        %v511 = vsub.f32 %v473, %v492
        %v512 = vsub.f32 %v474, %v493
        %v513 = vsub.f32 %v475, %v494
        %v514 = vsub.f32 %v476, %v495
        %v515 = vsub.f32 %v477, %v496
        %v516 = vsub.f32 %v478, %v497
        %v517 = vsub.f32 %v479, %v498
        %v518 = vsub.f32 %v480, %v499
        %v519 = vsub.f32 %v280, %v367
        %v520 = vsub.f32 %v281, %v368
        %v521 = vsub.f32 %v282, %v369
        %v522 = vsub.f32 %v283, %v370
        %v523 = vsub.f32 %v284, %v371
        %v524 = vsub.f32 %v285, %v372
        %v525 = vsub.f32 %v286, %v373
        %v526 = vsub.f32 %v287, %v374
        %v527 = vsub.f32 %v288, %v375
        %v528 = vsub.f32 %v289, %v376
        %v529 = vsub.f32 %v290, %v377
        %v530 = vsub.f32 %v291, %v378
        %v531 = vsub.f32 %v292, %v379
        %v532 = vsub.f32 %v293, %v380
        %v533 = vsub.f32 %v294, %v381
        %v534 = vsub.f32 %v295, %v382
        %v535 = vsub.f32 %v296, %v383
        %v536 = vsub.f32 %v297, %v384
        %v537 = vsub.f32 %v298, %v385
        %v538 = vadd.f32 %v500, 1e-05
        %v539 = vadd.f32 %v501, 1e-05
        %v540 = vadd.f32 %v502, 1e-05
        %v541 = vadd.f32 %v503, 1e-05
        %v542 = vadd.f32 %v504, 1e-05
        %v543 = vadd.f32 %v505, 1e-05
        %v544 = vadd.f32 %v506, 1e-05
        %v545 = vadd.f32 %v507, 1e-05
        %v546 = vadd.f32 %v508, 1e-05
        %v547 = vadd.f32 %v509, 1e-05
        %v548 = vadd.f32 %v510, 1e-05
        %v549 = vadd.f32 %v511, 1e-05
        %v550 = vadd.f32 %v512, 1e-05
        %v551 = vadd.f32 %v513, 1e-05
        %v552 = vadd.f32 %v514, 1e-05
        %v553 = vadd.f32 %v515, 1e-05
        %v554 = vadd.f32 %v516, 1e-05
        %v555 = vadd.f32 %v517, 1e-05
        %v556 = vadd.f32 %v518, 1e-05
        %v557 = vrsqrt.pop %v538
        %v558 = vmul.f32 %v557, %v538
        %v559 = vmul.f32 %v558, %v557
        %v560 = vmul.f32 0.5, %v559
        %v561 = vsub.f32 1.5, %v560
        %v562 = vmul.f32 %v557, %v561
        %vm563 = vweird.f32 %v538
        %vm564 = vweird.f32 %v557
        %vm565 = vmor %vm563, %vm564
        %v566 = vsel %vm565, %v557, %v562
        %v567 = vrsqrt.pop %v539
        %v568 = vmul.f32 %v567, %v539
        %v569 = vmul.f32 %v568, %v567
        %v570 = vmul.f32 0.5, %v569
        %v571 = vsub.f32 1.5, %v570
        %v572 = vmul.f32 %v567, %v571
        %vm573 = vweird.f32 %v539
        %vm574 = vweird.f32 %v567
        %vm575 = vmor %vm573, %vm574
        %v576 = vsel %vm575, %v567, %v572
        %v577 = vrsqrt.pop %v540
        %v578 = vmul.f32 %v577, %v540
        %v579 = vmul.f32 %v578, %v577
        %v580 = vmul.f32 0.5, %v579
        %v581 = vsub.f32 1.5, %v580
        %v582 = vmul.f32 %v577, %v581
        %vm583 = vweird.f32 %v540
        %vm584 = vweird.f32 %v577
        %vm585 = vmor %vm583, %vm584
        %v586 = vsel %vm585, %v577, %v582
        %v587 = vrsqrt.pop %v541
        %v588 = vmul.f32 %v587, %v541
        %v589 = vmul.f32 %v588, %v587
        %v590 = vmul.f32 0.5, %v589
        %v591 = vsub.f32 1.5, %v590
        %v592 = vmul.f32 %v587, %v591
        %vm593 = vweird.f32 %v541
        %vm594 = vweird.f32 %v587
        %vm595 = vmor %vm593, %vm594
        %v596 = vsel %vm595, %v587, %v592
        %v597 = vrsqrt.pop %v542
        %v598 = vmul.f32 %v597, %v542
        %v599 = vmul.f32 %v598, %v597
        %v600 = vmul.f32 0.5, %v599
        %v601 = vsub.f32 1.5, %v600
        %v602 = vmul.f32 %v597, %v601
        %vm603 = vweird.f32 %v542
        %vm604 = vweird.f32 %v597
        %vm605 = vmor %vm603, %vm604
        %v606 = vsel %vm605, %v597, %v602
        %v607 = vrsqrt.pop %v543
        %v608 = vmul.f32 %v607, %v543
        %v609 = vmul.f32 %v608, %v607
        %v610 = vmul.f32 0.5, %v609
        %v611 = vsub.f32 1.5, %v610
        %v612 = vmul.f32 %v607, %v611
        %vm613 = vweird.f32 %v543
        %vm614 = vweird.f32 %v607
        %vm615 = vmor %vm613, %vm614
        %v616 = vsel %vm615, %v607, %v612
        %v617 = vrsqrt.pop %v544
        %v618 = vmul.f32 %v617, %v544
        %v619 = vmul.f32 %v618, %v617
        %v620 = vmul.f32 0.5, %v619
        %v621 = vsub.f32 1.5, %v620
        %v622 = vmul.f32 %v617, %v621
        %vm623 = vweird.f32 %v544
        %vm624 = vweird.f32 %v617
        %vm625 = vmor %vm623, %vm624
        %v626 = vsel %vm625, %v617, %v622
        %v627 = vrsqrt.pop %v545
        %v628 = vmul.f32 %v627, %v545
        %v629 = vmul.f32 %v628, %v627
        %v630 = vmul.f32 0.5, %v629
        %v631 = vsub.f32 1.5, %v630
        %v632 = vmul.f32 %v627, %v631
        %vm633 = vweird.f32 %v545
        %vm634 = vweird.f32 %v627
        %vm635 = vmor %vm633, %vm634
        %v636 = vsel %vm635, %v627, %v632
        %v637 = vrsqrt.pop %v546
        %v638 = vmul.f32 %v637, %v546
        %v639 = vmul.f32 %v638, %v637
        %v640 = vmul.f32 0.5, %v639
        %v641 = vsub.f32 1.5, %v640
        %v642 = vmul.f32 %v637, %v641
        %vm643 = vweird.f32 %v546
        %vm644 = vweird.f32 %v637
        %vm645 = vmor %vm643, %vm644
        %v646 = vsel %vm645, %v637, %v642
        %v647 = vrsqrt.pop %v547
        %v648 = vmul.f32 %v647, %v547
        %v649 = vmul.f32 %v648, %v647
        %v650 = vmul.f32 0.5, %v649
        %v651 = vsub.f32 1.5, %v650
        %v652 = vmul.f32 %v647, %v651
        %vm653 = vweird.f32 %v547
        %vm654 = vweird.f32 %v647
        %vm655 = vmor %vm653, %vm654
        %v656 = vsel %vm655, %v647, %v652
        %v657 = vrsqrt.pop %v548
        %v658 = vmul.f32 %v657, %v548
        %v659 = vmul.f32 %v658, %v657
        %v660 = vmul.f32 0.5, %v659
        %v661 = vsub.f32 1.5, %v660
        %v662 = vmul.f32 %v657, %v661
        %vm663 = vweird.f32 %v548
        %vm664 = vweird.f32 %v657
        %vm665 = vmor %vm663, %vm664
        %v666 = vsel %vm665, %v657, %v662
        %v667 = vrsqrt.pop %v549
        %v668 = vmul.f32 %v667, %v549
        %v669 = vmul.f32 %v668, %v667
        %v670 = vmul.f32 0.5, %v669
        %v671 = vsub.f32 1.5, %v670
        %v672 = vmul.f32 %v667, %v671
        %vm673 = vweird.f32 %v549
        %vm674 = vweird.f32 %v667
        %vm675 = vmor %vm673, %vm674
        %v676 = vsel %vm675, %v667, %v672
        %v677 = vrsqrt.pop %v550
        %v678 = vmul.f32 %v677, %v550
        %v679 = vmul.f32 %v678, %v677
        %v680 = vmul.f32 0.5, %v679
        %v681 = vsub.f32 1.5, %v680
        %v682 = vmul.f32 %v677, %v681
        %vm683 = vweird.f32 %v550
        %vm684 = vweird.f32 %v677
        %vm685 = vmor %vm683, %vm684
        %v686 = vsel %vm685, %v677, %v682
        %v687 = vrsqrt.pop %v551
        %v688 = vmul.f32 %v687, %v551
        %v689 = vmul.f32 %v688, %v687
        %v690 = vmul.f32 0.5, %v689
        %v691 = vsub.f32 1.5, %v690
        %v692 = vmul.f32 %v687, %v691
        %vm693 = vweird.f32 %v551
        %vm694 = vweird.f32 %v687
        %vm695 = vmor %vm693, %vm694
        %v696 = vsel %vm695, %v687, %v692
        %v697 = vrsqrt.pop %v552
        %v698 = vmul.f32 %v697, %v552
        %v699 = vmul.f32 %v698, %v697
        %v700 = vmul.f32 0.5, %v699
        %v701 = vsub.f32 1.5, %v700
        %v702 = vmul.f32 %v697, %v701
        %vm703 = vweird.f32 %v552
        %vm704 = vweird.f32 %v697
        %vm705 = vmor %vm703, %vm704
        %v706 = vsel %vm705, %v697, %v702
        %v707 = vrsqrt.pop %v553
        %v708 = vmul.f32 %v707, %v553
        %v709 = vmul.f32 %v708, %v707
        %v710 = vmul.f32 0.5, %v709
        %v711 = vsub.f32 1.5, %v710
        %v712 = vmul.f32 %v707, %v711
        %vm713 = vweird.f32 %v553
        %vm714 = vweird.f32 %v707
        %vm715 = vmor %vm713, %vm714
        %v716 = vsel %vm715, %v707, %v712
        %v717 = vrsqrt.pop %v554
        %v718 = vmul.f32 %v717, %v554
        %v719 = vmul.f32 %v718, %v717
        %v720 = vmul.f32 0.5, %v719
        %v721 = vsub.f32 1.5, %v720
        %v722 = vmul.f32 %v717, %v721
        %vm723 = vweird.f32 %v554
        %vm724 = vweird.f32 %v717
        %vm725 = vmor %vm723, %vm724
        %v726 = vsel %vm725, %v717, %v722
        %v727 = vrsqrt.pop %v555
        %v728 = vmul.f32 %v727, %v555
        %v729 = vmul.f32 %v728, %v727
        %v730 = vmul.f32 0.5, %v729
        %v731 = vsub.f32 1.5, %v730
        %v732 = vmul.f32 %v727, %v731
        %vm733 = vweird.f32 %v555
        %vm734 = vweird.f32 %v727
        %vm735 = vmor %vm733, %vm734
        %v736 = vsel %vm735, %v727, %v732
        %v737 = vrsqrt.pop %v556
        %v738 = vmul.f32 %v737, %v556
        %v739 = vmul.f32 %v738, %v737
        %v740 = vmul.f32 0.5, %v739
        %v741 = vsub.f32 1.5, %v740
        %v742 = vmul.f32 %v737, %v741
        %vm743 = vweird.f32 %v556
        %vm744 = vweird.f32 %v737
        %vm745 = vmor %vm743, %vm744
        %v746 = vsel %vm745, %v737, %v742
        %v747 = vmul.f32 %v519, %v566
        %v748 = vmul.f32 %v520, %v576
        %v749 = vmul.f32 %v521, %v586
        %v750 = vmul.f32 %v522, %v596
        %v751 = vmul.f32 %v523, %v606
        %v752 = vmul.f32 %v524, %v616
        %v753 = vmul.f32 %v525, %v626
        %v754 = vmul.f32 %v526, %v636
        %v755 = vmul.f32 %v527, %v646
        %v756 = vmul.f32 %v528, %v656
        %v757 = vmul.f32 %v529, %v666
        %v758 = vmul.f32 %v530, %v676
        %v759 = vmul.f32 %v531, %v686
        %v760 = vmul.f32 %v532, %v696
        %v761 = vmul.f32 %v533, %v706
        %v762 = vmul.f32 %v534, %v716
        %v763 = vmul.f32 %v535, %v726
        %v764 = vmul.f32 %v536, %v736
        %v765 = vmul.f32 %v537, %v746
        %v767 = vperm.slane %v301, 0
        %v770 = vsel %vm302, %v747, 0
        %v773 = vsel %vm302, %v748, 0
        %v776 = vsel %vm302, %v749, 0
        %v779 = vsel %vm302, %v750, 0
        %v782 = vsel %vm302, %v751, 0
        %v785 = vsel %vm302, %v752, 0
        %v788 = vsel %vm302, %v753, 0
        %v791 = vsel %vm302, %v754, 0
        %v794 = vsel %vm302, %v755, 0
        %v797 = vsel %vm302, %v756, 0
        %v800 = vsel %vm302, %v757, 0
        %v803 = vsel %vm302, %v758, 0
        %v806 = vsel %vm302, %v759, 0
        %v809 = vsel %vm302, %v760, 0
        %v812 = vsel %vm302, %v761, 0
        %v815 = vsel %vm302, %v762, 0
        %v818 = vsel %vm302, %v763, 0
        %v821 = vsel %vm302, %v764, 0
        %v824 = vsel %vm302, %v765, 0
        %826 = vmatpush.msra.mxu0 0.0
        %827 = vmatpush.msra.mxu0 0.0
        %828 = vmatpush.msra.mxu0 0.0
        %829 = vmatpush.msra.mxu0 0.0
        %830 = vmatpush.msra.mxu0 0.0
        %831 = vmatpush.msra.mxu0 0.0
        %832 = vmatpush.msra.mxu0 0.0
        %833 = vmatpush.msra.mxu0 0.0
        %834 = vmatpush.msra.mxu0 0.0
        %835 = vmatpush.msra.mxu0 0.0
        %836 = vmatpush.msra.mxu0 0.0
        %837 = vmatpush.msra.mxu0 0.0
        %838 = vmatpush.msra.mxu0 0.0
        %839 = vmatpush.msra.mxu0 0.0
        %840 = vmatpush.msra.mxu0 %v300
        %841 = vmatpush.msra.mxu0 %v299
        %842 = vmatmul.f32.gmra.mxu0 %v770
        %v843 = vpop.f32.mrf.mxu0
        %v844 = vadd.f32 %v767, %v843
        %845 = vmatmul.f32.gmra.mxu0 %v773
        %v846 = vpop.f32.mrf.mxu0
        %v847 = vadd.f32 %v767, %v846
        %848 = vmatmul.f32.gmra.mxu0 %v776
        %v849 = vpop.f32.mrf.mxu0
        %v850 = vadd.f32 %v767, %v849
        %851 = vmatmul.f32.gmra.mxu0 %v779
        %v852 = vpop.f32.mrf.mxu0
        %v853 = vadd.f32 %v767, %v852
        %854 = vmatmul.f32.gmra.mxu0 %v782
        %v855 = vpop.f32.mrf.mxu0
        %v856 = vadd.f32 %v767, %v855
        %857 = vmatmul.f32.gmra.mxu0 %v785
        %v858 = vpop.f32.mrf.mxu0
        %v859 = vadd.f32 %v767, %v858
        %860 = vmatmul.f32.gmra.mxu0 %v788
        %v861 = vpop.f32.mrf.mxu0
        %v862 = vadd.f32 %v767, %v861
        %863 = vmatmul.f32.gmra.mxu0 %v791
        %v864 = vpop.f32.mrf.mxu0
        %v865 = vadd.f32 %v767, %v864
        %866 = vmatmul.f32.gmra.mxu0 %v794
        %v867 = vpop.f32.mrf.mxu0
        %v868 = vadd.f32 %v767, %v867
        %869 = vmatmul.f32.gmra.mxu0 %v797
        %v870 = vpop.f32.mrf.mxu0
        %v871 = vadd.f32 %v767, %v870
        %872 = vmatmul.f32.gmra.mxu0 %v800
        %v873 = vpop.f32.mrf.mxu0
        %v874 = vadd.f32 %v767, %v873
        %875 = vmatmul.f32.gmra.mxu0 %v803
        %v876 = vpop.f32.mrf.mxu0
        %v877 = vadd.f32 %v767, %v876
        %878 = vmatmul.f32.gmra.mxu0 %v806
        %v879 = vpop.f32.mrf.mxu0
        %v880 = vadd.f32 %v767, %v879
        %881 = vmatmul.f32.gmra.mxu0 %v809
        %v882 = vpop.f32.mrf.mxu0
        %v883 = vadd.f32 %v767, %v882
        %884 = vmatmul.f32.gmra.mxu0 %v812
        %v885 = vpop.f32.mrf.mxu0
        %v886 = vadd.f32 %v767, %v885
        %887 = vmatmul.f32.gmra.mxu0 %v815
        %v888 = vpop.f32.mrf.mxu0
        %v889 = vadd.f32 %v767, %v888
        %890 = vmatmul.f32.gmra.mxu0 %v818
        %v891 = vpop.f32.mrf.mxu0
        %v892 = vadd.f32 %v767, %v891
        %893 = vmatmul.f32.gmra.mxu0 %v821
        %v894 = vpop.f32.mrf.mxu0
        %v895 = vadd.f32 %v767, %v894
        %896 = vmatmul.f32.gmra.mxu0 %v824
        %v897 = vpop.f32.mrf.mxu0
        %v898 = vadd.f32 %v767, %v897
        %899 = vdwg.mxu0
        %v900 = vmax.f32 %v844, 0.0
        %v901 = vmax.f32 %v847, 0.0
        %v902 = vmax.f32 %v850, 0.0
        %v903 = vmax.f32 %v853, 0.0
        %v904 = vmax.f32 %v856, 0.0
        %v905 = vmax.f32 %v859, 0.0
        %v906 = vmax.f32 %v862, 0.0
        %v907 = vmax.f32 %v865, 0.0
        %v908 = vmax.f32 %v868, 0.0
        %v909 = vmax.f32 %v871, 0.0
        %v910 = vmax.f32 %v874, 0.0
        %v911 = vmax.f32 %v877, 0.0
        %v912 = vmax.f32 %v880, 0.0
        %v913 = vmax.f32 %v883, 0.0
        %v914 = vmax.f32 %v886, 0.0
        %v915 = vmax.f32 %v889, 0.0
        %v916 = vmax.f32 %v892, 0.0
        %v917 = vmax.f32 %v895, 0.0
        %v918 = vmax.f32 %v898, 0.0
        %v919 = vld [vmem:[%s3] sm:$0xff]
        %v920 = vld [vmem:[%s3 + $0x8] sm:$0xff]
        %v921 = vld [vmem:[%s3 + $0x10] sm:$0xff]
        %v922 = vld [vmem:[%s3 + $0x18] sm:$0xff]
        %v923 = vld [vmem:[%s4] sm:$0x1]
        %vm924 = vcmask 261120
        %v925 = vsel %vm924, %v900, 0.0
        %926 = vadd.xlane.f32.xlu0 %v925
        %v927 = vpop.xlane.xlu0 %926
        %v928 = vsel %vm924, %v901, 0.0
        %929 = vadd.xlane.f32.xlu0 %v928
        %v930 = vpop.xlane.xlu0 %929
        %v931 = vsel %vm924, %v902, 0.0
        %932 = vadd.xlane.f32.xlu0 %v931
        %v933 = vpop.xlane.xlu0 %932
        %v934 = vsel %vm924, %v903, 0.0
        %935 = vadd.xlane.f32.xlu0 %v934
        %v936 = vpop.xlane.xlu0 %935
        %v937 = vsel %vm924, %v904, 0.0
        %938 = vadd.xlane.f32.xlu0 %v937
        %v939 = vpop.xlane.xlu0 %938
        %v940 = vsel %vm924, %v905, 0.0
        %941 = vadd.xlane.f32.xlu0 %v940
        %v942 = vpop.xlane.xlu0 %941
        %v943 = vsel %vm924, %v906, 0.0
        %944 = vadd.xlane.f32.xlu0 %v943
        %v945 = vpop.xlane.xlu0 %944
        %v946 = vsel %vm924, %v907, 0.0
        %947 = vadd.xlane.f32.xlu0 %v946
        %v948 = vpop.xlane.xlu0 %947
        %v949 = vsel %vm924, %v908, 0.0
        %950 = vadd.xlane.f32.xlu0 %v949
        %v951 = vpop.xlane.xlu0 %950
        %v952 = vsel %vm924, %v909, 0.0
        %953 = vadd.xlane.f32.xlu0 %v952
        %v954 = vpop.xlane.xlu0 %953
        %v955 = vsel %vm924, %v910, 0.0
        %956 = vadd.xlane.f32.xlu0 %v955
        %v957 = vpop.xlane.xlu0 %956
        %v958 = vsel %vm924, %v911, 0.0
        %959 = vadd.xlane.f32.xlu0 %v958
        %v960 = vpop.xlane.xlu0 %959
        %v961 = vsel %vm924, %v912, 0.0
        %962 = vadd.xlane.f32.xlu0 %v961
        %v963 = vpop.xlane.xlu0 %962
        %v964 = vsel %vm924, %v913, 0.0
        %965 = vadd.xlane.f32.xlu0 %v964
        %v966 = vpop.xlane.xlu0 %965
        %v967 = vsel %vm924, %v914, 0.0
        %968 = vadd.xlane.f32.xlu0 %v967
        %v969 = vpop.xlane.xlu0 %968
        %v970 = vsel %vm924, %v915, 0.0
        %971 = vadd.xlane.f32.xlu0 %v970
        %v972 = vpop.xlane.xlu0 %971
        %v973 = vsel %vm924, %v916, 0.0
        %974 = vadd.xlane.f32.xlu0 %v973
        %v975 = vpop.xlane.xlu0 %974
        %v976 = vsel %vm924, %v917, 0.0
        %977 = vadd.xlane.f32.xlu0 %v976
        %v978 = vpop.xlane.xlu0 %977
        %v979 = vsel %vm924, %v918, 0.0
        %980 = vadd.xlane.f32.xlu0 %v979
        %v981 = vpop.xlane.xlu0 %980
        %v982 = vrcp.pop 32.0
        %v983 = vmul.f32 32.0, %v982
        %v984 = vsub.f32 1.0, %v983
        %v985 = vmul.f32 %v982, %v984
        %v986 = vadd.f32 %v982, %v985
        %vm987 = vweird.f32 %v982
        %v988 = vsel %vm987, %v982, %v986
        %v989 = vmul.f32 %v927, %v988
        %v990 = vmul.f32 %v930, %v988
        %v991 = vmul.f32 %v933, %v988
        %v992 = vmul.f32 %v936, %v988
        %v993 = vmul.f32 %v939, %v988
        %v994 = vmul.f32 %v942, %v988
        %v995 = vmul.f32 %v945, %v988
        %v996 = vmul.f32 %v948, %v988
        %v997 = vmul.f32 %v951, %v988
        %v998 = vmul.f32 %v954, %v988
        %v999 = vmul.f32 %v957, %v988
        %v1000 = vmul.f32 %v960, %v988
        %v1001 = vmul.f32 %v963, %v988
        %v1002 = vmul.f32 %v966, %v988
        %v1003 = vmul.f32 %v969, %v988
        %v1004 = vmul.f32 %v972, %v988
        %v1005 = vmul.f32 %v975, %v988
        %v1006 = vmul.f32 %v978, %v988
        %v1007 = vmul.f32 %v981, %v988
        %v1008 = vmul.f32 %v900, %v900
        %v1009 = vmul.f32 %v901, %v901
        %v1010 = vmul.f32 %v902, %v902
        %v1011 = vmul.f32 %v903, %v903
        %v1012 = vmul.f32 %v904, %v904
        %v1013 = vmul.f32 %v905, %v905
        %v1014 = vmul.f32 %v906, %v906
        %v1015 = vmul.f32 %v907, %v907
        %v1016 = vmul.f32 %v908, %v908
        %v1017 = vmul.f32 %v909, %v909
        %v1018 = vmul.f32 %v910, %v910
        %v1019 = vmul.f32 %v911, %v911
        %v1020 = vmul.f32 %v912, %v912
        %v1021 = vmul.f32 %v913, %v913
        %v1022 = vmul.f32 %v914, %v914
        %v1023 = vmul.f32 %v915, %v915
        %v1024 = vmul.f32 %v916, %v916
        %v1025 = vmul.f32 %v917, %v917
        %v1026 = vmul.f32 %v918, %v918
        %v1027 = vsel %vm924, %v1008, 0.0
        %1028 = vadd.xlane.f32.xlu0 %v1027
        %v1029 = vpop.xlane.xlu0 %1028
        %v1030 = vsel %vm924, %v1009, 0.0
        %1031 = vadd.xlane.f32.xlu0 %v1030
        %v1032 = vpop.xlane.xlu0 %1031
        %v1033 = vsel %vm924, %v1010, 0.0
        %1034 = vadd.xlane.f32.xlu0 %v1033
        %v1035 = vpop.xlane.xlu0 %1034
        %v1036 = vsel %vm924, %v1011, 0.0
        %1037 = vadd.xlane.f32.xlu0 %v1036
        %v1038 = vpop.xlane.xlu0 %1037
        %v1039 = vsel %vm924, %v1012, 0.0
        %1040 = vadd.xlane.f32.xlu0 %v1039
        %v1041 = vpop.xlane.xlu0 %1040
        %v1042 = vsel %vm924, %v1013, 0.0
        %1043 = vadd.xlane.f32.xlu0 %v1042
        %v1044 = vpop.xlane.xlu0 %1043
        %v1045 = vsel %vm924, %v1014, 0.0
        %1046 = vadd.xlane.f32.xlu0 %v1045
        %v1047 = vpop.xlane.xlu0 %1046
        %v1048 = vsel %vm924, %v1015, 0.0
        %1049 = vadd.xlane.f32.xlu0 %v1048
        %v1050 = vpop.xlane.xlu0 %1049
        %v1051 = vsel %vm924, %v1016, 0.0
        %1052 = vadd.xlane.f32.xlu0 %v1051
        %v1053 = vpop.xlane.xlu0 %1052
        %v1054 = vsel %vm924, %v1017, 0.0
        %1055 = vadd.xlane.f32.xlu0 %v1054
        %v1056 = vpop.xlane.xlu0 %1055
        %v1057 = vsel %vm924, %v1018, 0.0
        %1058 = vadd.xlane.f32.xlu0 %v1057
        %v1059 = vpop.xlane.xlu0 %1058
        %v1060 = vsel %vm924, %v1019, 0.0
        %1061 = vadd.xlane.f32.xlu0 %v1060
        %v1062 = vpop.xlane.xlu0 %1061
        %v1063 = vsel %vm924, %v1020, 0.0
        %1064 = vadd.xlane.f32.xlu0 %v1063
        %v1065 = vpop.xlane.xlu0 %1064
        %v1066 = vsel %vm924, %v1021, 0.0
        %1067 = vadd.xlane.f32.xlu0 %v1066
        %v1068 = vpop.xlane.xlu0 %1067
        %v1069 = vsel %vm924, %v1022, 0.0
        %1070 = vadd.xlane.f32.xlu0 %v1069
        %v1071 = vpop.xlane.xlu0 %1070
        %v1072 = vsel %vm924, %v1023, 0.0
        %1073 = vadd.xlane.f32.xlu0 %v1072
        %v1074 = vpop.xlane.xlu0 %1073
        %v1075 = vsel %vm924, %v1024, 0.0
        %1076 = vadd.xlane.f32.xlu0 %v1075
        %v1077 = vpop.xlane.xlu0 %1076
        %v1078 = vsel %vm924, %v1025, 0.0
        %1079 = vadd.xlane.f32.xlu0 %v1078
        %v1080 = vpop.xlane.xlu0 %1079
        %v1081 = vsel %vm924, %v1026, 0.0
        %1082 = vadd.xlane.f32.xlu0 %v1081
        %v1083 = vpop.xlane.xlu0 %1082
        %v1084 = vmul.f32 %v1029, %v988
        %v1085 = vmul.f32 %v1032, %v988
        %v1086 = vmul.f32 %v1035, %v988
        %v1087 = vmul.f32 %v1038, %v988
        %v1088 = vmul.f32 %v1041, %v988
        %v1089 = vmul.f32 %v1044, %v988
        %v1090 = vmul.f32 %v1047, %v988
        %v1091 = vmul.f32 %v1050, %v988
        %v1092 = vmul.f32 %v1053, %v988
        %v1093 = vmul.f32 %v1056, %v988
        %v1094 = vmul.f32 %v1059, %v988
        %v1095 = vmul.f32 %v1062, %v988
        %v1096 = vmul.f32 %v1065, %v988
        %v1097 = vmul.f32 %v1068, %v988
        %v1098 = vmul.f32 %v1071, %v988
        %v1099 = vmul.f32 %v1074, %v988
        %v1100 = vmul.f32 %v1077, %v988
        %v1101 = vmul.f32 %v1080, %v988
        %v1102 = vmul.f32 %v1083, %v988
        %v1103 = vmul.f32 %v989, %v989
        %v1104 = vmul.f32 %v990, %v990
        %v1105 = vmul.f32 %v991, %v991
        %v1106 = vmul.f32 %v992, %v992
        %v1107 = vmul.f32 %v993, %v993
        %v1108 = vmul.f32 %v994, %v994
        %v1109 = vmul.f32 %v995, %v995
        %v1110 = vmul.f32 %v996, %v996
        %v1111 = vmul.f32 %v997, %v997
        %v1112 = vmul.f32 %v998, %v998
        %v1113 = vmul.f32 %v999, %v999
        %v1114 = vmul.f32 %v1000, %v1000
        %v1115 = vmul.f32 %v1001, %v1001
        %v1116 = vmul.f32 %v1002, %v1002
        %v1117 = vmul.f32 %v1003, %v1003
        %v1118 = vmul.f32 %v1004, %v1004
        %v1119 = vmul.f32 %v1005, %v1005
        %v1120 = vmul.f32 %v1006, %v1006
        %v1121 = vmul.f32 %v1007, %v1007
        %v1122 = vsub.f32 %v1084, %v1103
        %v1123 = vsub.f32 %v1085, %v1104
        %v1124 = vsub.f32 %v1086, %v1105
        %v1125 = vsub.f32 %v1087, %v1106
        %v1126 = vsub.f32 %v1088, %v1107
        %v1127 = vsub.f32 %v1089, %v1108
        %v1128 = vsub.f32 %v1090, %v1109
        %v1129 = vsub.f32 %v1091, %v1110
        %v1130 = vsub.f32 %v1092, %v1111
        %v1131 = vsub.f32 %v1093, %v1112
        %v1132 = vsub.f32 %v1094, %v1113
        %v1133 = vsub.f32 %v1095, %v1114
        %v1134 = vsub.f32 %v1096, %v1115
        %v1135 = vsub.f32 %v1097, %v1116
        %v1136 = vsub.f32 %v1098, %v1117
        %v1137 = vsub.f32 %v1099, %v1118
        %v1138 = vsub.f32 %v1100, %v1119
        %v1139 = vsub.f32 %v1101, %v1120
        %v1140 = vsub.f32 %v1102, %v1121
        %v1141 = vsub.f32 %v900, %v989
        %v1142 = vsub.f32 %v901, %v990
        %v1143 = vsub.f32 %v902, %v991
        %v1144 = vsub.f32 %v903, %v992
        %v1145 = vsub.f32 %v904, %v993
        %v1146 = vsub.f32 %v905, %v994
        %v1147 = vsub.f32 %v906, %v995
        %v1148 = vsub.f32 %v907, %v996
        %v1149 = vsub.f32 %v908, %v997
        %v1150 = vsub.f32 %v909, %v998
        %v1151 = vsub.f32 %v910, %v999
        %v1152 = vsub.f32 %v911, %v1000
        %v1153 = vsub.f32 %v912, %v1001
        %v1154 = vsub.f32 %v913, %v1002
        %v1155 = vsub.f32 %v914, %v1003
        %v1156 = vsub.f32 %v915, %v1004
        %v1157 = vsub.f32 %v916, %v1005
        %v1158 = vsub.f32 %v917, %v1006
        %v1159 = vsub.f32 %v918, %v1007
        %v1160 = vadd.f32 %v1122, 1e-05
        %v1161 = vadd.f32 %v1123, 1e-05
        %v1162 = vadd.f32 %v1124, 1e-05
        %v1163 = vadd.f32 %v1125, 1e-05
        %v1164 = vadd.f32 %v1126, 1e-05
        %v1165 = vadd.f32 %v1127, 1e-05
        %v1166 = vadd.f32 %v1128, 1e-05
        %v1167 = vadd.f32 %v1129, 1e-05
        %v1168 = vadd.f32 %v1130, 1e-05
        %v1169 = vadd.f32 %v1131, 1e-05
        %v1170 = vadd.f32 %v1132, 1e-05
        %v1171 = vadd.f32 %v1133, 1e-05
        %v1172 = vadd.f32 %v1134, 1e-05
        %v1173 = vadd.f32 %v1135, 1e-05
        %v1174 = vadd.f32 %v1136, 1e-05
        %v1175 = vadd.f32 %v1137, 1e-05
        %v1176 = vadd.f32 %v1138, 1e-05
        %v1177 = vadd.f32 %v1139, 1e-05
        %v1178 = vadd.f32 %v1140, 1e-05
        %v1179 = vrsqrt.pop %v1160
        %v1180 = vmul.f32 %v1179, %v1160
        %v1181 = vmul.f32 %v1180, %v1179
        %v1182 = vmul.f32 0.5, %v1181
        %v1183 = vsub.f32 1.5, %v1182
        %v1184 = vmul.f32 %v1179, %v1183
        %vm1185 = vweird.f32 %v1160
        %vm1186 = vweird.f32 %v1179
        %vm1187 = vmor %vm1185, %vm1186
        %v1188 = vsel %vm1187, %v1179, %v1184
        %v1189 = vrsqrt.pop %v1161
        %v1190 = vmul.f32 %v1189, %v1161
        %v1191 = vmul.f32 %v1190, %v1189
        %v1192 = vmul.f32 0.5, %v1191
        %v1193 = vsub.f32 1.5, %v1192
        %v1194 = vmul.f32 %v1189, %v1193
        %vm1195 = vweird.f32 %v1161
        %vm1196 = vweird.f32 %v1189
        %vm1197 = vmor %vm1195, %vm1196
        %v1198 = vsel %vm1197, %v1189, %v1194
        %v1199 = vrsqrt.pop %v1162
        %v1200 = vmul.f32 %v1199, %v1162
        %v1201 = vmul.f32 %v1200, %v1199
        %v1202 = vmul.f32 0.5, %v1201
        %v1203 = vsub.f32 1.5, %v1202
        %v1204 = vmul.f32 %v1199, %v1203
        %vm1205 = vweird.f32 %v1162
        %vm1206 = vweird.f32 %v1199
        %vm1207 = vmor %vm1205, %vm1206
        %v1208 = vsel %vm1207, %v1199, %v1204
        %v1209 = vrsqrt.pop %v1163
        %v1210 = vmul.f32 %v1209, %v1163
        %v1211 = vmul.f32 %v1210, %v1209
        %v1212 = vmul.f32 0.5, %v1211
        %v1213 = vsub.f32 1.5, %v1212
        %v1214 = vmul.f32 %v1209, %v1213
        %vm1215 = vweird.f32 %v1163
        %vm1216 = vweird.f32 %v1209
        %vm1217 = vmor %vm1215, %vm1216
        %v1218 = vsel %vm1217, %v1209, %v1214
        %v1219 = vrsqrt.pop %v1164
        %v1220 = vmul.f32 %v1219, %v1164
        %v1221 = vmul.f32 %v1220, %v1219
        %v1222 = vmul.f32 0.5, %v1221
        %v1223 = vsub.f32 1.5, %v1222
        %v1224 = vmul.f32 %v1219, %v1223
        %vm1225 = vweird.f32 %v1164
        %vm1226 = vweird.f32 %v1219
        %vm1227 = vmor %vm1225, %vm1226
        %v1228 = vsel %vm1227, %v1219, %v1224
        %v1229 = vrsqrt.pop %v1165
        %v1230 = vmul.f32 %v1229, %v1165
        %v1231 = vmul.f32 %v1230, %v1229
        %v1232 = vmul.f32 0.5, %v1231
        %v1233 = vsub.f32 1.5, %v1232
        %v1234 = vmul.f32 %v1229, %v1233
        %vm1235 = vweird.f32 %v1165
        %vm1236 = vweird.f32 %v1229
        %vm1237 = vmor %vm1235, %vm1236
        %v1238 = vsel %vm1237, %v1229, %v1234
        %v1239 = vrsqrt.pop %v1166
        %v1240 = vmul.f32 %v1239, %v1166
        %v1241 = vmul.f32 %v1240, %v1239
        %v1242 = vmul.f32 0.5, %v1241
        %v1243 = vsub.f32 1.5, %v1242
        %v1244 = vmul.f32 %v1239, %v1243
        %vm1245 = vweird.f32 %v1166
        %vm1246 = vweird.f32 %v1239
        %vm1247 = vmor %vm1245, %vm1246
        %v1248 = vsel %vm1247, %v1239, %v1244
        %v1249 = vrsqrt.pop %v1167
        %v1250 = vmul.f32 %v1249, %v1167
        %v1251 = vmul.f32 %v1250, %v1249
        %v1252 = vmul.f32 0.5, %v1251
        %v1253 = vsub.f32 1.5, %v1252
        %v1254 = vmul.f32 %v1249, %v1253
        %vm1255 = vweird.f32 %v1167
        %vm1256 = vweird.f32 %v1249
        %vm1257 = vmor %vm1255, %vm1256
        %v1258 = vsel %vm1257, %v1249, %v1254
        %v1259 = vrsqrt.pop %v1168
        %v1260 = vmul.f32 %v1259, %v1168
        %v1261 = vmul.f32 %v1260, %v1259
        %v1262 = vmul.f32 0.5, %v1261
        %v1263 = vsub.f32 1.5, %v1262
        %v1264 = vmul.f32 %v1259, %v1263
        %vm1265 = vweird.f32 %v1168
        %vm1266 = vweird.f32 %v1259
        %vm1267 = vmor %vm1265, %vm1266
        %v1268 = vsel %vm1267, %v1259, %v1264
        %v1269 = vrsqrt.pop %v1169
        %v1270 = vmul.f32 %v1269, %v1169
        %v1271 = vmul.f32 %v1270, %v1269
        %v1272 = vmul.f32 0.5, %v1271
        %v1273 = vsub.f32 1.5, %v1272
        %v1274 = vmul.f32 %v1269, %v1273
        %vm1275 = vweird.f32 %v1169
        %vm1276 = vweird.f32 %v1269
        %vm1277 = vmor %vm1275, %vm1276
        %v1278 = vsel %vm1277, %v1269, %v1274
        %v1279 = vrsqrt.pop %v1170
        %v1280 = vmul.f32 %v1279, %v1170
        %v1281 = vmul.f32 %v1280, %v1279
        %v1282 = vmul.f32 0.5, %v1281
        %v1283 = vsub.f32 1.5, %v1282
        %v1284 = vmul.f32 %v1279, %v1283
        %vm1285 = vweird.f32 %v1170
        %vm1286 = vweird.f32 %v1279
        %vm1287 = vmor %vm1285, %vm1286
        %v1288 = vsel %vm1287, %v1279, %v1284
        %v1289 = vrsqrt.pop %v1171
        %v1290 = vmul.f32 %v1289, %v1171
        %v1291 = vmul.f32 %v1290, %v1289
        %v1292 = vmul.f32 0.5, %v1291
        %v1293 = vsub.f32 1.5, %v1292
        %v1294 = vmul.f32 %v1289, %v1293
        %vm1295 = vweird.f32 %v1171
        %vm1296 = vweird.f32 %v1289
        %vm1297 = vmor %vm1295, %vm1296
        %v1298 = vsel %vm1297, %v1289, %v1294
        %v1299 = vrsqrt.pop %v1172
        %v1300 = vmul.f32 %v1299, %v1172
        %v1301 = vmul.f32 %v1300, %v1299
        %v1302 = vmul.f32 0.5, %v1301
        %v1303 = vsub.f32 1.5, %v1302
        %v1304 = vmul.f32 %v1299, %v1303
        %vm1305 = vweird.f32 %v1172
        %vm1306 = vweird.f32 %v1299
        %vm1307 = vmor %vm1305, %vm1306
        %v1308 = vsel %vm1307, %v1299, %v1304
        %v1309 = vrsqrt.pop %v1173
        %v1310 = vmul.f32 %v1309, %v1173
        %v1311 = vmul.f32 %v1310, %v1309
        %v1312 = vmul.f32 0.5, %v1311
        %v1313 = vsub.f32 1.5, %v1312
        %v1314 = vmul.f32 %v1309, %v1313
        %vm1315 = vweird.f32 %v1173
        %vm1316 = vweird.f32 %v1309
        %vm1317 = vmor %vm1315, %vm1316
        %v1318 = vsel %vm1317, %v1309, %v1314
        %v1319 = vrsqrt.pop %v1174
        %v1320 = vmul.f32 %v1319, %v1174
        %v1321 = vmul.f32 %v1320, %v1319
        %v1322 = vmul.f32 0.5, %v1321
        %v1323 = vsub.f32 1.5, %v1322
        %v1324 = vmul.f32 %v1319, %v1323
        %vm1325 = vweird.f32 %v1174
        %vm1326 = vweird.f32 %v1319
        %vm1327 = vmor %vm1325, %vm1326
        %v1328 = vsel %vm1327, %v1319, %v1324
        %v1329 = vrsqrt.pop %v1175
        %v1330 = vmul.f32 %v1329, %v1175
        %v1331 = vmul.f32 %v1330, %v1329
        %v1332 = vmul.f32 0.5, %v1331
        %v1333 = vsub.f32 1.5, %v1332
        %v1334 = vmul.f32 %v1329, %v1333
        %vm1335 = vweird.f32 %v1175
        %vm1336 = vweird.f32 %v1329
        %vm1337 = vmor %vm1335, %vm1336
        %v1338 = vsel %vm1337, %v1329, %v1334
        %v1339 = vrsqrt.pop %v1176
        %v1340 = vmul.f32 %v1339, %v1176
        %v1341 = vmul.f32 %v1340, %v1339
        %v1342 = vmul.f32 0.5, %v1341
        %v1343 = vsub.f32 1.5, %v1342
        %v1344 = vmul.f32 %v1339, %v1343
        %vm1345 = vweird.f32 %v1176
        %vm1346 = vweird.f32 %v1339
        %vm1347 = vmor %vm1345, %vm1346
        %v1348 = vsel %vm1347, %v1339, %v1344
        %v1349 = vrsqrt.pop %v1177
        %v1350 = vmul.f32 %v1349, %v1177
        %v1351 = vmul.f32 %v1350, %v1349
        %v1352 = vmul.f32 0.5, %v1351
        %v1353 = vsub.f32 1.5, %v1352
        %v1354 = vmul.f32 %v1349, %v1353
        %vm1355 = vweird.f32 %v1177
        %vm1356 = vweird.f32 %v1349
        %vm1357 = vmor %vm1355, %vm1356
        %v1358 = vsel %vm1357, %v1349, %v1354
        %v1359 = vrsqrt.pop %v1178
        %v1360 = vmul.f32 %v1359, %v1178
        %v1361 = vmul.f32 %v1360, %v1359
        %v1362 = vmul.f32 0.5, %v1361
        %v1363 = vsub.f32 1.5, %v1362
        %v1364 = vmul.f32 %v1359, %v1363
        %vm1365 = vweird.f32 %v1178
        %vm1366 = vweird.f32 %v1359
        %vm1367 = vmor %vm1365, %vm1366
        %v1368 = vsel %vm1367, %v1359, %v1364
        %v1369 = vmul.f32 %v1141, %v1188
        %v1370 = vmul.f32 %v1142, %v1198
        %v1371 = vmul.f32 %v1143, %v1208
        %v1372 = vmul.f32 %v1144, %v1218
        %v1373 = vmul.f32 %v1145, %v1228
        %v1374 = vmul.f32 %v1146, %v1238
        %v1375 = vmul.f32 %v1147, %v1248
        %v1376 = vmul.f32 %v1148, %v1258
        %v1377 = vmul.f32 %v1149, %v1268
        %v1378 = vmul.f32 %v1150, %v1278
        %v1379 = vmul.f32 %v1151, %v1288
        %v1380 = vmul.f32 %v1152, %v1298
        %v1381 = vmul.f32 %v1153, %v1308
        %v1382 = vmul.f32 %v1154, %v1318
        %v1383 = vmul.f32 %v1155, %v1328
        %v1384 = vmul.f32 %v1156, %v1338
        %v1385 = vmul.f32 %v1157, %v1348
        %v1386 = vmul.f32 %v1158, %v1358
        %v1387 = vmul.f32 %v1159, %v1368
        %v1389 = vperm.slane %v923, 0
        %v1392 = vsel %vm924, %v1369, 0
        %v1395 = vsel %vm924, %v1370, 0
        %v1398 = vsel %vm924, %v1371, 0
        %v1401 = vsel %vm924, %v1372, 0
        %v1404 = vsel %vm924, %v1373, 0
        %v1407 = vsel %vm924, %v1374, 0
        %v1410 = vsel %vm924, %v1375, 0
        %v1413 = vsel %vm924, %v1376, 0
        %v1416 = vsel %vm924, %v1377, 0
        %v1419 = vsel %vm924, %v1378, 0
        %v1422 = vsel %vm924, %v1379, 0
        %v1425 = vsel %vm924, %v1380, 0
        %v1428 = vsel %vm924, %v1381, 0
        %v1431 = vsel %vm924, %v1382, 0
        %v1434 = vsel %vm924, %v1383, 0
        %v1437 = vsel %vm924, %v1384, 0
        %v1440 = vsel %vm924, %v1385, 0
        %v1443 = vsel %vm924, %v1386, 0
        %v1446 = vsel %vm924, %v1387, 0
        %1448 = vmatpush.msra.mxu0 0.0
        %1449 = vmatpush.msra.mxu0 0.0
        %1450 = vmatpush.msra.mxu0 0.0
        %1451 = vmatpush.msra.mxu0 0.0
        %1452 = vmatpush.msra.mxu0 0.0
        %1453 = vmatpush.msra.mxu0 0.0
        %1454 = vmatpush.msra.mxu0 0.0
        %1455 = vmatpush.msra.mxu0 0.0
        %1456 = vmatpush.msra.mxu0 0.0
        %1457 = vmatpush.msra.mxu0 0.0
        %1458 = vmatpush.msra.mxu0 0.0
        %1459 = vmatpush.msra.mxu0 0.0
        %1460 = vmatpush.msra.mxu0 %v922
        %1461 = vmatpush.msra.mxu0 %v921
        %1462 = vmatpush.msra.mxu0 %v920
        %1463 = vmatpush.msra.mxu0 %v919
        %1464 = vmatmul.f32.gmra.mxu0 %v1392
        %v1465 = vpop.f32.mrf.mxu0
        %v1466 = vadd.f32 %v1389, %v1465
        %1467 = vmatmul.f32.gmra.mxu0 %v1395
        %v1468 = vpop.f32.mrf.mxu0
        %v1469 = vadd.f32 %v1389, %v1468
        %1470 = vmatmul.f32.gmra.mxu0 %v1398
        %v1471 = vpop.f32.mrf.mxu0
        %v1472 = vadd.f32 %v1389, %v1471
        %1473 = vmatmul.f32.gmra.mxu0 %v1401
        %v1474 = vpop.f32.mrf.mxu0
        %v1475 = vadd.f32 %v1389, %v1474
        %1476 = vmatmul.f32.gmra.mxu0 %v1404
        %v1477 = vpop.f32.mrf.mxu0
        %v1478 = vadd.f32 %v1389, %v1477
        %1479 = vmatmul.f32.gmra.mxu0 %v1407
        %v1480 = vpop.f32.mrf.mxu0
        %v1481 = vadd.f32 %v1389, %v1480
        %1482 = vmatmul.f32.gmra.mxu0 %v1410
        %v1483 = vpop.f32.mrf.mxu0
        %v1484 = vadd.f32 %v1389, %v1483
        %1485 = vmatmul.f32.gmra.mxu0 %v1413
        %v1486 = vpop.f32.mrf.mxu0
        %v1487 = vadd.f32 %v1389, %v1486
        %1488 = vmatmul.f32.gmra.mxu0 %v1416
        %v1489 = vpop.f32.mrf.mxu0
        %v1490 = vadd.f32 %v1389, %v1489
        %1491 = vmatmul.f32.gmra.mxu0 %v1419
        %v1492 = vpop.f32.mrf.mxu0
        %v1493 = vadd.f32 %v1389, %v1492
        %1494 = vmatmul.f32.gmra.mxu0 %v1422
        %v1495 = vpop.f32.mrf.mxu0
        %v1496 = vadd.f32 %v1389, %v1495
        %1497 = vmatmul.f32.gmra.mxu0 %v1425
        %v1498 = vpop.f32.mrf.mxu0
        %v1499 = vadd.f32 %v1389, %v1498
        %1500 = vmatmul.f32.gmra.mxu0 %v1428
        %v1501 = vpop.f32.mrf.mxu0
        %v1502 = vadd.f32 %v1389, %v1501
        %1503 = vmatmul.f32.gmra.mxu0 %v1431
        %v1504 = vpop.f32.mrf.mxu0
        %v1505 = vadd.f32 %v1389, %v1504
        %1506 = vmatmul.f32.gmra.mxu0 %v1434
        %v1507 = vpop.f32.mrf.mxu0
        %v1508 = vadd.f32 %v1389, %v1507
        %1509 = vmatmul.f32.gmra.mxu0 %v1437
        %v1510 = vpop.f32.mrf.mxu0
        %v1511 = vadd.f32 %v1389, %v1510
        %1512 = vmatmul.f32.gmra.mxu0 %v1440
        %v1513 = vpop.f32.mrf.mxu0
        %v1514 = vadd.f32 %v1389, %v1513
        %1515 = vmatmul.f32.gmra.mxu0 %v1443
        %v1516 = vpop.f32.mrf.mxu0
        %v1517 = vadd.f32 %v1389, %v1516
        %1518 = vmatmul.f32.gmra.mxu0 %v1446
        %v1519 = vpop.f32.mrf.mxu0
        %v1520 = vadd.f32 %v1389, %v1519
        %1521 = vdwg.mxu0
        %v1522 = vmax.f32 %v1466, 0.0
        %v1523 = vmax.f32 %v1469, 0.0
        %v1524 = vmax.f32 %v1472, 0.0
        %v1525 = vmax.f32 %v1475, 0.0
        %v1526 = vmax.f32 %v1478, 0.0
        %v1527 = vmax.f32 %v1481, 0.0
        %v1528 = vmax.f32 %v1484, 0.0
        %v1529 = vmax.f32 %v1487, 0.0
        %v1530 = vmax.f32 %v1490, 0.0
        %v1531 = vmax.f32 %v1493, 0.0
        %v1532 = vmax.f32 %v1496, 0.0
        %v1533 = vmax.f32 %v1499, 0.0
        %v1534 = vmax.f32 %v1502, 0.0
        %v1535 = vmax.f32 %v1505, 0.0
        %v1536 = vmax.f32 %v1508, 0.0
        %v1537 = vmax.f32 %v1511, 0.0
        %v1538 = vmax.f32 %v1514, 0.0
        %v1539 = vmax.f32 %v1517, 0.0
        %v1540 = vmax.f32 %v1520, 0.0
        %v1541 = vld [vmem:[%s5] sm:$0xff]
        %v1542 = vld [vmem:[%s5 + $0x8] sm:$0xff]
        %v1543 = vld [vmem:[%s5 + $0x10] sm:$0xff]
        %v1544 = vld [vmem:[%s5 + $0x18] sm:$0xff]
        %v1545 = vld [vmem:[%s5 + $0x20] sm:$0xff]
        %v1546 = vld [vmem:[%s5 + $0x28] sm:$0xff]
        %v1547 = vld [vmem:[%s6] sm:$0x1]
        %vm1548 = vcmask 392192
        %v1549 = vsel %vm1548, %v1522, 0.0
        %1550 = vadd.xlane.f32.xlu0 %v1549
        %v1551 = vpop.xlane.xlu0 %1550
        %v1552 = vsel %vm1548, %v1523, 0.0
        %1553 = vadd.xlane.f32.xlu0 %v1552
        %v1554 = vpop.xlane.xlu0 %1553
        %v1555 = vsel %vm1548, %v1524, 0.0
        %1556 = vadd.xlane.f32.xlu0 %v1555
        %v1557 = vpop.xlane.xlu0 %1556
        %v1558 = vsel %vm1548, %v1525, 0.0
        %1559 = vadd.xlane.f32.xlu0 %v1558
        %v1560 = vpop.xlane.xlu0 %1559
        %v1561 = vsel %vm1548, %v1526, 0.0
        %1562 = vadd.xlane.f32.xlu0 %v1561
        %v1563 = vpop.xlane.xlu0 %1562
        %v1564 = vsel %vm1548, %v1527, 0.0
        %1565 = vadd.xlane.f32.xlu0 %v1564
        %v1566 = vpop.xlane.xlu0 %1565
        %v1567 = vsel %vm1548, %v1528, 0.0
        %1568 = vadd.xlane.f32.xlu0 %v1567
        %v1569 = vpop.xlane.xlu0 %1568
        %v1570 = vsel %vm1548, %v1529, 0.0
        %1571 = vadd.xlane.f32.xlu0 %v1570
        %v1572 = vpop.xlane.xlu0 %1571
        %v1573 = vsel %vm1548, %v1530, 0.0
        %1574 = vadd.xlane.f32.xlu0 %v1573
        %v1575 = vpop.xlane.xlu0 %1574
        %v1576 = vsel %vm1548, %v1531, 0.0
        %1577 = vadd.xlane.f32.xlu0 %v1576
        %v1578 = vpop.xlane.xlu0 %1577
        %v1579 = vsel %vm1548, %v1532, 0.0
        %1580 = vadd.xlane.f32.xlu0 %v1579
        %v1581 = vpop.xlane.xlu0 %1580
        %v1582 = vsel %vm1548, %v1533, 0.0
        %1583 = vadd.xlane.f32.xlu0 %v1582
        %v1584 = vpop.xlane.xlu0 %1583
        %v1585 = vsel %vm1548, %v1534, 0.0
        %1586 = vadd.xlane.f32.xlu0 %v1585
        %v1587 = vpop.xlane.xlu0 %1586
        %v1588 = vsel %vm1548, %v1535, 0.0
        %1589 = vadd.xlane.f32.xlu0 %v1588
        %v1590 = vpop.xlane.xlu0 %1589
        %v1591 = vsel %vm1548, %v1536, 0.0
        %1592 = vadd.xlane.f32.xlu0 %v1591
        %v1593 = vpop.xlane.xlu0 %1592
        %v1594 = vsel %vm1548, %v1537, 0.0
        %1595 = vadd.xlane.f32.xlu0 %v1594
        %v1596 = vpop.xlane.xlu0 %1595
        %v1597 = vsel %vm1548, %v1538, 0.0
        %1598 = vadd.xlane.f32.xlu0 %v1597
        %v1599 = vpop.xlane.xlu0 %1598
        %v1600 = vsel %vm1548, %v1539, 0.0
        %1601 = vadd.xlane.f32.xlu0 %v1600
        %v1602 = vpop.xlane.xlu0 %1601
        %v1603 = vsel %vm1548, %v1540, 0.0
        %1604 = vadd.xlane.f32.xlu0 %v1603
        %v1605 = vpop.xlane.xlu0 %1604
        %v1606 = vrcp.pop 48.0
        %v1607 = vmul.f32 48.0, %v1606
        %v1608 = vsub.f32 1.0, %v1607
        %v1609 = vmul.f32 %v1606, %v1608
        %v1610 = vadd.f32 %v1606, %v1609
        %vm1611 = vweird.f32 %v1606
        %v1612 = vsel %vm1611, %v1606, %v1610
        %v1613 = vmul.f32 %v1551, %v1612
        %v1614 = vmul.f32 %v1554, %v1612
        %v1615 = vmul.f32 %v1557, %v1612
        %v1616 = vmul.f32 %v1560, %v1612
        %v1617 = vmul.f32 %v1563, %v1612
        %v1618 = vmul.f32 %v1566, %v1612
        %v1619 = vmul.f32 %v1569, %v1612
        %v1620 = vmul.f32 %v1572, %v1612
        %v1621 = vmul.f32 %v1575, %v1612
        %v1622 = vmul.f32 %v1578, %v1612
        %v1623 = vmul.f32 %v1581, %v1612
        %v1624 = vmul.f32 %v1584, %v1612
        %v1625 = vmul.f32 %v1587, %v1612
        %v1626 = vmul.f32 %v1590, %v1612
        %v1627 = vmul.f32 %v1593, %v1612
        %v1628 = vmul.f32 %v1596, %v1612
        %v1629 = vmul.f32 %v1599, %v1612
        %v1630 = vmul.f32 %v1602, %v1612
        %v1631 = vmul.f32 %v1605, %v1612
        %v1632 = vmul.f32 %v1522, %v1522
        %v1633 = vmul.f32 %v1523, %v1523
        %v1634 = vmul.f32 %v1524, %v1524
        %v1635 = vmul.f32 %v1525, %v1525
        %v1636 = vmul.f32 %v1526, %v1526
        %v1637 = vmul.f32 %v1527, %v1527
        %v1638 = vmul.f32 %v1528, %v1528
        %v1639 = vmul.f32 %v1529, %v1529
        %v1640 = vmul.f32 %v1530, %v1530
        %v1641 = vmul.f32 %v1531, %v1531
        %v1642 = vmul.f32 %v1532, %v1532
        %v1643 = vmul.f32 %v1533, %v1533
        %v1644 = vmul.f32 %v1534, %v1534
        %v1645 = vmul.f32 %v1535, %v1535
        %v1646 = vmul.f32 %v1536, %v1536
        %v1647 = vmul.f32 %v1537, %v1537
        %v1648 = vmul.f32 %v1538, %v1538
        %v1649 = vmul.f32 %v1539, %v1539
        %v1650 = vmul.f32 %v1540, %v1540
        %v1651 = vsel %vm1548, %v1632, 0.0
        %1652 = vadd.xlane.f32.xlu0 %v1651
        %v1653 = vpop.xlane.xlu0 %1652
        %v1654 = vsel %vm1548, %v1633, 0.0
        %1655 = vadd.xlane.f32.xlu0 %v1654
        %v1656 = vpop.xlane.xlu0 %1655
        %v1657 = vsel %vm1548, %v1634, 0.0
        %1658 = vadd.xlane.f32.xlu0 %v1657
        %v1659 = vpop.xlane.xlu0 %1658
        %v1660 = vsel %vm1548, %v1635, 0.0
        %1661 = vadd.xlane.f32.xlu0 %v1660
        %v1662 = vpop.xlane.xlu0 %1661
        %v1663 = vsel %vm1548, %v1636, 0.0
        %1664 = vadd.xlane.f32.xlu0 %v1663
        %v1665 = vpop.xlane.xlu0 %1664
        %v1666 = vsel %vm1548, %v1637, 0.0
        %1667 = vadd.xlane.f32.xlu0 %v1666
        %v1668 = vpop.xlane.xlu0 %1667
        %v1669 = vsel %vm1548, %v1638, 0.0
        %1670 = vadd.xlane.f32.xlu0 %v1669
        %v1671 = vpop.xlane.xlu0 %1670
        %v1672 = vsel %vm1548, %v1639, 0.0
        %1673 = vadd.xlane.f32.xlu0 %v1672
        %v1674 = vpop.xlane.xlu0 %1673
        %v1675 = vsel %vm1548, %v1640, 0.0
        %1676 = vadd.xlane.f32.xlu0 %v1675
        %v1677 = vpop.xlane.xlu0 %1676
        %v1678 = vsel %vm1548, %v1641, 0.0
        %1679 = vadd.xlane.f32.xlu0 %v1678
        %v1680 = vpop.xlane.xlu0 %1679
        %v1681 = vsel %vm1548, %v1642, 0.0
        %1682 = vadd.xlane.f32.xlu0 %v1681
        %v1683 = vpop.xlane.xlu0 %1682
        %v1684 = vsel %vm1548, %v1643, 0.0
        %1685 = vadd.xlane.f32.xlu0 %v1684
        %v1686 = vpop.xlane.xlu0 %1685
        %v1687 = vsel %vm1548, %v1644, 0.0
        %1688 = vadd.xlane.f32.xlu0 %v1687
        %v1689 = vpop.xlane.xlu0 %1688
        %v1690 = vsel %vm1548, %v1645, 0.0
        %1691 = vadd.xlane.f32.xlu0 %v1690
        %v1692 = vpop.xlane.xlu0 %1691
        %v1693 = vsel %vm1548, %v1646, 0.0
        %1694 = vadd.xlane.f32.xlu0 %v1693
        %v1695 = vpop.xlane.xlu0 %1694
        %v1696 = vsel %vm1548, %v1647, 0.0
        %1697 = vadd.xlane.f32.xlu0 %v1696
        %v1698 = vpop.xlane.xlu0 %1697
        %v1699 = vsel %vm1548, %v1648, 0.0
        %1700 = vadd.xlane.f32.xlu0 %v1699
        %v1701 = vpop.xlane.xlu0 %1700
        %v1702 = vsel %vm1548, %v1649, 0.0
        %1703 = vadd.xlane.f32.xlu0 %v1702
        %v1704 = vpop.xlane.xlu0 %1703
        %v1705 = vsel %vm1548, %v1650, 0.0
        %1706 = vadd.xlane.f32.xlu0 %v1705
        %v1707 = vpop.xlane.xlu0 %1706
        %v1708 = vmul.f32 %v1653, %v1612
        %v1709 = vmul.f32 %v1656, %v1612
        %v1710 = vmul.f32 %v1659, %v1612
        %v1711 = vmul.f32 %v1662, %v1612
        %v1712 = vmul.f32 %v1665, %v1612
        %v1713 = vmul.f32 %v1668, %v1612
        %v1714 = vmul.f32 %v1671, %v1612
        %v1715 = vmul.f32 %v1674, %v1612
        %v1716 = vmul.f32 %v1677, %v1612
        %v1717 = vmul.f32 %v1680, %v1612
        %v1718 = vmul.f32 %v1683, %v1612
        %v1719 = vmul.f32 %v1686, %v1612
        %v1720 = vmul.f32 %v1689, %v1612
        %v1721 = vmul.f32 %v1692, %v1612
        %v1722 = vmul.f32 %v1695, %v1612
        %v1723 = vmul.f32 %v1698, %v1612
        %v1724 = vmul.f32 %v1701, %v1612
        %v1725 = vmul.f32 %v1704, %v1612
        %v1726 = vmul.f32 %v1707, %v1612
        %v1727 = vmul.f32 %v1613, %v1613
        %v1728 = vmul.f32 %v1614, %v1614
        %v1729 = vmul.f32 %v1615, %v1615
        %v1730 = vmul.f32 %v1616, %v1616
        %v1731 = vmul.f32 %v1617, %v1617
        %v1732 = vmul.f32 %v1618, %v1618
        %v1733 = vmul.f32 %v1619, %v1619
        %v1734 = vmul.f32 %v1620, %v1620
        %v1735 = vmul.f32 %v1621, %v1621
        %v1736 = vmul.f32 %v1622, %v1622
        %v1737 = vmul.f32 %v1623, %v1623
        %v1738 = vmul.f32 %v1624, %v1624
        %v1739 = vmul.f32 %v1625, %v1625
        %v1740 = vmul.f32 %v1626, %v1626
        %v1741 = vmul.f32 %v1627, %v1627
        %v1742 = vmul.f32 %v1628, %v1628
        %v1743 = vmul.f32 %v1629, %v1629
        %v1744 = vmul.f32 %v1630, %v1630
        %v1745 = vmul.f32 %v1631, %v1631
        %v1746 = vsub.f32 %v1708, %v1727
        %v1747 = vsub.f32 %v1709, %v1728
        %v1748 = vsub.f32 %v1710, %v1729
        %v1749 = vsub.f32 %v1711, %v1730
        %v1750 = vsub.f32 %v1712, %v1731
        %v1751 = vsub.f32 %v1713, %v1732
        %v1752 = vsub.f32 %v1714, %v1733
        %v1753 = vsub.f32 %v1715, %v1734
        %v1754 = vsub.f32 %v1716, %v1735
        %v1755 = vsub.f32 %v1717, %v1736
        %v1756 = vsub.f32 %v1718, %v1737
        %v1757 = vsub.f32 %v1719, %v1738
        %v1758 = vsub.f32 %v1720, %v1739
        %v1759 = vsub.f32 %v1721, %v1740
        %v1760 = vsub.f32 %v1722, %v1741
        %v1761 = vsub.f32 %v1723, %v1742
        %v1762 = vsub.f32 %v1724, %v1743
        %v1763 = vsub.f32 %v1725, %v1744
        %v1764 = vsub.f32 %v1726, %v1745
        %v1765 = vsub.f32 %v1522, %v1613
        %v1766 = vsub.f32 %v1523, %v1614
        %v1767 = vsub.f32 %v1524, %v1615
        %v1768 = vsub.f32 %v1525, %v1616
        %v1769 = vsub.f32 %v1526, %v1617
        %v1770 = vsub.f32 %v1527, %v1618
        %v1771 = vsub.f32 %v1528, %v1619
        %v1772 = vsub.f32 %v1529, %v1620
        %v1773 = vsub.f32 %v1530, %v1621
        %v1774 = vsub.f32 %v1531, %v1622
        %v1775 = vsub.f32 %v1532, %v1623
        %v1776 = vsub.f32 %v1533, %v1624
        %v1777 = vsub.f32 %v1534, %v1625
        %v1778 = vsub.f32 %v1535, %v1626
        %v1779 = vsub.f32 %v1536, %v1627
        %v1780 = vsub.f32 %v1537, %v1628
        %v1781 = vsub.f32 %v1538, %v1629
        %v1782 = vsub.f32 %v1539, %v1630
        %v1783 = vsub.f32 %v1540, %v1631
        %v1784 = vadd.f32 %v1746, 1e-05
        %v1785 = vadd.f32 %v1747, 1e-05
        %v1786 = vadd.f32 %v1748, 1e-05
        %v1787 = vadd.f32 %v1749, 1e-05
        %v1788 = vadd.f32 %v1750, 1e-05
        %v1789 = vadd.f32 %v1751, 1e-05
        %v1790 = vadd.f32 %v1752, 1e-05
        %v1791 = vadd.f32 %v1753, 1e-05
        %v1792 = vadd.f32 %v1754, 1e-05
        %v1793 = vadd.f32 %v1755, 1e-05
        %v1794 = vadd.f32 %v1756, 1e-05
        %v1795 = vadd.f32 %v1757, 1e-05
        %v1796 = vadd.f32 %v1758, 1e-05
        %v1797 = vadd.f32 %v1759, 1e-05
        %v1798 = vadd.f32 %v1760, 1e-05
        %v1799 = vadd.f32 %v1761, 1e-05
        %v1800 = vadd.f32 %v1762, 1e-05
        %v1801 = vadd.f32 %v1763, 1e-05
        %v1802 = vadd.f32 %v1764, 1e-05
        %v1803 = vrsqrt.pop %v1784
        %v1804 = vmul.f32 %v1803, %v1784
        %v1805 = vmul.f32 %v1804, %v1803
        %v1806 = vmul.f32 0.5, %v1805
        %v1807 = vsub.f32 1.5, %v1806
        %v1808 = vmul.f32 %v1803, %v1807
        %vm1809 = vweird.f32 %v1784
        %vm1810 = vweird.f32 %v1803
        %vm1811 = vmor %vm1809, %vm1810
        %v1812 = vsel %vm1811, %v1803, %v1808
        %v1813 = vrsqrt.pop %v1785
        %v1814 = vmul.f32 %v1813, %v1785
        %v1815 = vmul.f32 %v1814, %v1813
        %v1816 = vmul.f32 0.5, %v1815
        %v1817 = vsub.f32 1.5, %v1816
        %v1818 = vmul.f32 %v1813, %v1817
        %vm1819 = vweird.f32 %v1785
        %vm1820 = vweird.f32 %v1813
        %vm1821 = vmor %vm1819, %vm1820
        %v1822 = vsel %vm1821, %v1813, %v1818
        %v1823 = vrsqrt.pop %v1786
        %v1824 = vmul.f32 %v1823, %v1786
        %v1825 = vmul.f32 %v1824, %v1823
        %v1826 = vmul.f32 0.5, %v1825
        %v1827 = vsub.f32 1.5, %v1826
        %v1828 = vmul.f32 %v1823, %v1827
        %vm1829 = vweird.f32 %v1786
        %vm1830 = vweird.f32 %v1823
        %vm1831 = vmor %vm1829, %vm1830
        %v1832 = vsel %vm1831, %v1823, %v1828
        %v1833 = vrsqrt.pop %v1787
        %v1834 = vmul.f32 %v1833, %v1787
        %v1835 = vmul.f32 %v1834, %v1833
        %v1836 = vmul.f32 0.5, %v1835
        %v1837 = vsub.f32 1.5, %v1836
        %v1838 = vmul.f32 %v1833, %v1837
        %vm1839 = vweird.f32 %v1787
        %vm1840 = vweird.f32 %v1833
        %vm1841 = vmor %vm1839, %vm1840
        %v1842 = vsel %vm1841, %v1833, %v1838
        %v1843 = vrsqrt.pop %v1788
        %v1844 = vmul.f32 %v1843, %v1788
        %v1845 = vmul.f32 %v1844, %v1843
        %v1846 = vmul.f32 0.5, %v1845
        %v1847 = vsub.f32 1.5, %v1846
        %v1848 = vmul.f32 %v1843, %v1847
        %vm1849 = vweird.f32 %v1788
        %vm1850 = vweird.f32 %v1843
        %vm1851 = vmor %vm1849, %vm1850
        %v1852 = vsel %vm1851, %v1843, %v1848
        %v1853 = vrsqrt.pop %v1789
        %v1854 = vmul.f32 %v1853, %v1789
        %v1855 = vmul.f32 %v1854, %v1853
        %v1856 = vmul.f32 0.5, %v1855
        %v1857 = vsub.f32 1.5, %v1856
        %v1858 = vmul.f32 %v1853, %v1857
        %vm1859 = vweird.f32 %v1789
        %vm1860 = vweird.f32 %v1853
        %vm1861 = vmor %vm1859, %vm1860
        %v1862 = vsel %vm1861, %v1853, %v1858
        %v1863 = vrsqrt.pop %v1790
        %v1864 = vmul.f32 %v1863, %v1790
        %v1865 = vmul.f32 %v1864, %v1863
        %v1866 = vmul.f32 0.5, %v1865
        %v1867 = vsub.f32 1.5, %v1866
        %v1868 = vmul.f32 %v1863, %v1867
        %vm1869 = vweird.f32 %v1790
        %vm1870 = vweird.f32 %v1863
        %vm1871 = vmor %vm1869, %vm1870
        %v1872 = vsel %vm1871, %v1863, %v1868
        %v1873 = vrsqrt.pop %v1791
        %v1874 = vmul.f32 %v1873, %v1791
        %v1875 = vmul.f32 %v1874, %v1873
        %v1876 = vmul.f32 0.5, %v1875
        %v1877 = vsub.f32 1.5, %v1876
        %v1878 = vmul.f32 %v1873, %v1877
        %vm1879 = vweird.f32 %v1791
        %vm1880 = vweird.f32 %v1873
        %vm1881 = vmor %vm1879, %vm1880
        %v1882 = vsel %vm1881, %v1873, %v1878
        %v1883 = vrsqrt.pop %v1792
        %v1884 = vmul.f32 %v1883, %v1792
        %v1885 = vmul.f32 %v1884, %v1883
        %v1886 = vmul.f32 0.5, %v1885
        %v1887 = vsub.f32 1.5, %v1886
        %v1888 = vmul.f32 %v1883, %v1887
        %vm1889 = vweird.f32 %v1792
        %vm1890 = vweird.f32 %v1883
        %vm1891 = vmor %vm1889, %vm1890
        %v1892 = vsel %vm1891, %v1883, %v1888
        %v1893 = vrsqrt.pop %v1793
        %v1894 = vmul.f32 %v1893, %v1793
        %v1895 = vmul.f32 %v1894, %v1893
        %v1896 = vmul.f32 0.5, %v1895
        %v1897 = vsub.f32 1.5, %v1896
        %v1898 = vmul.f32 %v1893, %v1897
        %vm1899 = vweird.f32 %v1793
        %vm1900 = vweird.f32 %v1893
        %vm1901 = vmor %vm1899, %vm1900
        %v1902 = vsel %vm1901, %v1893, %v1898
        %v1903 = vrsqrt.pop %v1794
        %v1904 = vmul.f32 %v1903, %v1794
        %v1905 = vmul.f32 %v1904, %v1903
        %v1906 = vmul.f32 0.5, %v1905
        %v1907 = vsub.f32 1.5, %v1906
        %v1908 = vmul.f32 %v1903, %v1907
        %vm1909 = vweird.f32 %v1794
        %vm1910 = vweird.f32 %v1903
        %vm1911 = vmor %vm1909, %vm1910
        %v1912 = vsel %vm1911, %v1903, %v1908
        %v1913 = vrsqrt.pop %v1795
        %v1914 = vmul.f32 %v1913, %v1795
        %v1915 = vmul.f32 %v1914, %v1913
        %v1916 = vmul.f32 0.5, %v1915
        %v1917 = vsub.f32 1.5, %v1916
        %v1918 = vmul.f32 %v1913, %v1917
        %vm1919 = vweird.f32 %v1795
        %vm1920 = vweird.f32 %v1913
        %vm1921 = vmor %vm1919, %vm1920
        %v1922 = vsel %vm1921, %v1913, %v1918
        %v1923 = vrsqrt.pop %v1796
        %v1924 = vmul.f32 %v1923, %v1796
        %v1925 = vmul.f32 %v1924, %v1923
        %v1926 = vmul.f32 0.5, %v1925
        %v1927 = vsub.f32 1.5, %v1926
        %v1928 = vmul.f32 %v1923, %v1927
        %vm1929 = vweird.f32 %v1796
        %vm1930 = vweird.f32 %v1923
        %vm1931 = vmor %vm1929, %vm1930
        %v1932 = vsel %vm1931, %v1923, %v1928
        %v1933 = vrsqrt.pop %v1797
        %v1934 = vmul.f32 %v1933, %v1797
        %v1935 = vmul.f32 %v1934, %v1933
        %v1936 = vmul.f32 0.5, %v1935
        %v1937 = vsub.f32 1.5, %v1936
        %v1938 = vmul.f32 %v1933, %v1937
        %vm1939 = vweird.f32 %v1797
        %vm1940 = vweird.f32 %v1933
        %vm1941 = vmor %vm1939, %vm1940
        %v1942 = vsel %vm1941, %v1933, %v1938
        %v1943 = vrsqrt.pop %v1798
        %v1944 = vmul.f32 %v1943, %v1798
        %v1945 = vmul.f32 %v1944, %v1943
        %v1946 = vmul.f32 0.5, %v1945
        %v1947 = vsub.f32 1.5, %v1946
        %v1948 = vmul.f32 %v1943, %v1947
        %vm1949 = vweird.f32 %v1798
        %vm1950 = vweird.f32 %v1943
        %vm1951 = vmor %vm1949, %vm1950
        %v1952 = vsel %vm1951, %v1943, %v1948
        %v1953 = vrsqrt.pop %v1799
        %v1954 = vmul.f32 %v1953, %v1799
        %v1955 = vmul.f32 %v1954, %v1953
        %v1956 = vmul.f32 0.5, %v1955
        %v1957 = vsub.f32 1.5, %v1956
        %v1958 = vmul.f32 %v1953, %v1957
        %vm1959 = vweird.f32 %v1799
        %vm1960 = vweird.f32 %v1953
        %vm1961 = vmor %vm1959, %vm1960
        %v1962 = vsel %vm1961, %v1953, %v1958
        %v1963 = vrsqrt.pop %v1800
        %v1964 = vmul.f32 %v1963, %v1800
        %v1965 = vmul.f32 %v1964, %v1963
        %v1966 = vmul.f32 0.5, %v1965
        %v1967 = vsub.f32 1.5, %v1966
        %v1968 = vmul.f32 %v1963, %v1967
        %vm1969 = vweird.f32 %v1800
        %vm1970 = vweird.f32 %v1963
        %vm1971 = vmor %vm1969, %vm1970
        %v1972 = vsel %vm1971, %v1963, %v1968
        %v1973 = vrsqrt.pop %v1801
        %v1974 = vmul.f32 %v1973, %v1801
        %v1975 = vmul.f32 %v1974, %v1973
        %v1976 = vmul.f32 0.5, %v1975
        %v1977 = vsub.f32 1.5, %v1976
        %v1978 = vmul.f32 %v1973, %v1977
        %vm1979 = vweird.f32 %v1801
        %vm1980 = vweird.f32 %v1973
        %vm1981 = vmor %vm1979, %vm1980
        %v1982 = vsel %vm1981, %v1973, %v1978
        %v1983 = vrsqrt.pop %v1802
        %v1984 = vmul.f32 %v1983, %v1802
        %v1985 = vmul.f32 %v1984, %v1983
        %v1986 = vmul.f32 0.5, %v1985
        %v1987 = vsub.f32 1.5, %v1986
        %v1988 = vmul.f32 %v1983, %v1987
        %vm1989 = vweird.f32 %v1802
        %vm1990 = vweird.f32 %v1983
        %vm1991 = vmor %vm1989, %vm1990
        %v1992 = vsel %vm1991, %v1983, %v1988
        %v1993 = vmul.f32 %v1765, %v1812
        %v1994 = vmul.f32 %v1766, %v1822
        %v1995 = vmul.f32 %v1767, %v1832
        %v1996 = vmul.f32 %v1768, %v1842
        %v1997 = vmul.f32 %v1769, %v1852
        %v1998 = vmul.f32 %v1770, %v1862
        %v1999 = vmul.f32 %v1771, %v1872
        %v2000 = vmul.f32 %v1772, %v1882
        %v2001 = vmul.f32 %v1773, %v1892
        %v2002 = vmul.f32 %v1774, %v1902
        %v2003 = vmul.f32 %v1775, %v1912
        %v2004 = vmul.f32 %v1776, %v1922
        %v2005 = vmul.f32 %v1777, %v1932
        %v2006 = vmul.f32 %v1778, %v1942
        %v2007 = vmul.f32 %v1779, %v1952
        %v2008 = vmul.f32 %v1780, %v1962
        %v2009 = vmul.f32 %v1781, %v1972
        %v2010 = vmul.f32 %v1782, %v1982
        %v2011 = vmul.f32 %v1783, %v1992
        %v2013 = vperm.slane %v1547, 0
        %v2016 = vsel %vm1548, %v1993, 0
        %v2019 = vsel %vm1548, %v1994, 0
        %v2022 = vsel %vm1548, %v1995, 0
        %v2025 = vsel %vm1548, %v1996, 0
        %v2028 = vsel %vm1548, %v1997, 0
        %v2031 = vsel %vm1548, %v1998, 0
        %v2034 = vsel %vm1548, %v1999, 0
        %v2037 = vsel %vm1548, %v2000, 0
        %v2040 = vsel %vm1548, %v2001, 0
        %v2043 = vsel %vm1548, %v2002, 0
        %v2046 = vsel %vm1548, %v2003, 0
        %v2049 = vsel %vm1548, %v2004, 0
        %v2052 = vsel %vm1548, %v2005, 0
        %v2055 = vsel %vm1548, %v2006, 0
        %v2058 = vsel %vm1548, %v2007, 0
        %v2061 = vsel %vm1548, %v2008, 0
        %v2064 = vsel %vm1548, %v2009, 0
        %v2067 = vsel %vm1548, %v2010, 0
        %v2070 = vsel %vm1548, %v2011, 0
        %2072 = vmatpush.msra.mxu0 0.0
        %2073 = vmatpush.msra.mxu0 0.0
        %2074 = vmatpush.msra.mxu0 0.0
        %2075 = vmatpush.msra.mxu0 0.0
        %2076 = vmatpush.msra.mxu0 0.0
        %2077 = vmatpush.msra.mxu0 0.0
        %2078 = vmatpush.msra.mxu0 0.0
        %2079 = vmatpush.msra.mxu0 0.0
        %2080 = vmatpush.msra.mxu0 0.0
        %2081 = vmatpush.msra.mxu0 0.0
        %2082 = vmatpush.msra.mxu0 %v1546
        %2083 = vmatpush.msra.mxu0 %v1545
        %2084 = vmatpush.msra.mxu0 %v1544
        %2085 = vmatpush.msra.mxu0 %v1543
        %2086 = vmatpush.msra.mxu0 %v1542
        %2087 = vmatpush.msra.mxu0 %v1541
        %2088 = vmatmul.f32.gmra.mxu0 %v2016
        %v2089 = vpop.f32.mrf.mxu0
        %v2090 = vadd.f32 %v2013, %v2089
        %2091 = vmatmul.f32.gmra.mxu0 %v2019
        %v2092 = vpop.f32.mrf.mxu0
        %v2093 = vadd.f32 %v2013, %v2092
        %2094 = vmatmul.f32.gmra.mxu0 %v2022
        %v2095 = vpop.f32.mrf.mxu0
        %v2096 = vadd.f32 %v2013, %v2095
        %2097 = vmatmul.f32.gmra.mxu0 %v2025
        %v2098 = vpop.f32.mrf.mxu0
        %v2099 = vadd.f32 %v2013, %v2098
        %2100 = vmatmul.f32.gmra.mxu0 %v2028
        %v2101 = vpop.f32.mrf.mxu0
        %v2102 = vadd.f32 %v2013, %v2101
        %2103 = vmatmul.f32.gmra.mxu0 %v2031
        %v2104 = vpop.f32.mrf.mxu0
        %v2105 = vadd.f32 %v2013, %v2104
        %2106 = vmatmul.f32.gmra.mxu0 %v2034
        %v2107 = vpop.f32.mrf.mxu0
        %v2108 = vadd.f32 %v2013, %v2107
        %2109 = vmatmul.f32.gmra.mxu0 %v2037
        %v2110 = vpop.f32.mrf.mxu0
        %v2111 = vadd.f32 %v2013, %v2110
        %2112 = vmatmul.f32.gmra.mxu0 %v2040
        %v2113 = vpop.f32.mrf.mxu0
        %v2114 = vadd.f32 %v2013, %v2113
        %2115 = vmatmul.f32.gmra.mxu0 %v2043
        %v2116 = vpop.f32.mrf.mxu0
        %v2117 = vadd.f32 %v2013, %v2116
        %2118 = vmatmul.f32.gmra.mxu0 %v2046
        %v2119 = vpop.f32.mrf.mxu0
        %v2120 = vadd.f32 %v2013, %v2119
        %2121 = vmatmul.f32.gmra.mxu0 %v2049
        %v2122 = vpop.f32.mrf.mxu0
        %v2123 = vadd.f32 %v2013, %v2122
        %2124 = vmatmul.f32.gmra.mxu0 %v2052
        %v2125 = vpop.f32.mrf.mxu0
        %v2126 = vadd.f32 %v2013, %v2125
        %2127 = vmatmul.f32.gmra.mxu0 %v2055
        %v2128 = vpop.f32.mrf.mxu0
        %v2129 = vadd.f32 %v2013, %v2128
        %2130 = vmatmul.f32.gmra.mxu0 %v2058
        %v2131 = vpop.f32.mrf.mxu0
        %v2132 = vadd.f32 %v2013, %v2131
        %2133 = vmatmul.f32.gmra.mxu0 %v2061
        %v2134 = vpop.f32.mrf.mxu0
        %v2135 = vadd.f32 %v2013, %v2134
        %2136 = vmatmul.f32.gmra.mxu0 %v2064
        %v2137 = vpop.f32.mrf.mxu0
        %v2138 = vadd.f32 %v2013, %v2137
        %2139 = vmatmul.f32.gmra.mxu0 %v2067
        %v2140 = vpop.f32.mrf.mxu0
        %v2141 = vadd.f32 %v2013, %v2140
        %2142 = vmatmul.f32.gmra.mxu0 %v2070
        %v2143 = vpop.f32.mrf.mxu0
        %v2144 = vadd.f32 %v2013, %v2143
        %2145 = vdwg.mxu0
        %2146 = vst [vmem:[%s272] sm:$0xff] %v2090
        %2147 = vst [vmem:[%s272 + $0x8] sm:$0xff] %v2093
        %2148 = vst [vmem:[%s272 + $0x10] sm:$0xff] %v2096
        %2149 = vst [vmem:[%s272 + $0x18] sm:$0xff] %v2099
        %2150 = vst [vmem:[%s272 + $0x20] sm:$0xff] %v2102
        %2151 = vst [vmem:[%s272 + $0x28] sm:$0xff] %v2105
        %2152 = vst [vmem:[%s272 + $0x30] sm:$0xff] %v2108
        %2153 = vst [vmem:[%s272 + $0x38] sm:$0xff] %v2111
        %2154 = vst [vmem:[%s272 + $0x40] sm:$0xff] %v2114
        %2155 = vst [vmem:[%s272 + $0x48] sm:$0xff] %v2117
        %2156 = vst [vmem:[%s272 + $0x50] sm:$0xff] %v2120
        %2157 = vst [vmem:[%s272 + $0x58] sm:$0xff] %v2123
        %2158 = vst [vmem:[%s272 + $0x60] sm:$0xff] %v2126
        %2159 = vst [vmem:[%s272 + $0x68] sm:$0xff] %v2129
        %2160 = vst [vmem:[%s272 + $0x70] sm:$0xff] %v2132
        %2161 = vst [vmem:[%s272 + $0x78] sm:$0xff] %v2135
        %2162 = vst [vmem:[%s272 + $0x80] sm:$0xff] %v2138
        %2163 = vst [vmem:[%s272 + $0x88] sm:$0xff] %v2141
        %2164 = vst [vmem:[%s272 + $0x90] sm:$0xff] %v2144
        %s2165 = sand.u32 %s181, 1
        %s2166 = scalar_lea.sflag [#allocation3], %s2165
        %s2167 = sand.u32 %s181, 1
        %s2168 = smul.addr %s2167, 152
        %s2169 = scalar_lea.vmem [#allocation2], %s2168
        // Predicated region
        $region49: #{tpu_custom_call.1} parent=47 // pred_check
          %p2170 = pneg %p191
        $region50: #{tpu_custom_call.1} parent=47 // pred_check_branch
          %2172 = sbr.rel (%p2170) target = $region52
        $region51: #{tpu_custom_call.1} parent=47 // pred_region
          %s2173 = smul.u32 19, %s21
          %2175 = vsyncadd %s2166, 0
          %s2176 = smul.addr %s2173, 8
          %s2177 = scalar_lea.hbm %s7, %s2176
          %s2178 = sshll.u32 %s2169, 4
          %s2179 = int_to_ptr.vmem [resolvable:$true] %s2178
          %s2180 = sshll.u32 %s2177, 4
          %s2181 = int_to_ptr.hbm [resolvable:$true] %s2180
          %2186 = dma.vmem_to_hbm [thread:$0]  %s2179, 2432, %s2181, %s2166, 128, 128, 8
        $region52: #{tpu_custom_call.1} parent=47 // pred_fallthru
          _
      $region48: #{tpu_custom_call.1} parent=5 // pred_fallthru
        _
      %p2187 = scmp.le.s32.totalorder 2, %s16
      // Predicated region
      $region53: #{tpu_custom_call.1} parent=5 // pred_check
        %p2188 = pneg %p2187
      $region54: #{tpu_custom_call.1} parent=5 // pred_check_branch
        %2190 = sbr.rel (%p2188) target = $region56
      $region55: #{tpu_custom_call.1} parent=5 // pred_region
        %s2191 = ssub.s32 %s16, 2
        // Predicated region
        $region57: #{tpu_custom_call.1} parent=55 // pred_check
          %p2192 = pneg %p197
        $region58: #{tpu_custom_call.1} parent=55 // pred_check_branch
          %2194 = sbr.rel (%p2192) target = $region60
        $region59: #{tpu_custom_call.1} parent=55 // pred_region
          %s2195 = sand.u32 %s182, 1
          %s2196 = scalar_lea.sflag [#allocation3], %s2195
          %s2197 = sand.u32 %s182, 1
          %s2198 = smul.addr %s2197, 152
          %s2199 = scalar_lea.vmem [#allocation2], %s2198
          %2201 = dma.done %s2196, 2432
        $region60: #{tpu_custom_call.1} parent=55 // pred_fallthru
          _
      $region56: #{tpu_custom_call.1} parent=5 // pred_fallthru
        _
    $region6: #{tpu_custom_call.1} parent=1 // loop_footer
      %s20 = sadd.s32 1, %s16
    $region7: #{tpu_custom_call.1} parent=1 // loop_footer_branch
      %15 = sbr.rel target = $region3
    $region8: #{tpu_custom_call.1} parent=1 // loop_exit
      _
    %2202 = vsyncpa [#allocation3], 1
    %s2203 = scalar_lea.sflag [#allocation3], 1
    %2204 = vsyncpa %s2203, 1

// kernel: tpu_custom_call.1
$region0: #{tpu_custom_call.1}
  #allocation0 [shape = 'u32[]', space=smem, size = 0x4, offset = 0x4, fixed_abs, tag = 'smem constant byte address 0x4 - core index']
  #allocation1 [shape = 'u32[72,128]{1,0:T(1,128)}', space=vmem, size = 0x9000, scoped, tag = 'internal scratch']
  %s0 = inlined_call_operand.vmem [shape: f32[300,16], index: 0, kind: input, shape index: {}]
  %s1 = inlined_call_operand.vmem [shape: f32[16,32], index: 1, kind: input, shape index: {}]
  %s2 = inlined_call_operand.vmem [shape: f32[1,32], index: 2, kind: input, shape index: {}]
  %s3 = inlined_call_operand.vmem [shape: f32[32,48], index: 3, kind: input, shape index: {}]
  %s4 = inlined_call_operand.vmem [shape: f32[1,48], index: 4, kind: input, shape index: {}]
  %s5 = inlined_call_operand.vmem [shape: f32[48,128], index: 5, kind: input, shape index: {}]
  %s6 = inlined_call_operand.vmem [shape: f32[1,128], index: 6, kind: input, shape index: {}]
  %s7 = inlined_call_operand.hbm [shape: f32[300,128], index: 7, kind: output, shape index: {}]
  %s8 = sld [smem:[#allocation0]]
  $region61: #{tpu_custom_call.1} parent=0
    _
  %s10 = ssub.s32 1, %s8
  %s11 = scalar_select 0, %s10, %s8
  $region1: #{tpu_custom_call.1} parent=0
    #allocation2 [shape = 'u8[155648]{0}', space=vmem, size = 0x26000, scoped, tag = 'output window, operand 0']
    #allocation3 [shape = 's32[2]{0}', space=sflag, size = 0x8, scoped, tag = 'scoped memory for tpu_custom_call.1']
    %12 = vsyncpa [#allocation3], 0
    %s13 = scalar_lea.sflag [#allocation3], 1
    %14 = vsyncpa %s13, 0
    loop: start=0, step=1, limit=4
    $region2: #{tpu_custom_call.1} parent=1 // loop_pre_header
      _
    $region3: #{tpu_custom_call.1} parent=1 // loop_header
      %s16 = sphi 0, %s20
      %p17 = scmp.ge.s32.totalorder %s16, 4
      %s26 = sphi 0, %s28
      %s29 = sphi 0, %s26
      %s30 = sphi 0, %s29
      %s46 = sphi 0, %s30
      %s50 = sphi 0, %s50
      %s52 = sphi 0, %s50
      %s53 = sphi 0, %s52
      %s67 = sphi 0, %s53
      %s71 = sphi 0, %s71
      %s73 = sphi 0, %s71
      %s74 = sphi 0, %s73
      %s88 = sphi 0, %s74
      %s92 = sphi 0, %s92
      %s94 = sphi 0, %s92
      %s95 = sphi 0, %s94
      %s109 = sphi 0, %s95
      %s113 = sphi 0, %s113
      %s115 = sphi 0, %s113
      %s116 = sphi 0, %s115
      %s130 = sphi 0, %s116
      %s134 = sphi 0, %s134
      %s136 = sphi 0, %s134
      %s137 = sphi 0, %s136
      %s151 = sphi 0, %s137
      %s155 = sphi 0, %s155
      %s157 = sphi 0, %s155
      %s158 = sphi 0, %s157
      %s172 = sphi 0, %s158
      %s178 = sphi 0, %s180
      %s181 = sphi 0, %s178
      %s182 = sphi 0, %s181
      %s198 = sphi 0, %s182
    $region4: #{tpu_custom_call.1} parent=1 // loop_header_branch
      %19 = sbr.rel (%p17) target = $region8
    $region5: #{tpu_custom_call.1} parent=1 // loop_body
      %s21 = ssub.s32 %s16, 1
      %s22 = ssub.s32 %s16, 2
      %s23 = sadd.s32 %s16, 1
      %s24 = ssub.s32 %s16, %s23
      %p25 = scmp.eq.s32.totalorder %s24, 0
      %s27 = sadd.s32 %s26, 1
      %s28 = scalar_select %p25, %s26, %s27
      %p31 = pneg %p25
      %p32 = scmp.eq.s32.totalorder %s16, 1
      %p33 = por %p31, %p32
      %p34 = scmp.ne.s32.totalorder %s26, %s29
      %p35 = scmp.eq.s32.totalorder %s16, 0
      %p36 = por %p34, %p35
      %p37 = scmp.ne.s32.totalorder %s26, %s29
      %p38 = scmp.eq.s32.totalorder %s21, 1
      %p39 = por %p37, %p38
      %p40 = scmp.ne.s32.totalorder %s29, %s30
      %p41 = scmp.eq.s32.totalorder %s21, 0
      %p42 = por %p40, %p41
      %p43 = scmp.ne.s32.totalorder %s29, %s30
      %p44 = scmp.eq.s32.totalorder %s22, 1
      %p45 = por %p43, %p44
      %p47 = scmp.ne.s32.totalorder %s30, %s46
      %p48 = scmp.eq.s32.totalorder %s22, 0
      %p49 = por %p47, %p48
      %s51 = sadd.s32 %s50, 1
      %p54 = scmp.eq.s32.totalorder %s16, 1
      %p55 = scmp.ne.s32.totalorder %s50, %s52
      %p56 = scmp.eq.s32.totalorder %s16, 0
      %p57 = por %p55, %p56
      %p58 = scmp.ne.s32.totalorder %s50, %s52
      %p59 = scmp.eq.s32.totalorder %s21, 1
      %p60 = por %p58, %p59
      %p61 = scmp.ne.s32.totalorder %s52, %s53
      %p62 = scmp.eq.s32.totalorder %s21, 0
      %p63 = por %p61, %p62
      %p64 = scmp.ne.s32.totalorder %s52, %s53
      %p65 = scmp.eq.s32.totalorder %s22, 1
      %p66 = por %p64, %p65
      %p68 = scmp.ne.s32.totalorder %s53, %s67
      %p69 = scmp.eq.s32.totalorder %s22, 0
      %p70 = por %p68, %p69
      %s72 = sadd.s32 %s71, 1
      %p75 = scmp.eq.s32.totalorder %s16, 1
      %p76 = scmp.ne.s32.totalorder %s71, %s73
      %p77 = scmp.eq.s32.totalorder %s16, 0
      %p78 = por %p76, %p77
      %p79 = scmp.ne.s32.totalorder %s71, %s73
      %p80 = scmp.eq.s32.totalorder %s21, 1
      %p81 = por %p79, %p80
      %p82 = scmp.ne.s32.totalorder %s73, %s74
      %p83 = scmp.eq.s32.totalorder %s21, 0
      %p84 = por %p82, %p83
      %p85 = scmp.ne.s32.totalorder %s73, %s74
      %p86 = scmp.eq.s32.totalorder %s22, 1
      %p87 = por %p85, %p86
      %p89 = scmp.ne.s32.totalorder %s74, %s88
      %p90 = scmp.eq.s32.totalorder %s22, 0
      %p91 = por %p89, %p90
      %s93 = sadd.s32 %s92, 1
      %p96 = scmp.eq.s32.totalorder %s16, 1
      %p97 = scmp.ne.s32.totalorder %s92, %s94
      %p98 = scmp.eq.s32.totalorder %s16, 0
      %p99 = por %p97, %p98
      %p100 = scmp.ne.s32.totalorder %s92, %s94
      %p101 = scmp.eq.s32.totalorder %s21, 1
      %p102 = por %p100, %p101
      %p103 = scmp.ne.s32.totalorder %s94, %s95
      %p104 = scmp.eq.s32.totalorder %s21, 0
      %p105 = por %p103, %p104
      %p106 = scmp.ne.s32.totalorder %s94, %s95
      %p107 = scmp.eq.s32.totalorder %s22, 1
      %p108 = por %p106, %p107
      %p110 = scmp.ne.s32.totalorder %s95, %s109
      %p111 = scmp.eq.s32.totalorder %s22, 0
      %p112 = por %p110, %p111
      %s114 = sadd.s32 %s113, 1
      %p117 = scmp.eq.s32.totalorder %s16, 1
      %p118 = scmp.ne.s32.totalorder %s113, %s115
      %p119 = scmp.eq.s32.totalorder %s16, 0
      %p120 = por %p118, %p119
      %p121 = scmp.ne.s32.totalorder %s113, %s115
      %p122 = scmp.eq.s32.totalorder %s21, 1
      %p123 = por %p121, %p122
      %p124 = scmp.ne.s32.totalorder %s115, %s116
      %p125 = scmp.eq.s32.totalorder %s21, 0
      %p126 = por %p124, %p125
      %p127 = scmp.ne.s32.totalorder %s115, %s116
      %p128 = scmp.eq.s32.totalorder %s22, 1
      %p129 = por %p127, %p128
      %p131 = scmp.ne.s32.totalorder %s116, %s130
      %p132 = scmp.eq.s32.totalorder %s22, 0
      %p133 = por %p131, %p132
      %s135 = sadd.s32 %s134, 1
      %p138 = scmp.eq.s32.totalorder %s16, 1
      %p139 = scmp.ne.s32.totalorder %s134, %s136
      %p140 = scmp.eq.s32.totalorder %s16, 0
      %p141 = por %p139, %p140
      %p142 = scmp.ne.s32.totalorder %s134, %s136
      %p143 = scmp.eq.s32.totalorder %s21, 1
      %p144 = por %p142, %p143
      %p145 = scmp.ne.s32.totalorder %s136, %s137
      %p146 = scmp.eq.s32.totalorder %s21, 0
      %p147 = por %p145, %p146
      %p148 = scmp.ne.s32.totalorder %s136, %s137
      %p149 = scmp.eq.s32.totalorder %s22, 1
      %p150 = por %p148, %p149
      %p152 = scmp.ne.s32.totalorder %s137, %s151
      %p153 = scmp.eq.s32.totalorder %s22, 0
      %p154 = por %p152, %p153
      %s156 = sadd.s32 %s155, 1
      %p159 = scmp.eq.s32.totalorder %s16, 1
      %p160 = scmp.ne.s32.totalorder %s155, %s157
      %p161 = scmp.eq.s32.totalorder %s16, 0
      %p162 = por %p160, %p161
      %p163 = scmp.ne.s32.totalorder %s155, %s157
      %p164 = scmp.eq.s32.totalorder %s21, 1
      %p165 = por %p163, %p164
      %p166 = scmp.ne.s32.totalorder %s157, %s158
      %p167 = scmp.eq.s32.totalorder %s21, 0
      %p168 = por %p166, %p167
      %p169 = scmp.ne.s32.totalorder %s157, %s158
      %p170 = scmp.eq.s32.totalorder %s22, 1
      %p171 = por %p169, %p170
      %p173 = scmp.ne.s32.totalorder %s158, %s172
      %p174 = scmp.eq.s32.totalorder %s22, 0
      %p175 = por %p173, %p174
      %s176 = ssub.s32 %s16, %s23
      %p177 = scmp.eq.s32.totalorder %s176, 0
      %s179 = sadd.s32 %s178, 1
      %s180 = scalar_select %p177, %s178, %s179
      %p183 = pneg %p177
      %p184 = scmp.eq.s32.totalorder %s16, 1
      %p185 = por %p183, %p184
      %p186 = scmp.ne.s32.totalorder %s178, %s181
      %p187 = scmp.eq.s32.totalorder %s16, 0
      %p188 = por %p186, %p187
      %p189 = scmp.ne.s32.totalorder %s178, %s181
      %p190 = scmp.eq.s32.totalorder %s21, 1
      %p191 = por %p189, %p190
      %p192 = scmp.ne.s32.totalorder %s181, %s182
      %p193 = scmp.eq.s32.totalorder %s21, 0
      %p194 = por %p192, %p193
      %p195 = scmp.ne.s32.totalorder %s181, %s182
      %p196 = scmp.eq.s32.totalorder %s22, 1
      %p197 = por %p195, %p196
      %p199 = scmp.ne.s32.totalorder %s182, %s198
      %p200 = scmp.eq.s32.totalorder %s22, 0
      %p201 = por %p199, %p200
      %p202 = scmp.le.s32.totalorder 1, %s16
      %p203 = scmp.lt.s32.totalorder %s16, 3
      %p204 = pnand %p202, %p203
      %p205 = pneg %p204
      // Predicated region
      $region9: #{tpu_custom_call.1} parent=5 // pred_check
        _
      $region10: #{tpu_custom_call.1} parent=5 // pred_check_branch
        %207 = sbr.rel (%p204) target = $region12
      $region11: #{tpu_custom_call.1} parent=5 // pred_region
        %s208 = ssub.s32 %s16, 1
        // Predicated region
        $region13: #{tpu_custom_call.1} parent=11 // pred_check
          %p209 = pneg %p63
        $region14: #{tpu_custom_call.1} parent=11 // pred_check_branch
          %211 = sbr.rel (%p209) target = $region16
        $region15: #{tpu_custom_call.1} parent=11 // pred_region
          _
        $region16: #{tpu_custom_call.1} parent=11 // pred_fallthru
          _
        // Predicated region
        $region17: #{tpu_custom_call.1} parent=11 // pred_check
          %p212 = pneg %p84
        $region18: #{tpu_custom_call.1} parent=11 // pred_check_branch
          %214 = sbr.rel (%p212) target = $region20
        $region19: #{tpu_custom_call.1} parent=11 // pred_region
          _
        $region20: #{tpu_custom_call.1} parent=11 // pred_fallthru
          _
        // Predicated region
        $region21: #{tpu_custom_call.1} parent=11 // pred_check
          %p215 = pneg %p105
        $region22: #{tpu_custom_call.1} parent=11 // pred_check_branch
          %217 = sbr.rel (%p215) target = $region24
        $region23: #{tpu_custom_call.1} parent=11 // pred_region
          _
        $region24: #{tpu_custom_call.1} parent=11 // pred_fallthru
          _
        // Predicated region
        $region25: #{tpu_custom_call.1} parent=11 // pred_check
          %p218 = pneg %p126
        $region26: #{tpu_custom_call.1} parent=11 // pred_check_branch
          %220 = sbr.rel (%p218) target = $region28
        $region27: #{tpu_custom_call.1} parent=11 // pred_region
          _
        $region28: #{tpu_custom_call.1} parent=11 // pred_fallthru
          _
        // Predicated region
        $region29: #{tpu_custom_call.1} parent=11 // pred_check
          %p221 = pneg %p147
        $region30: #{tpu_custom_call.1} parent=11 // pred_check_branch
          %223 = sbr.rel (%p221) target = $region32
        $region31: #{tpu_custom_call.1} parent=11 // pred_region
          _
        $region32: #{tpu_custom_call.1} parent=11 // pred_fallthru
          _
        // Predicated region
        $region33: #{tpu_custom_call.1} parent=11 // pred_check
          %p224 = pneg %p168
        $region34: #{tpu_custom_call.1} parent=11 // pred_check_branch
          %226 = sbr.rel (%p224) target = $region36
        $region35: #{tpu_custom_call.1} parent=11 // pred_region
          _
        $region36: #{tpu_custom_call.1} parent=11 // pred_fallthru
          _
      $region12: #{tpu_custom_call.1} parent=5 // pred_fallthru
        _
      %p227 = scmp.lt.s32.totalorder %s16, 2
      // Predicated region
      $region37: #{tpu_custom_call.1} parent=5 // pred_check
        %p228 = pneg %p227
      $region38: #{tpu_custom_call.1} parent=5 // pred_check_branch
        %230 = sbr.rel (%p228) target = $region40
      $region39: #{tpu_custom_call.1} parent=5 // pred_region
        // Predicated region
        $region41: #{tpu_custom_call.1} parent=39 // pred_check
          %p231 = pneg %p36
        $region42: #{tpu_custom_call.1} parent=39 // pred_check_branch
          %233 = sbr.rel (%p231) target = $region44
        $region43: #{tpu_custom_call.1} parent=39 // pred_region
          %s234 = smul.u32 19, %s16
          %p235 = scmp.lt.s32.totalorder %s234, 37
          %s236 = scalar_select %p235, %s234, 37
          %s237 = smul.addr %s236, 8
          %s238 = scalar_lea.vmem %s0, %s237
          %s239 = smul.u32 19, %s16
        $region44: #{tpu_custom_call.1} parent=39 // pred_fallthru
          _
      $region40: #{tpu_custom_call.1} parent=5 // pred_fallthru
        _
      %p240 = scmp.le.s32.totalorder 1, %s16
      %p241 = scmp.lt.s32.totalorder %s16, 3
      %p242 = pnand %p240, %p241
      %p243 = pneg %p242
      // Predicated region
      $region45: #{tpu_custom_call.1} parent=5 // pred_check
        _
      $region46: #{tpu_custom_call.1} parent=5 // pred_check_branch
        %245 = sbr.rel (%p242) target = $region48
      $region47: #{tpu_custom_call.1} parent=5 // pred_region
        %s246 = ssub.s32 %s16, 1
        %s247 = smul.u32 19, %s21
        %p248 = scmp.lt.s32.totalorder %s247, 37
        %s249 = scalar_select %p248, %s247, 37
        %s250 = smul.addr %s249, 8
        %s251 = scalar_lea.vmem %s0, %s250
        %p252 = pneg %p42
        %p253 = pneg %p39
        %p254 = pneg %p63
        %p255 = pneg %p60
        %p256 = pneg %p84
        %p257 = pneg %p81
        %p258 = pneg %p105
        %p259 = pneg %p102
        %p260 = pneg %p126
        %p261 = pneg %p123
        %p262 = pneg %p147
        %p263 = pneg %p144
        %p264 = pneg %p168
        %p265 = pneg %p165
        %p266 = pneg %p194
        %p267 = pneg %p191
        %s268 = sand.u32 %s181, 1
        %s269 = scalar_lea.sflag [#allocation3], %s268
        %s270 = sand.u32 %s181, 1
        %s271 = smul.addr %s270, 152
        %s272 = scalar_lea.vmem [#allocation2], %s271
        %s273 = smul.u32 19, %s21
        %p274 = scmp.lt.s32.totalorder %s273, 37
        %s275 = scalar_select %p274, %s273, 37
        %s276 = smul.addr %s275, 8
        %s277 = scalar_lea.vmem %s0, %s276
        %s278 = smul.u32 19, %s21
        %s279 = smul.u32 19, %s21
        %v280 = vld [vmem:[%s277] sm:$0xff]
        %v281 = vld [vmem:[%s277 + $0x8] sm:$0xff]
        %v282 = vld [vmem:[%s277 + $0x10] sm:$0xff]
        %v283 = vld [vmem:[%s277 + $0x18] sm:$0xff]
        %v284 = vld [vmem:[%s277 + $0x20] sm:$0xff]
        %v285 = vld [vmem:[%s277 + $0x28] sm:$0xff]
        %v286 = vld [vmem:[%s277 + $0x30] sm:$0xff]
        %v287 = vld [vmem:[%s277 + $0x38] sm:$0xff]
        %v288 = vld [vmem:[%s277 + $0x40] sm:$0xff]
        %v289 = vld [vmem:[%s277 + $0x48] sm:$0xff]
        %v290 = vld [vmem:[%s277 + $0x50] sm:$0xff]
        %v291 = vld [vmem:[%s277 + $0x58] sm:$0xff]
        %v292 = vld [vmem:[%s277 + $0x60] sm:$0xff]
        %v293 = vld [vmem:[%s277 + $0x68] sm:$0xff]
        %v294 = vld [vmem:[%s277 + $0x70] sm:$0xff]
        %v295 = vld [vmem:[%s277 + $0x78] sm:$0xff]
        %v296 = vld [vmem:[%s277 + $0x80] sm:$0xff]
        %v297 = vld [vmem:[%s277 + $0x88] sm:$0xff]
        %v298 = vld [vmem:[%s277 + $0x90] sm:$0xff]
        %v299 = vld [vmem:[%s1] sm:$0xff]
        %v300 = vld [vmem:[%s1 + $0x8] sm:$0xff]
        %v301 = vld [vmem:[%s2] sm:$0x1]
        %vm302 = vcmask 130048
        %v303 = vsel %vm302, %v280, 0.0
        %304 = vadd.xlane.f32.xlu0 %v303
        %v305 = vpop.xlane.xlu0 %304
        %v306 = vsel %vm302, %v281, 0.0
        %307 = vadd.xlane.f32.xlu0 %v306
        %v308 = vpop.xlane.xlu0 %307
        %v309 = vsel %vm302, %v282, 0.0
        %310 = vadd.xlane.f32.xlu0 %v309
        %v311 = vpop.xlane.xlu0 %310
        %v312 = vsel %vm302, %v283, 0.0
        %313 = vadd.xlane.f32.xlu0 %v312
        %v314 = vpop.xlane.xlu0 %313
        %v315 = vsel %vm302, %v284, 0.0
        %316 = vadd.xlane.f32.xlu0 %v315
        %v317 = vpop.xlane.xlu0 %316
        %v318 = vsel %vm302, %v285, 0.0
        %319 = vadd.xlane.f32.xlu0 %v318
        %v320 = vpop.xlane.xlu0 %319
        %v321 = vsel %vm302, %v286, 0.0
        %322 = vadd.xlane.f32.xlu0 %v321
        %v323 = vpop.xlane.xlu0 %322
        %v324 = vsel %vm302, %v287, 0.0
        %325 = vadd.xlane.f32.xlu0 %v324
        %v326 = vpop.xlane.xlu0 %325
        %v327 = vsel %vm302, %v288, 0.0
        %328 = vadd.xlane.f32.xlu0 %v327
        %v329 = vpop.xlane.xlu0 %328
        %v330 = vsel %vm302, %v289, 0.0
        %331 = vadd.xlane.f32.xlu0 %v330
        %v332 = vpop.xlane.xlu0 %331
        %v333 = vsel %vm302, %v290, 0.0
        %334 = vadd.xlane.f32.xlu0 %v333
        %v335 = vpop.xlane.xlu0 %334
        %v336 = vsel %vm302, %v291, 0.0
        %337 = vadd.xlane.f32.xlu0 %v336
        %v338 = vpop.xlane.xlu0 %337
        %v339 = vsel %vm302, %v292, 0.0
        %340 = vadd.xlane.f32.xlu0 %v339
        %v341 = vpop.xlane.xlu0 %340
        %v342 = vsel %vm302, %v293, 0.0
        %343 = vadd.xlane.f32.xlu0 %v342
        %v344 = vpop.xlane.xlu0 %343
        %v345 = vsel %vm302, %v294, 0.0
        %346 = vadd.xlane.f32.xlu0 %v345
        %v347 = vpop.xlane.xlu0 %346
        %v348 = vsel %vm302, %v295, 0.0
        %349 = vadd.xlane.f32.xlu0 %v348
        %v350 = vpop.xlane.xlu0 %349
        %v351 = vsel %vm302, %v296, 0.0
        %352 = vadd.xlane.f32.xlu0 %v351
        %v353 = vpop.xlane.xlu0 %352
        %v354 = vsel %vm302, %v297, 0.0
        %355 = vadd.xlane.f32.xlu0 %v354
        %v356 = vpop.xlane.xlu0 %355
        %v357 = vsel %vm302, %v298, 0.0
        %358 = vadd.xlane.f32.xlu0 %v357
        %v359 = vpop.xlane.xlu0 %358
        %v360 = vrcp.pop 16.0
        %v361 = vmul.f32 16.0, %v360
        %v362 = vsub.f32 1.0, %v361
        %v363 = vmul.f32 %v360, %v362
        %v364 = vadd.f32 %v360, %v363
        %vm365 = vweird.f32 %v360
        %v366 = vsel %vm365, %v360, %v364
        %v367 = vmul.f32 %v305, %v366
        %v368 = vmul.f32 %v308, %v366
        %v369 = vmul.f32 %v311, %v366
        %v370 = vmul.f32 %v314, %v366
        %v371 = vmul.f32 %v317, %v366
        %v372 = vmul.f32 %v320, %v366
        %v373 = vmul.f32 %v323, %v366
        %v374 = vmul.f32 %v326, %v366
        %v375 = vmul.f32 %v329, %v366
        %v376 = vmul.f32 %v332, %v366
        %v377 = vmul.f32 %v335, %v366
        %v378 = vmul.f32 %v338, %v366
        %v379 = vmul.f32 %v341, %v366
        %v380 = vmul.f32 %v344, %v366
        %v381 = vmul.f32 %v347, %v366
        %v382 = vmul.f32 %v350, %v366
        %v383 = vmul.f32 %v353, %v366
        %v384 = vmul.f32 %v356, %v366
        %v385 = vmul.f32 %v359, %v366
        %v386 = vmul.f32 %v280, %v280
        %v387 = vmul.f32 %v281, %v281
        %v388 = vmul.f32 %v282, %v282
        %v389 = vmul.f32 %v283, %v283
        %v390 = vmul.f32 %v284, %v284
        %v391 = vmul.f32 %v285, %v285
        %v392 = vmul.f32 %v286, %v286
        %v393 = vmul.f32 %v287, %v287
        %v394 = vmul.f32 %v288, %v288
        %v395 = vmul.f32 %v289, %v289
        %v396 = vmul.f32 %v290, %v290
        %v397 = vmul.f32 %v291, %v291
        %v398 = vmul.f32 %v292, %v292
        %v399 = vmul.f32 %v293, %v293
        %v400 = vmul.f32 %v294, %v294
        %v401 = vmul.f32 %v295, %v295
        %v402 = vmul.f32 %v296, %v296
        %v403 = vmul.f32 %v297, %v297
        %v404 = vmul.f32 %v298, %v298
        %v405 = vsel %vm302, %v386, 0.0
        %406 = vadd.xlane.f32.xlu0 %v405
        %v407 = vpop.xlane.xlu0 %406
        %v408 = vsel %vm302, %v387, 0.0
        %409 = vadd.xlane.f32.xlu0 %v408
        %v410 = vpop.xlane.xlu0 %409
        %v411 = vsel %vm302, %v388, 0.0
        %412 = vadd.xlane.f32.xlu0 %v411
        %v413 = vpop.xlane.xlu0 %412
        %v414 = vsel %vm302, %v389, 0.0
        %415 = vadd.xlane.f32.xlu0 %v414
        %v416 = vpop.xlane.xlu0 %415
        %v417 = vsel %vm302, %v390, 0.0
        %418 = vadd.xlane.f32.xlu0 %v417
        %v419 = vpop.xlane.xlu0 %418
        %v420 = vsel %vm302, %v391, 0.0
        %421 = vadd.xlane.f32.xlu0 %v420
        %v422 = vpop.xlane.xlu0 %421
        %v423 = vsel %vm302, %v392, 0.0
        %424 = vadd.xlane.f32.xlu0 %v423
        %v425 = vpop.xlane.xlu0 %424
        %v426 = vsel %vm302, %v393, 0.0
        %427 = vadd.xlane.f32.xlu0 %v426
        %v428 = vpop.xlane.xlu0 %427
        %v429 = vsel %vm302, %v394, 0.0
        %430 = vadd.xlane.f32.xlu0 %v429
        %v431 = vpop.xlane.xlu0 %430
        %v432 = vsel %vm302, %v395, 0.0
        %433 = vadd.xlane.f32.xlu0 %v432
        %v434 = vpop.xlane.xlu0 %433
        %v435 = vsel %vm302, %v396, 0.0
        %436 = vadd.xlane.f32.xlu0 %v435
        %v437 = vpop.xlane.xlu0 %436
        %v438 = vsel %vm302, %v397, 0.0
        %439 = vadd.xlane.f32.xlu0 %v438
        %v440 = vpop.xlane.xlu0 %439
        %v441 = vsel %vm302, %v398, 0.0
        %442 = vadd.xlane.f32.xlu0 %v441
        %v443 = vpop.xlane.xlu0 %442
        %v444 = vsel %vm302, %v399, 0.0
        %445 = vadd.xlane.f32.xlu0 %v444
        %v446 = vpop.xlane.xlu0 %445
        %v447 = vsel %vm302, %v400, 0.0
        %448 = vadd.xlane.f32.xlu0 %v447
        %v449 = vpop.xlane.xlu0 %448
        %v450 = vsel %vm302, %v401, 0.0
        %451 = vadd.xlane.f32.xlu0 %v450
        %v452 = vpop.xlane.xlu0 %451
        %v453 = vsel %vm302, %v402, 0.0
        %454 = vadd.xlane.f32.xlu0 %v453
        %v455 = vpop.xlane.xlu0 %454
        %v456 = vsel %vm302, %v403, 0.0
        %457 = vadd.xlane.f32.xlu0 %v456
        %v458 = vpop.xlane.xlu0 %457
        %v459 = vsel %vm302, %v404, 0.0
        %460 = vadd.xlane.f32.xlu0 %v459
        %v461 = vpop.xlane.xlu0 %460
        %v462 = vmul.f32 %v407, %v366
        %v463 = vmul.f32 %v410, %v366
        %v464 = vmul.f32 %v413, %v366
        %v465 = vmul.f32 %v416, %v366
        %v466 = vmul.f32 %v419, %v366
        %v467 = vmul.f32 %v422, %v366
        %v468 = vmul.f32 %v425, %v366
        %v469 = vmul.f32 %v428, %v366
        %v470 = vmul.f32 %v431, %v366
        %v471 = vmul.f32 %v434, %v366
        %v472 = vmul.f32 %v437, %v366
        %v473 = vmul.f32 %v440, %v366
        %v474 = vmul.f32 %v443, %v366
        %v475 = vmul.f32 %v446, %v366
        %v476 = vmul.f32 %v449, %v366
        %v477 = vmul.f32 %v452, %v366
        %v478 = vmul.f32 %v455, %v366
        %v479 = vmul.f32 %v458, %v366
        %v480 = vmul.f32 %v461, %v366
        %v481 = vmul.f32 %v367, %v367
        %v482 = vmul.f32 %v368, %v368
        %v483 = vmul.f32 %v369, %v369
        %v484 = vmul.f32 %v370, %v370
        %v485 = vmul.f32 %v371, %v371
        %v486 = vmul.f32 %v372, %v372
        %v487 = vmul.f32 %v373, %v373
        %v488 = vmul.f32 %v374, %v374
        %v489 = vmul.f32 %v375, %v375
        %v490 = vmul.f32 %v376, %v376
        %v491 = vmul.f32 %v377, %v377
        %v492 = vmul.f32 %v378, %v378
        %v493 = vmul.f32 %v379, %v379
        %v494 = vmul.f32 %v380, %v380
        %v495 = vmul.f32 %v381, %v381
        %v496 = vmul.f32 %v382, %v382
        %v497 = vmul.f32 %v383, %v383
        %v498 = vmul.f32 %v384, %v384
        %v499 = vmul.f32 %v385, %v385
        %v500 = vsub.f32 %v462, %v481
        %v501 = vsub.f32 %v463, %v482
        %v502 = vsub.f32 %v464, %v483
        %v503 = vsub.f32 %v465, %v484
        %v504 = vsub.f32 %v466, %v485
        %v505 = vsub.f32 %v467, %v486
        %v506 = vsub.f32 %v468, %v487
        %v507 = vsub.f32 %v469, %v488
        %v508 = vsub.f32 %v470, %v489
        %v509 = vsub.f32 %v471, %v490
        %v510 = vsub.f32 %v472, %v491
        %v511 = vsub.f32 %v473, %v492
        %v512 = vsub.f32 %v474, %v493
        %v513 = vsub.f32 %v475, %v494
        %v514 = vsub.f32 %v476, %v495
        %v515 = vsub.f32 %v477, %v496
        %v516 = vsub.f32 %v478, %v497
        %v517 = vsub.f32 %v479, %v498
        %v518 = vsub.f32 %v480, %v499
        %v519 = vsub.f32 %v280, %v367
        %v520 = vsub.f32 %v281, %v368
        %v521 = vsub.f32 %v282, %v369
        %v522 = vsub.f32 %v283, %v370
        %v523 = vsub.f32 %v284, %v371
        %v524 = vsub.f32 %v285, %v372
        %v525 = vsub.f32 %v286, %v373
        %v526 = vsub.f32 %v287, %v374
        %v527 = vsub.f32 %v288, %v375
        %v528 = vsub.f32 %v289, %v376
        %v529 = vsub.f32 %v290, %v377
        %v530 = vsub.f32 %v291, %v378
        %v531 = vsub.f32 %v292, %v379
        %v532 = vsub.f32 %v293, %v380
        %v533 = vsub.f32 %v294, %v381
        %v534 = vsub.f32 %v295, %v382
        %v535 = vsub.f32 %v296, %v383
        %v536 = vsub.f32 %v297, %v384
        %v537 = vsub.f32 %v298, %v385
        %v538 = vadd.f32 %v500, 1e-05
        %v539 = vadd.f32 %v501, 1e-05
        %v540 = vadd.f32 %v502, 1e-05
        %v541 = vadd.f32 %v503, 1e-05
        %v542 = vadd.f32 %v504, 1e-05
        %v543 = vadd.f32 %v505, 1e-05
        %v544 = vadd.f32 %v506, 1e-05
        %v545 = vadd.f32 %v507, 1e-05
        %v546 = vadd.f32 %v508, 1e-05
        %v547 = vadd.f32 %v509, 1e-05
        %v548 = vadd.f32 %v510, 1e-05
        %v549 = vadd.f32 %v511, 1e-05
        %v550 = vadd.f32 %v512, 1e-05
        %v551 = vadd.f32 %v513, 1e-05
        %v552 = vadd.f32 %v514, 1e-05
        %v553 = vadd.f32 %v515, 1e-05
        %v554 = vadd.f32 %v516, 1e-05
        %v555 = vadd.f32 %v517, 1e-05
        %v556 = vadd.f32 %v518, 1e-05
        %v557 = vrsqrt.pop %v538
        %v558 = vmul.f32 %v557, %v538
        %v559 = vmul.f32 %v558, %v557
        %v560 = vmul.f32 0.5, %v559
        %v561 = vsub.f32 1.5, %v560
        %v562 = vmul.f32 %v557, %v561
        %vm563 = vweird.f32 %v538
        %vm564 = vweird.f32 %v557
        %vm565 = vmor %vm563, %vm564
        %v566 = vsel %vm565, %v557, %v562
        %v567 = vrsqrt.pop %v539
        %v568 = vmul.f32 %v567, %v539
        %v569 = vmul.f32 %v568, %v567
        %v570 = vmul.f32 0.5, %v569
        %v571 = vsub.f32 1.5, %v570
        %v572 = vmul.f32 %v567, %v571
        %vm573 = vweird.f32 %v539
        %vm574 = vweird.f32 %v567
        %vm575 = vmor %vm573, %vm574
        %v576 = vsel %vm575, %v567, %v572
        %v577 = vrsqrt.pop %v540
        %v578 = vmul.f32 %v577, %v540
        %v579 = vmul.f32 %v578, %v577
        %v580 = vmul.f32 0.5, %v579
        %v581 = vsub.f32 1.5, %v580
        %v582 = vmul.f32 %v577, %v581
        %vm583 = vweird.f32 %v540
        %vm584 = vweird.f32 %v577
        %vm585 = vmor %vm583, %vm584
        %v586 = vsel %vm585, %v577, %v582
        %v587 = vrsqrt.pop %v541
        %v588 = vmul.f32 %v587, %v541
        %v589 = vmul.f32 %v588, %v587
        %v590 = vmul.f32 0.5, %v589
        %v591 = vsub.f32 1.5, %v590
        %v592 = vmul.f32 %v587, %v591
        %vm593 = vweird.f32 %v541
        %vm594 = vweird.f32 %v587
        %vm595 = vmor %vm593, %vm594
        %v596 = vsel %vm595, %v587, %v592
        %v597 = vrsqrt.pop %v542
        %v598 = vmul.f32 %v597, %v542
        %v599 = vmul.f32 %v598, %v597
        %v600 = vmul.f32 0.5, %v599
        %v601 = vsub.f32 1.5, %v600
        %v602 = vmul.f32 %v597, %v601
        %vm603 = vweird.f32 %v542
        %vm604 = vweird.f32 %v597
        %vm605 = vmor %vm603, %vm604
        %v606 = vsel %vm605, %v597, %v602
        %v607 = vrsqrt.pop %v543
        %v608 = vmul.f32 %v607, %v543
        %v609 = vmul.f32 %v608, %v607
        %v610 = vmul.f32 0.5, %v609
        %v611 = vsub.f32 1.5, %v610
        %v612 = vmul.f32 %v607, %v611
        %vm613 = vweird.f32 %v543
        %vm614 = vweird.f32 %v607
        %vm615 = vmor %vm613, %vm614
        %v616 = vsel %vm615, %v607, %v612
        %v617 = vrsqrt.pop %v544
        %v618 = vmul.f32 %v617, %v544
        %v619 = vmul.f32 %v618, %v617
        %v620 = vmul.f32 0.5, %v619
        %v621 = vsub.f32 1.5, %v620
        %v622 = vmul.f32 %v617, %v621
        %vm623 = vweird.f32 %v544
        %vm624 = vweird.f32 %v617
        %vm625 = vmor %vm623, %vm624
        %v626 = vsel %vm625, %v617, %v622
        %v627 = vrsqrt.pop %v545
        %v628 = vmul.f32 %v627, %v545
        %v629 = vmul.f32 %v628, %v627
        %v630 = vmul.f32 0.5, %v629
        %v631 = vsub.f32 1.5, %v630
        %v632 = vmul.f32 %v627, %v631
        %vm633 = vweird.f32 %v545
        %vm634 = vweird.f32 %v627
        %vm635 = vmor %vm633, %vm634
        %v636 = vsel %vm635, %v627, %v632
        %v637 = vrsqrt.pop %v546
        %v638 = vmul.f32 %v637, %v546
        %v639 = vmul.f32 %v638, %v637
        %v640 = vmul.f32 0.5, %v639
        %v641 = vsub.f32 1.5, %v640
        %v642 = vmul.f32 %v637, %v641
        %vm643 = vweird.f32 %v546
        %vm644 = vweird.f32 %v637
        %vm645 = vmor %vm643, %vm644
        %v646 = vsel %vm645, %v637, %v642
        %v647 = vrsqrt.pop %v547
        %v648 = vmul.f32 %v647, %v547
        %v649 = vmul.f32 %v648, %v647
        %v650 = vmul.f32 0.5, %v649
        %v651 = vsub.f32 1.5, %v650
        %v652 = vmul.f32 %v647, %v651
        %vm653 = vweird.f32 %v547
        %vm654 = vweird.f32 %v647
        %vm655 = vmor %vm653, %vm654
        %v656 = vsel %vm655, %v647, %v652
        %v657 = vrsqrt.pop %v548
        %v658 = vmul.f32 %v657, %v548
        %v659 = vmul.f32 %v658, %v657
        %v660 = vmul.f32 0.5, %v659
        %v661 = vsub.f32 1.5, %v660
        %v662 = vmul.f32 %v657, %v661
        %vm663 = vweird.f32 %v548
        %vm664 = vweird.f32 %v657
        %vm665 = vmor %vm663, %vm664
        %v666 = vsel %vm665, %v657, %v662
        %v667 = vrsqrt.pop %v549
        %v668 = vmul.f32 %v667, %v549
        %v669 = vmul.f32 %v668, %v667
        %v670 = vmul.f32 0.5, %v669
        %v671 = vsub.f32 1.5, %v670
        %v672 = vmul.f32 %v667, %v671
        %vm673 = vweird.f32 %v549
        %vm674 = vweird.f32 %v667
        %vm675 = vmor %vm673, %vm674
        %v676 = vsel %vm675, %v667, %v672
        %v677 = vrsqrt.pop %v550
        %v678 = vmul.f32 %v677, %v550
        %v679 = vmul.f32 %v678, %v677
        %v680 = vmul.f32 0.5, %v679
        %v681 = vsub.f32 1.5, %v680
        %v682 = vmul.f32 %v677, %v681
        %vm683 = vweird.f32 %v550
        %vm684 = vweird.f32 %v677
        %vm685 = vmor %vm683, %vm684
        %v686 = vsel %vm685, %v677, %v682
        %v687 = vrsqrt.pop %v551
        %v688 = vmul.f32 %v687, %v551
        %v689 = vmul.f32 %v688, %v687
        %v690 = vmul.f32 0.5, %v689
        %v691 = vsub.f32 1.5, %v690
        %v692 = vmul.f32 %v687, %v691
        %vm693 = vweird.f32 %v551
        %vm694 = vweird.f32 %v687
        %vm695 = vmor %vm693, %vm694
        %v696 = vsel %vm695, %v687, %v692
        %v697 = vrsqrt.pop %v552
        %v698 = vmul.f32 %v697, %v552
        %v699 = vmul.f32 %v698, %v697
        %v700 = vmul.f32 0.5, %v699
        %v701 = vsub.f32 1.5, %v700
        %v702 = vmul.f32 %v697, %v701
        %vm703 = vweird.f32 %v552
        %vm704 = vweird.f32 %v697
        %vm705 = vmor %vm703, %vm704
        %v706 = vsel %vm705, %v697, %v702
        %v707 = vrsqrt.pop %v553
        %v708 = vmul.f32 %v707, %v553
        %v709 = vmul.f32 %v708, %v707
        %v710 = vmul.f32 0.5, %v709
        %v711 = vsub.f32 1.5, %v710
        %v712 = vmul.f32 %v707, %v711
        %vm713 = vweird.f32 %v553
        %vm714 = vweird.f32 %v707
        %vm715 = vmor %vm713, %vm714
        %v716 = vsel %vm715, %v707, %v712
        %v717 = vrsqrt.pop %v554
        %v718 = vmul.f32 %v717, %v554
        %v719 = vmul.f32 %v718, %v717
        %v720 = vmul.f32 0.5, %v719
        %v721 = vsub.f32 1.5, %v720
        %v722 = vmul.f32 %v717, %v721
        %vm723 = vweird.f32 %v554
        %vm724 = vweird.f32 %v717
        %vm725 = vmor %vm723, %vm724
        %v726 = vsel %vm725, %v717, %v722
        %v727 = vrsqrt.pop %v555
        %v728 = vmul.f32 %v727, %v555
        %v729 = vmul.f32 %v728, %v727
        %v730 = vmul.f32 0.5, %v729
        %v731 = vsub.f32 1.5, %v730
        %v732 = vmul.f32 %v727, %v731
        %vm733 = vweird.f32 %v555
        %vm734 = vweird.f32 %v727
        %vm735 = vmor %vm733, %vm734
        %v736 = vsel %vm735, %v727, %v732
        %v737 = vrsqrt.pop %v556
        %v738 = vmul.f32 %v737, %v556
        %v739 = vmul.f32 %v738, %v737
        %v740 = vmul.f32 0.5, %v739
        %v741 = vsub.f32 1.5, %v740
        %v742 = vmul.f32 %v737, %v741
        %vm743 = vweird.f32 %v556
        %vm744 = vweird.f32 %v737
        %vm745 = vmor %vm743, %vm744
        %v746 = vsel %vm745, %v737, %v742
        %v747 = vmul.f32 %v519, %v566
        %v748 = vmul.f32 %v520, %v576
        %v749 = vmul.f32 %v521, %v586
        %v750 = vmul.f32 %v522, %v596
        %v751 = vmul.f32 %v523, %v606
        %v752 = vmul.f32 %v524, %v616
        %v753 = vmul.f32 %v525, %v626
        %v754 = vmul.f32 %v526, %v636
        %v755 = vmul.f32 %v527, %v646
        %v756 = vmul.f32 %v528, %v656
        %v757 = vmul.f32 %v529, %v666
        %v758 = vmul.f32 %v530, %v676
        %v759 = vmul.f32 %v531, %v686
        %v760 = vmul.f32 %v532, %v696
        %v761 = vmul.f32 %v533, %v706
        %v762 = vmul.f32 %v534, %v716
        %v763 = vmul.f32 %v535, %v726
        %v764 = vmul.f32 %v536, %v736
        %v765 = vmul.f32 %v537, %v746
        %v767 = vperm.slane %v301, 0
        %v770 = vsel %vm302, %v747, 0
        %v773 = vsel %vm302, %v748, 0
        %v776 = vsel %vm302, %v749, 0
        %v779 = vsel %vm302, %v750, 0
        %v782 = vsel %vm302, %v751, 0
        %v785 = vsel %vm302, %v752, 0
        %v788 = vsel %vm302, %v753, 0
        %v791 = vsel %vm302, %v754, 0
        %v794 = vsel %vm302, %v755, 0
        %v797 = vsel %vm302, %v756, 0
        %v800 = vsel %vm302, %v757, 0
        %v803 = vsel %vm302, %v758, 0
        %v806 = vsel %vm302, %v759, 0
        %v809 = vsel %vm302, %v760, 0
        %v812 = vsel %vm302, %v761, 0
        %v815 = vsel %vm302, %v762, 0
        %v818 = vsel %vm302, %v763, 0
        %v821 = vsel %vm302, %v764, 0
        %v824 = vsel %vm302, %v765, 0
        %826 = vmatpush.msra.mxu0 0.0
        %827 = vmatpush.msra.mxu0 0.0
        %828 = vmatpush.msra.mxu0 0.0
        %829 = vmatpush.msra.mxu0 0.0
        %830 = vmatpush.msra.mxu0 0.0
        %831 = vmatpush.msra.mxu0 0.0
        %832 = vmatpush.msra.mxu0 0.0
        %833 = vmatpush.msra.mxu0 0.0
        %834 = vmatpush.msra.mxu0 0.0
        %835 = vmatpush.msra.mxu0 0.0
        %836 = vmatpush.msra.mxu0 0.0
        %837 = vmatpush.msra.mxu0 0.0
        %838 = vmatpush.msra.mxu0 0.0
        %839 = vmatpush.msra.mxu0 0.0
        %840 = vmatpush.msra.mxu0 %v300
        %841 = vmatpush.msra.mxu0 %v299
        %842 = vmatmul.f32.gmra.mxu0 %v770
        %v843 = vpop.f32.mrf.mxu0
        %v844 = vadd.f32 %v767, %v843
        %845 = vmatmul.f32.gmra.mxu0 %v773
        %v846 = vpop.f32.mrf.mxu0
        %v847 = vadd.f32 %v767, %v846
        %848 = vmatmul.f32.gmra.mxu0 %v776
        %v849 = vpop.f32.mrf.mxu0
        %v850 = vadd.f32 %v767, %v849
        %851 = vmatmul.f32.gmra.mxu0 %v779
        %v852 = vpop.f32.mrf.mxu0
        %v853 = vadd.f32 %v767, %v852
        %854 = vmatmul.f32.gmra.mxu0 %v782
        %v855 = vpop.f32.mrf.mxu0
        %v856 = vadd.f32 %v767, %v855
        %857 = vmatmul.f32.gmra.mxu0 %v785
        %v858 = vpop.f32.mrf.mxu0
        %v859 = vadd.f32 %v767, %v858
        %860 = vmatmul.f32.gmra.mxu0 %v788
        %v861 = vpop.f32.mrf.mxu0
        %v862 = vadd.f32 %v767, %v861
        %863 = vmatmul.f32.gmra.mxu0 %v791
        %v864 = vpop.f32.mrf.mxu0
        %v865 = vadd.f32 %v767, %v864
        %866 = vmatmul.f32.gmra.mxu0 %v794
        %v867 = vpop.f32.mrf.mxu0
        %v868 = vadd.f32 %v767, %v867
        %869 = vmatmul.f32.gmra.mxu0 %v797
        %v870 = vpop.f32.mrf.mxu0
        %v871 = vadd.f32 %v767, %v870
        %872 = vmatmul.f32.gmra.mxu0 %v800
        %v873 = vpop.f32.mrf.mxu0
        %v874 = vadd.f32 %v767, %v873
        %875 = vmatmul.f32.gmra.mxu0 %v803
        %v876 = vpop.f32.mrf.mxu0
        %v877 = vadd.f32 %v767, %v876
        %878 = vmatmul.f32.gmra.mxu0 %v806
        %v879 = vpop.f32.mrf.mxu0
        %v880 = vadd.f32 %v767, %v879
        %881 = vmatmul.f32.gmra.mxu0 %v809
        %v882 = vpop.f32.mrf.mxu0
        %v883 = vadd.f32 %v767, %v882
        %884 = vmatmul.f32.gmra.mxu0 %v812
        %v885 = vpop.f32.mrf.mxu0
        %v886 = vadd.f32 %v767, %v885
        %887 = vmatmul.f32.gmra.mxu0 %v815
        %v888 = vpop.f32.mrf.mxu0
        %v889 = vadd.f32 %v767, %v888
        %890 = vmatmul.f32.gmra.mxu0 %v818
        %v891 = vpop.f32.mrf.mxu0
        %v892 = vadd.f32 %v767, %v891
        %893 = vmatmul.f32.gmra.mxu0 %v821
        %v894 = vpop.f32.mrf.mxu0
        %v895 = vadd.f32 %v767, %v894
        %896 = vmatmul.f32.gmra.mxu0 %v824
        %v897 = vpop.f32.mrf.mxu0
        %v898 = vadd.f32 %v767, %v897
        %899 = vdwg.mxu0
        %v900 = vmax.f32 %v844, 0.0
        %v901 = vmax.f32 %v847, 0.0
        %v902 = vmax.f32 %v850, 0.0
        %v903 = vmax.f32 %v853, 0.0
        %v904 = vmax.f32 %v856, 0.0
        %v905 = vmax.f32 %v859, 0.0
        %v906 = vmax.f32 %v862, 0.0
        %v907 = vmax.f32 %v865, 0.0
        %v908 = vmax.f32 %v868, 0.0
        %v909 = vmax.f32 %v871, 0.0
        %v910 = vmax.f32 %v874, 0.0
        %v911 = vmax.f32 %v877, 0.0
        %v912 = vmax.f32 %v880, 0.0
        %v913 = vmax.f32 %v883, 0.0
        %v914 = vmax.f32 %v886, 0.0
        %v915 = vmax.f32 %v889, 0.0
        %v916 = vmax.f32 %v892, 0.0
        %v917 = vmax.f32 %v895, 0.0
        %v918 = vmax.f32 %v898, 0.0
        %v919 = vld [vmem:[%s3] sm:$0xff]
        %v920 = vld [vmem:[%s3 + $0x8] sm:$0xff]
        %v921 = vld [vmem:[%s3 + $0x10] sm:$0xff]
        %v922 = vld [vmem:[%s3 + $0x18] sm:$0xff]
        %v923 = vld [vmem:[%s4] sm:$0x1]
        %vm924 = vcmask 261120
        %v925 = vsel %vm924, %v900, 0.0
        %926 = vadd.xlane.f32.xlu0 %v925
        %v927 = vpop.xlane.xlu0 %926
        %v928 = vsel %vm924, %v901, 0.0
        %929 = vadd.xlane.f32.xlu0 %v928
        %v930 = vpop.xlane.xlu0 %929
        %v931 = vsel %vm924, %v902, 0.0
        %932 = vadd.xlane.f32.xlu0 %v931
        %v933 = vpop.xlane.xlu0 %932
        %v934 = vsel %vm924, %v903, 0.0
        %935 = vadd.xlane.f32.xlu0 %v934
        %v936 = vpop.xlane.xlu0 %935
        %v937 = vsel %vm924, %v904, 0.0
        %938 = vadd.xlane.f32.xlu0 %v937
        %v939 = vpop.xlane.xlu0 %938
        %v940 = vsel %vm924, %v905, 0.0
        %941 = vadd.xlane.f32.xlu0 %v940
        %v942 = vpop.xlane.xlu0 %941
        %v943 = vsel %vm924, %v906, 0.0
        %944 = vadd.xlane.f32.xlu0 %v943
        %v945 = vpop.xlane.xlu0 %944
        %v946 = vsel %vm924, %v907, 0.0
        %947 = vadd.xlane.f32.xlu0 %v946
        %v948 = vpop.xlane.xlu0 %947
        %v949 = vsel %vm924, %v908, 0.0
        %950 = vadd.xlane.f32.xlu0 %v949
        %v951 = vpop.xlane.xlu0 %950
        %v952 = vsel %vm924, %v909, 0.0
        %953 = vadd.xlane.f32.xlu0 %v952
        %v954 = vpop.xlane.xlu0 %953
        %v955 = vsel %vm924, %v910, 0.0
        %956 = vadd.xlane.f32.xlu0 %v955
        %v957 = vpop.xlane.xlu0 %956
        %v958 = vsel %vm924, %v911, 0.0
        %959 = vadd.xlane.f32.xlu0 %v958
        %v960 = vpop.xlane.xlu0 %959
        %v961 = vsel %vm924, %v912, 0.0
        %962 = vadd.xlane.f32.xlu0 %v961
        %v963 = vpop.xlane.xlu0 %962
        %v964 = vsel %vm924, %v913, 0.0
        %965 = vadd.xlane.f32.xlu0 %v964
        %v966 = vpop.xlane.xlu0 %965
        %v967 = vsel %vm924, %v914, 0.0
        %968 = vadd.xlane.f32.xlu0 %v967
        %v969 = vpop.xlane.xlu0 %968
        %v970 = vsel %vm924, %v915, 0.0
        %971 = vadd.xlane.f32.xlu0 %v970
        %v972 = vpop.xlane.xlu0 %971
        %v973 = vsel %vm924, %v916, 0.0
        %974 = vadd.xlane.f32.xlu0 %v973
        %v975 = vpop.xlane.xlu0 %974
        %v976 = vsel %vm924, %v917, 0.0
        %977 = vadd.xlane.f32.xlu0 %v976
        %v978 = vpop.xlane.xlu0 %977
        %v979 = vsel %vm924, %v918, 0.0
        %980 = vadd.xlane.f32.xlu0 %v979
        %v981 = vpop.xlane.xlu0 %980
        %v982 = vrcp.pop 32.0
        %v983 = vmul.f32 32.0, %v982
        %v984 = vsub.f32 1.0, %v983
        %v985 = vmul.f32 %v982, %v984
        %v986 = vadd.f32 %v982, %v985
        %vm987 = vweird.f32 %v982
        %v988 = vsel %vm987, %v982, %v986
        %v989 = vmul.f32 %v927, %v988
        %v990 = vmul.f32 %v930, %v988
        %v991 = vmul.f32 %v933, %v988
        %v992 = vmul.f32 %v936, %v988
        %v993 = vmul.f32 %v939, %v988
        %v994 = vmul.f32 %v942, %v988
        %v995 = vmul.f32 %v945, %v988
        %v996 = vmul.f32 %v948, %v988
        %v997 = vmul.f32 %v951, %v988
        %v998 = vmul.f32 %v954, %v988
        %v999 = vmul.f32 %v957, %v988
        %v1000 = vmul.f32 %v960, %v988
        %v1001 = vmul.f32 %v963, %v988
        %v1002 = vmul.f32 %v966, %v988
        %v1003 = vmul.f32 %v969, %v988
        %v1004 = vmul.f32 %v972, %v988
        %v1005 = vmul.f32 %v975, %v988
        %v1006 = vmul.f32 %v978, %v988
        %v1007 = vmul.f32 %v981, %v988
        %v1008 = vmul.f32 %v900, %v900
        %v1009 = vmul.f32 %v901, %v901
        %v1010 = vmul.f32 %v902, %v902
        %v1011 = vmul.f32 %v903, %v903
        %v1012 = vmul.f32 %v904, %v904
        %v1013 = vmul.f32 %v905, %v905
        %v1014 = vmul.f32 %v906, %v906
        %v1015 = vmul.f32 %v907, %v907
        %v1016 = vmul.f32 %v908, %v908
        %v1017 = vmul.f32 %v909, %v909
        %v1018 = vmul.f32 %v910, %v910
        %v1019 = vmul.f32 %v911, %v911
        %v1020 = vmul.f32 %v912, %v912
        %v1021 = vmul.f32 %v913, %v913
        %v1022 = vmul.f32 %v914, %v914
        %v1023 = vmul.f32 %v915, %v915
        %v1024 = vmul.f32 %v916, %v916
        %v1025 = vmul.f32 %v917, %v917
        %v1026 = vmul.f32 %v918, %v918
        %v1027 = vsel %vm924, %v1008, 0.0
        %1028 = vadd.xlane.f32.xlu0 %v1027
        %v1029 = vpop.xlane.xlu0 %1028
        %v1030 = vsel %vm924, %v1009, 0.0
        %1031 = vadd.xlane.f32.xlu0 %v1030
        %v1032 = vpop.xlane.xlu0 %1031
        %v1033 = vsel %vm924, %v1010, 0.0
        %1034 = vadd.xlane.f32.xlu0 %v1033
        %v1035 = vpop.xlane.xlu0 %1034
        %v1036 = vsel %vm924, %v1011, 0.0
        %1037 = vadd.xlane.f32.xlu0 %v1036
        %v1038 = vpop.xlane.xlu0 %1037
        %v1039 = vsel %vm924, %v1012, 0.0
        %1040 = vadd.xlane.f32.xlu0 %v1039
        %v1041 = vpop.xlane.xlu0 %1040
        %v1042 = vsel %vm924, %v1013, 0.0
        %1043 = vadd.xlane.f32.xlu0 %v1042
        %v1044 = vpop.xlane.xlu0 %1043
        %v1045 = vsel %vm924, %v1014, 0.0
        %1046 = vadd.xlane.f32.xlu0 %v1045
        %v1047 = vpop.xlane.xlu0 %1046
        %v1048 = vsel %vm924, %v1015, 0.0
        %1049 = vadd.xlane.f32.xlu0 %v1048
        %v1050 = vpop.xlane.xlu0 %1049
        %v1051 = vsel %vm924, %v1016, 0.0
        %1052 = vadd.xlane.f32.xlu0 %v1051
        %v1053 = vpop.xlane.xlu0 %1052
        %v1054 = vsel %vm924, %v1017, 0.0
        %1055 = vadd.xlane.f32.xlu0 %v1054
        %v1056 = vpop.xlane.xlu0 %1055
        %v1057 = vsel %vm924, %v1018, 0.0
        %1058 = vadd.xlane.f32.xlu0 %v1057
        %v1059 = vpop.xlane.xlu0 %1058
        %v1060 = vsel %vm924, %v1019, 0.0
        %1061 = vadd.xlane.f32.xlu0 %v1060
        %v1062 = vpop.xlane.xlu0 %1061
        %v1063 = vsel %vm924, %v1020, 0.0
        %1064 = vadd.xlane.f32.xlu0 %v1063
        %v1065 = vpop.xlane.xlu0 %1064
        %v1066 = vsel %vm924, %v1021, 0.0
        %1067 = vadd.xlane.f32.xlu0 %v1066
        %v1068 = vpop.xlane.xlu0 %1067
        %v1069 = vsel %vm924, %v1022, 0.0
        %1070 = vadd.xlane.f32.xlu0 %v1069
        %v1071 = vpop.xlane.xlu0 %1070
        %v1072 = vsel %vm924, %v1023, 0.0
        %1073 = vadd.xlane.f32.xlu0 %v1072
        %v1074 = vpop.xlane.xlu0 %1073
        %v1075 = vsel %vm924, %v1024, 0.0
        %1076 = vadd.xlane.f32.xlu0 %v1075
        %v1077 = vpop.xlane.xlu0 %1076
        %v1078 = vsel %vm924, %v1025, 0.0
        %1079 = vadd.xlane.f32.xlu0 %v1078
        %v1080 = vpop.xlane.xlu0 %1079
        %v1081 = vsel %vm924, %v1026, 0.0
        %1082 = vadd.xlane.f32.xlu0 %v1081
        %v1083 = vpop.xlane.xlu0 %1082
        %v1084 = vmul.f32 %v1029, %v988
        %v1085 = vmul.f32 %v1032, %v988
        %v1086 = vmul.f32 %v1035, %v988
        %v1087 = vmul.f32 %v1038, %v988
        %v1088 = vmul.f32 %v1041, %v988
        %v1089 = vmul.f32 %v1044, %v988
        %v1090 = vmul.f32 %v1047, %v988
        %v1091 = vmul.f32 %v1050, %v988
        %v1092 = vmul.f32 %v1053, %v988
        %v1093 = vmul.f32 %v1056, %v988
        %v1094 = vmul.f32 %v1059, %v988
        %v1095 = vmul.f32 %v1062, %v988
        %v1096 = vmul.f32 %v1065, %v988
        %v1097 = vmul.f32 %v1068, %v988
        %v1098 = vmul.f32 %v1071, %v988
        %v1099 = vmul.f32 %v1074, %v988
        %v1100 = vmul.f32 %v1077, %v988
        %v1101 = vmul.f32 %v1080, %v988
        %v1102 = vmul.f32 %v1083, %v988
        %v1103 = vmul.f32 %v989, %v989
        %v1104 = vmul.f32 %v990, %v990
        %v1105 = vmul.f32 %v991, %v991
        %v1106 = vmul.f32 %v992, %v992
        %v1107 = vmul.f32 %v993, %v993
        %v1108 = vmul.f32 %v994, %v994
        %v1109 = vmul.f32 %v995, %v995
        %v1110 = vmul.f32 %v996, %v996
        %v1111 = vmul.f32 %v997, %v997
        %v1112 = vmul.f32 %v998, %v998
        %v1113 = vmul.f32 %v999, %v999
        %v1114 = vmul.f32 %v1000, %v1000
        %v1115 = vmul.f32 %v1001, %v1001
        %v1116 = vmul.f32 %v1002, %v1002
        %v1117 = vmul.f32 %v1003, %v1003
        %v1118 = vmul.f32 %v1004, %v1004
        %v1119 = vmul.f32 %v1005, %v1005
        %v1120 = vmul.f32 %v1006, %v1006
        %v1121 = vmul.f32 %v1007, %v1007
        %v1122 = vsub.f32 %v1084, %v1103
        %v1123 = vsub.f32 %v1085, %v1104
        %v1124 = vsub.f32 %v1086, %v1105
        %v1125 = vsub.f32 %v1087, %v1106
        %v1126 = vsub.f32 %v1088, %v1107
        %v1127 = vsub.f32 %v1089, %v1108
        %v1128 = vsub.f32 %v1090, %v1109
        %v1129 = vsub.f32 %v1091, %v1110
        %v1130 = vsub.f32 %v1092, %v1111
        %v1131 = vsub.f32 %v1093, %v1112
        %v1132 = vsub.f32 %v1094, %v1113
        %v1133 = vsub.f32 %v1095, %v1114
        %v1134 = vsub.f32 %v1096, %v1115
        %v1135 = vsub.f32 %v1097, %v1116
        %v1136 = vsub.f32 %v1098, %v1117
        %v1137 = vsub.f32 %v1099, %v1118
        %v1138 = vsub.f32 %v1100, %v1119
        %v1139 = vsub.f32 %v1101, %v1120
        %v1140 = vsub.f32 %v1102, %v1121
        %v1141 = vsub.f32 %v900, %v989
        %v1142 = vsub.f32 %v901, %v990
        %v1143 = vsub.f32 %v902, %v991
        %v1144 = vsub.f32 %v903, %v992
        %v1145 = vsub.f32 %v904, %v993
        %v1146 = vsub.f32 %v905, %v994
        %v1147 = vsub.f32 %v906, %v995
        %v1148 = vsub.f32 %v907, %v996
        %v1149 = vsub.f32 %v908, %v997
        %v1150 = vsub.f32 %v909, %v998
        %v1151 = vsub.f32 %v910, %v999
        %v1152 = vsub.f32 %v911, %v1000
        %v1153 = vsub.f32 %v912, %v1001
        %v1154 = vsub.f32 %v913, %v1002
        %v1155 = vsub.f32 %v914, %v1003
        %v1156 = vsub.f32 %v915, %v1004
        %v1157 = vsub.f32 %v916, %v1005
        %v1158 = vsub.f32 %v917, %v1006
        %v1159 = vsub.f32 %v918, %v1007
        %v1160 = vadd.f32 %v1122, 1e-05
        %v1161 = vadd.f32 %v1123, 1e-05
        %v1162 = vadd.f32 %v1124, 1e-05
        %v1163 = vadd.f32 %v1125, 1e-05
        %v1164 = vadd.f32 %v1126, 1e-05
        %v1165 = vadd.f32 %v1127, 1e-05
        %v1166 = vadd.f32 %v1128, 1e-05
        %v1167 = vadd.f32 %v1129, 1e-05
        %v1168 = vadd.f32 %v1130, 1e-05
        %v1169 = vadd.f32 %v1131, 1e-05
        %v1170 = vadd.f32 %v1132, 1e-05
        %v1171 = vadd.f32 %v1133, 1e-05
        %v1172 = vadd.f32 %v1134, 1e-05
        %v1173 = vadd.f32 %v1135, 1e-05
        %v1174 = vadd.f32 %v1136, 1e-05
        %v1175 = vadd.f32 %v1137, 1e-05
        %v1176 = vadd.f32 %v1138, 1e-05
        %v1177 = vadd.f32 %v1139, 1e-05
        %v1178 = vadd.f32 %v1140, 1e-05
        %v1179 = vrsqrt.pop %v1160
        %v1180 = vmul.f32 %v1179, %v1160
        %v1181 = vmul.f32 %v1180, %v1179
        %v1182 = vmul.f32 0.5, %v1181
        %v1183 = vsub.f32 1.5, %v1182
        %v1184 = vmul.f32 %v1179, %v1183
        %vm1185 = vweird.f32 %v1160
        %vm1186 = vweird.f32 %v1179
        %vm1187 = vmor %vm1185, %vm1186
        %v1188 = vsel %vm1187, %v1179, %v1184
        %v1189 = vrsqrt.pop %v1161
        %v1190 = vmul.f32 %v1189, %v1161
        %v1191 = vmul.f32 %v1190, %v1189
        %v1192 = vmul.f32 0.5, %v1191
        %v1193 = vsub.f32 1.5, %v1192
        %v1194 = vmul.f32 %v1189, %v1193
        %vm1195 = vweird.f32 %v1161
        %vm1196 = vweird.f32 %v1189
        %vm1197 = vmor %vm1195, %vm1196
        %v1198 = vsel %vm1197, %v1189, %v1194
        %v1199 = vrsqrt.pop %v1162
        %v1200 = vmul.f32 %v1199, %v1162
        %v1201 = vmul.f32 %v1200, %v1199
        %v1202 = vmul.f32 0.5, %v1201
        %v1203 = vsub.f32 1.5, %v1202
        %v1204 = vmul.f32 %v1199, %v1203
        %vm1205 = vweird.f32 %v1162
        %vm1206 = vweird.f32 %v1199
        %vm1207 = vmor %vm1205, %vm1206
        %v1208 = vsel %vm1207, %v1199, %v1204
        %v1209 = vrsqrt.pop %v1163
        %v1210 = vmul.f32 %v1209, %v1163
        %v1211 = vmul.f32 %v1210, %v1209
        %v1212 = vmul.f32 0.5, %v1211
        %v1213 = vsub.f32 1.5, %v1212
        %v1214 = vmul.f32 %v1209, %v1213
        %vm1215 = vweird.f32 %v1163
        %vm1216 = vweird.f32 %v1209
        %vm1217 = vmor %vm1215, %vm1216
        %v1218 = vsel %vm1217, %v1209, %v1214
        %v1219 = vrsqrt.pop %v1164
        %v1220 = vmul.f32 %v1219, %v1164
        %v1221 = vmul.f32 %v1220, %v1219
        %v1222 = vmul.f32 0.5, %v1221
        %v1223 = vsub.f32 1.5, %v1222
        %v1224 = vmul.f32 %v1219, %v1223
        %vm1225 = vweird.f32 %v1164
        %vm1226 = vweird.f32 %v1219
        %vm1227 = vmor %vm1225, %vm1226
        %v1228 = vsel %vm1227, %v1219, %v1224
        %v1229 = vrsqrt.pop %v1165
        %v1230 = vmul.f32 %v1229, %v1165
        %v1231 = vmul.f32 %v1230, %v1229
        %v1232 = vmul.f32 0.5, %v1231
        %v1233 = vsub.f32 1.5, %v1232
        %v1234 = vmul.f32 %v1229, %v1233
        %vm1235 = vweird.f32 %v1165
        %vm1236 = vweird.f32 %v1229
        %vm1237 = vmor %vm1235, %vm1236
        %v1238 = vsel %vm1237, %v1229, %v1234
        %v1239 = vrsqrt.pop %v1166
        %v1240 = vmul.f32 %v1239, %v1166
        %v1241 = vmul.f32 %v1240, %v1239
        %v1242 = vmul.f32 0.5, %v1241
        %v1243 = vsub.f32 1.5, %v1242
        %v1244 = vmul.f32 %v1239, %v1243
        %vm1245 = vweird.f32 %v1166
        %vm1246 = vweird.f32 %v1239
        %vm1247 = vmor %vm1245, %vm1246
        %v1248 = vsel %vm1247, %v1239, %v1244
        %v1249 = vrsqrt.pop %v1167
        %v1250 = vmul.f32 %v1249, %v1167
        %v1251 = vmul.f32 %v1250, %v1249
        %v1252 = vmul.f32 0.5, %v1251
        %v1253 = vsub.f32 1.5, %v1252
        %v1254 = vmul.f32 %v1249, %v1253
        %vm1255 = vweird.f32 %v1167
        %vm1256 = vweird.f32 %v1249
        %vm1257 = vmor %vm1255, %vm1256
        %v1258 = vsel %vm1257, %v1249, %v1254
        %v1259 = vrsqrt.pop %v1168
        %v1260 = vmul.f32 %v1259, %v1168
        %v1261 = vmul.f32 %v1260, %v1259
        %v1262 = vmul.f32 0.5, %v1261
        %v1263 = vsub.f32 1.5, %v1262
        %v1264 = vmul.f32 %v1259, %v1263
        %vm1265 = vweird.f32 %v1168
        %vm1266 = vweird.f32 %v1259
        %vm1267 = vmor %vm1265, %vm1266
        %v1268 = vsel %vm1267, %v1259, %v1264
        %v1269 = vrsqrt.pop %v1169
        %v1270 = vmul.f32 %v1269, %v1169
        %v1271 = vmul.f32 %v1270, %v1269
        %v1272 = vmul.f32 0.5, %v1271
        %v1273 = vsub.f32 1.5, %v1272
        %v1274 = vmul.f32 %v1269, %v1273
        %vm1275 = vweird.f32 %v1169
        %vm1276 = vweird.f32 %v1269
        %vm1277 = vmor %vm1275, %vm1276
        %v1278 = vsel %vm1277, %v1269, %v1274
        %v1279 = vrsqrt.pop %v1170
        %v1280 = vmul.f32 %v1279, %v1170
        %v1281 = vmul.f32 %v1280, %v1279
        %v1282 = vmul.f32 0.5, %v1281
        %v1283 = vsub.f32 1.5, %v1282
        %v1284 = vmul.f32 %v1279, %v1283
        %vm1285 = vweird.f32 %v1170
        %vm1286 = vweird.f32 %v1279
        %vm1287 = vmor %vm1285, %vm1286
        %v1288 = vsel %vm1287, %v1279, %v1284
        %v1289 = vrsqrt.pop %v1171
        %v1290 = vmul.f32 %v1289, %v1171
        %v1291 = vmul.f32 %v1290, %v1289
        %v1292 = vmul.f32 0.5, %v1291
        %v1293 = vsub.f32 1.5, %v1292
        %v1294 = vmul.f32 %v1289, %v1293
        %vm1295 = vweird.f32 %v1171
        %vm1296 = vweird.f32 %v1289
        %vm1297 = vmor %vm1295, %vm1296
        %v1298 = vsel %vm1297, %v1289, %v1294
        %v1299 = vrsqrt.pop %v1172
        %v1300 = vmul.f32 %v1299, %v1172
        %v1301 = vmul.f32 %v1300, %v1299
        %v1302 = vmul.f32 0.5, %v1301
        %v1303 = vsub.f32 1.5, %v1302
        %v1304 = vmul.f32 %v1299, %v1303
        %vm1305 = vweird.f32 %v1172
        %vm1306 = vweird.f32 %v1299
        %vm1307 = vmor %vm1305, %vm1306
        %v1308 = vsel %vm1307, %v1299, %v1304
        %v1309 = vrsqrt.pop %v1173
        %v1310 = vmul.f32 %v1309, %v1173
        %v1311 = vmul.f32 %v1310, %v1309
        %v1312 = vmul.f32 0.5, %v1311
        %v1313 = vsub.f32 1.5, %v1312
        %v1314 = vmul.f32 %v1309, %v1313
        %vm1315 = vweird.f32 %v1173
        %vm1316 = vweird.f32 %v1309
        %vm1317 = vmor %vm1315, %vm1316
        %v1318 = vsel %vm1317, %v1309, %v1314
        %v1319 = vrsqrt.pop %v1174
        %v1320 = vmul.f32 %v1319, %v1174
        %v1321 = vmul.f32 %v1320, %v1319
        %v1322 = vmul.f32 0.5, %v1321
        %v1323 = vsub.f32 1.5, %v1322
        %v1324 = vmul.f32 %v1319, %v1323
        %vm1325 = vweird.f32 %v1174
        %vm1326 = vweird.f32 %v1319
        %vm1327 = vmor %vm1325, %vm1326
        %v1328 = vsel %vm1327, %v1319, %v1324
        %v1329 = vrsqrt.pop %v1175
        %v1330 = vmul.f32 %v1329, %v1175
        %v1331 = vmul.f32 %v1330, %v1329
        %v1332 = vmul.f32 0.5, %v1331
        %v1333 = vsub.f32 1.5, %v1332
        %v1334 = vmul.f32 %v1329, %v1333
        %vm1335 = vweird.f32 %v1175
        %vm1336 = vweird.f32 %v1329
        %vm1337 = vmor %vm1335, %vm1336
        %v1338 = vsel %vm1337, %v1329, %v1334
        %v1339 = vrsqrt.pop %v1176
        %v1340 = vmul.f32 %v1339, %v1176
        %v1341 = vmul.f32 %v1340, %v1339
        %v1342 = vmul.f32 0.5, %v1341
        %v1343 = vsub.f32 1.5, %v1342
        %v1344 = vmul.f32 %v1339, %v1343
        %vm1345 = vweird.f32 %v1176
        %vm1346 = vweird.f32 %v1339
        %vm1347 = vmor %vm1345, %vm1346
        %v1348 = vsel %vm1347, %v1339, %v1344
        %v1349 = vrsqrt.pop %v1177
        %v1350 = vmul.f32 %v1349, %v1177
        %v1351 = vmul.f32 %v1350, %v1349
        %v1352 = vmul.f32 0.5, %v1351
        %v1353 = vsub.f32 1.5, %v1352
        %v1354 = vmul.f32 %v1349, %v1353
        %vm1355 = vweird.f32 %v1177
        %vm1356 = vweird.f32 %v1349
        %vm1357 = vmor %vm1355, %vm1356
        %v1358 = vsel %vm1357, %v1349, %v1354
        %v1359 = vrsqrt.pop %v1178
        %v1360 = vmul.f32 %v1359, %v1178
        %v1361 = vmul.f32 %v1360, %v1359
        %v1362 = vmul.f32 0.5, %v1361
        %v1363 = vsub.f32 1.5, %v1362
        %v1364 = vmul.f32 %v1359, %v1363
        %vm1365 = vweird.f32 %v1178
        %vm1366 = vweird.f32 %v1359
        %vm1367 = vmor %vm1365, %vm1366
        %v1368 = vsel %vm1367, %v1359, %v1364
        %v1369 = vmul.f32 %v1141, %v1188
        %v1370 = vmul.f32 %v1142, %v1198
        %v1371 = vmul.f32 %v1143, %v1208
        %v1372 = vmul.f32 %v1144, %v1218
        %v1373 = vmul.f32 %v1145, %v1228
        %v1374 = vmul.f32 %v1146, %v1238
        %v1375 = vmul.f32 %v1147, %v1248
        %v1376 = vmul.f32 %v1148, %v1258
        %v1377 = vmul.f32 %v1149, %v1268
        %v1378 = vmul.f32 %v1150, %v1278
        %v1379 = vmul.f32 %v1151, %v1288
        %v1380 = vmul.f32 %v1152, %v1298
        %v1381 = vmul.f32 %v1153, %v1308
        %v1382 = vmul.f32 %v1154, %v1318
        %v1383 = vmul.f32 %v1155, %v1328
        %v1384 = vmul.f32 %v1156, %v1338
        %v1385 = vmul.f32 %v1157, %v1348
        %v1386 = vmul.f32 %v1158, %v1358
        %v1387 = vmul.f32 %v1159, %v1368
        %v1389 = vperm.slane %v923, 0
        %v1392 = vsel %vm924, %v1369, 0
        %v1395 = vsel %vm924, %v1370, 0
        %v1398 = vsel %vm924, %v1371, 0
        %v1401 = vsel %vm924, %v1372, 0
        %v1404 = vsel %vm924, %v1373, 0
        %v1407 = vsel %vm924, %v1374, 0
        %v1410 = vsel %vm924, %v1375, 0
        %v1413 = vsel %vm924, %v1376, 0
        %v1416 = vsel %vm924, %v1377, 0
        %v1419 = vsel %vm924, %v1378, 0
        %v1422 = vsel %vm924, %v1379, 0
        %v1425 = vsel %vm924, %v1380, 0
        %v1428 = vsel %vm924, %v1381, 0
        %v1431 = vsel %vm924, %v1382, 0
        %v1434 = vsel %vm924, %v1383, 0
        %v1437 = vsel %vm924, %v1384, 0
        %v1440 = vsel %vm924, %v1385, 0
        %v1443 = vsel %vm924, %v1386, 0
        %v1446 = vsel %vm924, %v1387, 0
        %1448 = vmatpush.msra.mxu0 0.0
        %1449 = vmatpush.msra.mxu0 0.0
        %1450 = vmatpush.msra.mxu0 0.0
        %1451 = vmatpush.msra.mxu0 0.0
        %1452 = vmatpush.msra.mxu0 0.0
        %1453 = vmatpush.msra.mxu0 0.0
        %1454 = vmatpush.msra.mxu0 0.0
        %1455 = vmatpush.msra.mxu0 0.0
        %1456 = vmatpush.msra.mxu0 0.0
        %1457 = vmatpush.msra.mxu0 0.0
        %1458 = vmatpush.msra.mxu0 0.0
        %1459 = vmatpush.msra.mxu0 0.0
        %1460 = vmatpush.msra.mxu0 %v922
        %1461 = vmatpush.msra.mxu0 %v921
        %1462 = vmatpush.msra.mxu0 %v920
        %1463 = vmatpush.msra.mxu0 %v919
        %1464 = vmatmul.f32.gmra.mxu0 %v1392
        %v1465 = vpop.f32.mrf.mxu0
        %v1466 = vadd.f32 %v1389, %v1465
        %1467 = vmatmul.f32.gmra.mxu0 %v1395
        %v1468 = vpop.f32.mrf.mxu0
        %v1469 = vadd.f32 %v1389, %v1468
        %1470 = vmatmul.f32.gmra.mxu0 %v1398
        %v1471 = vpop.f32.mrf.mxu0
        %v1472 = vadd.f32 %v1389, %v1471
        %1473 = vmatmul.f32.gmra.mxu0 %v1401
        %v1474 = vpop.f32.mrf.mxu0
        %v1475 = vadd.f32 %v1389, %v1474
        %1476 = vmatmul.f32.gmra.mxu0 %v1404
        %v1477 = vpop.f32.mrf.mxu0
        %v1478 = vadd.f32 %v1389, %v1477
        %1479 = vmatmul.f32.gmra.mxu0 %v1407
        %v1480 = vpop.f32.mrf.mxu0
        %v1481 = vadd.f32 %v1389, %v1480
        %1482 = vmatmul.f32.gmra.mxu0 %v1410
        %v1483 = vpop.f32.mrf.mxu0
        %v1484 = vadd.f32 %v1389, %v1483
        %1485 = vmatmul.f32.gmra.mxu0 %v1413
        %v1486 = vpop.f32.mrf.mxu0
        %v1487 = vadd.f32 %v1389, %v1486
        %1488 = vmatmul.f32.gmra.mxu0 %v1416
        %v1489 = vpop.f32.mrf.mxu0
        %v1490 = vadd.f32 %v1389, %v1489
        %1491 = vmatmul.f32.gmra.mxu0 %v1419
        %v1492 = vpop.f32.mrf.mxu0
        %v1493 = vadd.f32 %v1389, %v1492
        %1494 = vmatmul.f32.gmra.mxu0 %v1422
        %v1495 = vpop.f32.mrf.mxu0
        %v1496 = vadd.f32 %v1389, %v1495
        %1497 = vmatmul.f32.gmra.mxu0 %v1425
        %v1498 = vpop.f32.mrf.mxu0
        %v1499 = vadd.f32 %v1389, %v1498
        %1500 = vmatmul.f32.gmra.mxu0 %v1428
        %v1501 = vpop.f32.mrf.mxu0
        %v1502 = vadd.f32 %v1389, %v1501
        %1503 = vmatmul.f32.gmra.mxu0 %v1431
        %v1504 = vpop.f32.mrf.mxu0
        %v1505 = vadd.f32 %v1389, %v1504
        %1506 = vmatmul.f32.gmra.mxu0 %v1434
        %v1507 = vpop.f32.mrf.mxu0
        %v1508 = vadd.f32 %v1389, %v1507
        %1509 = vmatmul.f32.gmra.mxu0 %v1437
        %v1510 = vpop.f32.mrf.mxu0
        %v1511 = vadd.f32 %v1389, %v1510
        %1512 = vmatmul.f32.gmra.mxu0 %v1440
        %v1513 = vpop.f32.mrf.mxu0
        %v1514 = vadd.f32 %v1389, %v1513
        %1515 = vmatmul.f32.gmra.mxu0 %v1443
        %v1516 = vpop.f32.mrf.mxu0
        %v1517 = vadd.f32 %v1389, %v1516
        %1518 = vmatmul.f32.gmra.mxu0 %v1446
        %v1519 = vpop.f32.mrf.mxu0
        %v1520 = vadd.f32 %v1389, %v1519
        %1521 = vdwg.mxu0
        %v1522 = vmax.f32 %v1466, 0.0
        %v1523 = vmax.f32 %v1469, 0.0
        %v1524 = vmax.f32 %v1472, 0.0
        %v1525 = vmax.f32 %v1475, 0.0
        %v1526 = vmax.f32 %v1478, 0.0
        %v1527 = vmax.f32 %v1481, 0.0
        %v1528 = vmax.f32 %v1484, 0.0
        %v1529 = vmax.f32 %v1487, 0.0
        %v1530 = vmax.f32 %v1490, 0.0
        %v1531 = vmax.f32 %v1493, 0.0
        %v1532 = vmax.f32 %v1496, 0.0
        %v1533 = vmax.f32 %v1499, 0.0
        %v1534 = vmax.f32 %v1502, 0.0
        %v1535 = vmax.f32 %v1505, 0.0
        %v1536 = vmax.f32 %v1508, 0.0
        %v1537 = vmax.f32 %v1511, 0.0
        %v1538 = vmax.f32 %v1514, 0.0
        %v1539 = vmax.f32 %v1517, 0.0
        %v1540 = vmax.f32 %v1520, 0.0
        %v1541 = vld [vmem:[%s5] sm:$0xff]
        %v1542 = vld [vmem:[%s5 + $0x8] sm:$0xff]
        %v1543 = vld [vmem:[%s5 + $0x10] sm:$0xff]
        %v1544 = vld [vmem:[%s5 + $0x18] sm:$0xff]
        %v1545 = vld [vmem:[%s5 + $0x20] sm:$0xff]
        %v1546 = vld [vmem:[%s5 + $0x28] sm:$0xff]
        %v1547 = vld [vmem:[%s6] sm:$0x1]
        %vm1548 = vcmask 392192
        %v1549 = vsel %vm1548, %v1522, 0.0
        %1550 = vadd.xlane.f32.xlu0 %v1549
        %v1551 = vpop.xlane.xlu0 %1550
        %v1552 = vsel %vm1548, %v1523, 0.0
        %1553 = vadd.xlane.f32.xlu0 %v1552
        %v1554 = vpop.xlane.xlu0 %1553
        %v1555 = vsel %vm1548, %v1524, 0.0
        %1556 = vadd.xlane.f32.xlu0 %v1555
        %v1557 = vpop.xlane.xlu0 %1556
        %v1558 = vsel %vm1548, %v1525, 0.0
        %1559 = vadd.xlane.f32.xlu0 %v1558
        %v1560 = vpop.xlane.xlu0 %1559
        %v1561 = vsel %vm1548, %v1526, 0.0
        %1562 = vadd.xlane.f32.xlu0 %v1561
        %v1563 = vpop.xlane.xlu0 %1562
        %v1564 = vsel %vm1548, %v1527, 0.0
        %1565 = vadd.xlane.f32.xlu0 %v1564
        %v1566 = vpop.xlane.xlu0 %1565
        %v1567 = vsel %vm1548, %v1528, 0.0
        %1568 = vadd.xlane.f32.xlu0 %v1567
        %v1569 = vpop.xlane.xlu0 %1568
        %v1570 = vsel %vm1548, %v1529, 0.0
        %1571 = vadd.xlane.f32.xlu0 %v1570
        %v1572 = vpop.xlane.xlu0 %1571
        %v1573 = vsel %vm1548, %v1530, 0.0
        %1574 = vadd.xlane.f32.xlu0 %v1573
        %v1575 = vpop.xlane.xlu0 %1574
        %v1576 = vsel %vm1548, %v1531, 0.0
        %1577 = vadd.xlane.f32.xlu0 %v1576
        %v1578 = vpop.xlane.xlu0 %1577
        %v1579 = vsel %vm1548, %v1532, 0.0
        %1580 = vadd.xlane.f32.xlu0 %v1579
        %v1581 = vpop.xlane.xlu0 %1580
        %v1582 = vsel %vm1548, %v1533, 0.0
        %1583 = vadd.xlane.f32.xlu0 %v1582
        %v1584 = vpop.xlane.xlu0 %1583
        %v1585 = vsel %vm1548, %v1534, 0.0
        %1586 = vadd.xlane.f32.xlu0 %v1585
        %v1587 = vpop.xlane.xlu0 %1586
        %v1588 = vsel %vm1548, %v1535, 0.0
        %1589 = vadd.xlane.f32.xlu0 %v1588
        %v1590 = vpop.xlane.xlu0 %1589
        %v1591 = vsel %vm1548, %v1536, 0.0
        %1592 = vadd.xlane.f32.xlu0 %v1591
        %v1593 = vpop.xlane.xlu0 %1592
        %v1594 = vsel %vm1548, %v1537, 0.0
        %1595 = vadd.xlane.f32.xlu0 %v1594
        %v1596 = vpop.xlane.xlu0 %1595
        %v1597 = vsel %vm1548, %v1538, 0.0
        %1598 = vadd.xlane.f32.xlu0 %v1597
        %v1599 = vpop.xlane.xlu0 %1598
        %v1600 = vsel %vm1548, %v1539, 0.0
        %1601 = vadd.xlane.f32.xlu0 %v1600
        %v1602 = vpop.xlane.xlu0 %1601
        %v1603 = vsel %vm1548, %v1540, 0.0
        %1604 = vadd.xlane.f32.xlu0 %v1603
        %v1605 = vpop.xlane.xlu0 %1604
        %v1606 = vrcp.pop 48.0
        %v1607 = vmul.f32 48.0, %v1606
        %v1608 = vsub.f32 1.0, %v1607
        %v1609 = vmul.f32 %v1606, %v1608
        %v1610 = vadd.f32 %v1606, %v1609
        %vm1611 = vweird.f32 %v1606
        %v1612 = vsel %vm1611, %v1606, %v1610
        %v1613 = vmul.f32 %v1551, %v1612
        %v1614 = vmul.f32 %v1554, %v1612
        %v1615 = vmul.f32 %v1557, %v1612
        %v1616 = vmul.f32 %v1560, %v1612
        %v1617 = vmul.f32 %v1563, %v1612
        %v1618 = vmul.f32 %v1566, %v1612
        %v1619 = vmul.f32 %v1569, %v1612
        %v1620 = vmul.f32 %v1572, %v1612
        %v1621 = vmul.f32 %v1575, %v1612
        %v1622 = vmul.f32 %v1578, %v1612
        %v1623 = vmul.f32 %v1581, %v1612
        %v1624 = vmul.f32 %v1584, %v1612
        %v1625 = vmul.f32 %v1587, %v1612
        %v1626 = vmul.f32 %v1590, %v1612
        %v1627 = vmul.f32 %v1593, %v1612
        %v1628 = vmul.f32 %v1596, %v1612
        %v1629 = vmul.f32 %v1599, %v1612
        %v1630 = vmul.f32 %v1602, %v1612
        %v1631 = vmul.f32 %v1605, %v1612
        %v1632 = vmul.f32 %v1522, %v1522
        %v1633 = vmul.f32 %v1523, %v1523
        %v1634 = vmul.f32 %v1524, %v1524
        %v1635 = vmul.f32 %v1525, %v1525
        %v1636 = vmul.f32 %v1526, %v1526
        %v1637 = vmul.f32 %v1527, %v1527
        %v1638 = vmul.f32 %v1528, %v1528
        %v1639 = vmul.f32 %v1529, %v1529
        %v1640 = vmul.f32 %v1530, %v1530
        %v1641 = vmul.f32 %v1531, %v1531
        %v1642 = vmul.f32 %v1532, %v1532
        %v1643 = vmul.f32 %v1533, %v1533
        %v1644 = vmul.f32 %v1534, %v1534
        %v1645 = vmul.f32 %v1535, %v1535
        %v1646 = vmul.f32 %v1536, %v1536
        %v1647 = vmul.f32 %v1537, %v1537
        %v1648 = vmul.f32 %v1538, %v1538
        %v1649 = vmul.f32 %v1539, %v1539
        %v1650 = vmul.f32 %v1540, %v1540
        %v1651 = vsel %vm1548, %v1632, 0.0
        %1652 = vadd.xlane.f32.xlu0 %v1651
        %v1653 = vpop.xlane.xlu0 %1652
        %v1654 = vsel %vm1548, %v1633, 0.0
        %1655 = vadd.xlane.f32.xlu0 %v1654
        %v1656 = vpop.xlane.xlu0 %1655
        %v1657 = vsel %vm1548, %v1634, 0.0
        %1658 = vadd.xlane.f32.xlu0 %v1657
        %v1659 = vpop.xlane.xlu0 %1658
        %v1660 = vsel %vm1548, %v1635, 0.0
        %1661 = vadd.xlane.f32.xlu0 %v1660
        %v1662 = vpop.xlane.xlu0 %1661
        %v1663 = vsel %vm1548, %v1636, 0.0
        %1664 = vadd.xlane.f32.xlu0 %v1663
        %v1665 = vpop.xlane.xlu0 %1664
        %v1666 = vsel %vm1548, %v1637, 0.0
        %1667 = vadd.xlane.f32.xlu0 %v1666
        %v1668 = vpop.xlane.xlu0 %1667
        %v1669 = vsel %vm1548, %v1638, 0.0
        %1670 = vadd.xlane.f32.xlu0 %v1669
        %v1671 = vpop.xlane.xlu0 %1670
        %v1672 = vsel %vm1548, %v1639, 0.0
        %1673 = vadd.xlane.f32.xlu0 %v1672
        %v1674 = vpop.xlane.xlu0 %1673
        %v1675 = vsel %vm1548, %v1640, 0.0
        %1676 = vadd.xlane.f32.xlu0 %v1675
        %v1677 = vpop.xlane.xlu0 %1676
        %v1678 = vsel %vm1548, %v1641, 0.0
        %1679 = vadd.xlane.f32.xlu0 %v1678
        %v1680 = vpop.xlane.xlu0 %1679
        %v1681 = vsel %vm1548, %v1642, 0.0
        %1682 = vadd.xlane.f32.xlu0 %v1681
        %v1683 = vpop.xlane.xlu0 %1682
        %v1684 = vsel %vm1548, %v1643, 0.0
        %1685 = vadd.xlane.f32.xlu0 %v1684
        %v1686 = vpop.xlane.xlu0 %1685
        %v1687 = vsel %vm1548, %v1644, 0.0
        %1688 = vadd.xlane.f32.xlu0 %v1687
        %v1689 = vpop.xlane.xlu0 %1688
        %v1690 = vsel %vm1548, %v1645, 0.0
        %1691 = vadd.xlane.f32.xlu0 %v1690
        %v1692 = vpop.xlane.xlu0 %1691
        %v1693 = vsel %vm1548, %v1646, 0.0
        %1694 = vadd.xlane.f32.xlu0 %v1693
        %v1695 = vpop.xlane.xlu0 %1694
        %v1696 = vsel %vm1548, %v1647, 0.0
        %1697 = vadd.xlane.f32.xlu0 %v1696
        %v1698 = vpop.xlane.xlu0 %1697
        %v1699 = vsel %vm1548, %v1648, 0.0
        %1700 = vadd.xlane.f32.xlu0 %v1699
        %v1701 = vpop.xlane.xlu0 %1700
        %v1702 = vsel %vm1548, %v1649, 0.0
        %1703 = vadd.xlane.f32.xlu0 %v1702
        %v1704 = vpop.xlane.xlu0 %1703
        %v1705 = vsel %vm1548, %v1650, 0.0
        %1706 = vadd.xlane.f32.xlu0 %v1705
        %v1707 = vpop.xlane.xlu0 %1706
        %v1708 = vmul.f32 %v1653, %v1612
        %v1709 = vmul.f32 %v1656, %v1612
        %v1710 = vmul.f32 %v1659, %v1612
        %v1711 = vmul.f32 %v1662, %v1612
        %v1712 = vmul.f32 %v1665, %v1612
        %v1713 = vmul.f32 %v1668, %v1612
        %v1714 = vmul.f32 %v1671, %v1612
        %v1715 = vmul.f32 %v1674, %v1612
        %v1716 = vmul.f32 %v1677, %v1612
        %v1717 = vmul.f32 %v1680, %v1612
        %v1718 = vmul.f32 %v1683, %v1612
        %v1719 = vmul.f32 %v1686, %v1612
        %v1720 = vmul.f32 %v1689, %v1612
        %v1721 = vmul.f32 %v1692, %v1612
        %v1722 = vmul.f32 %v1695, %v1612
        %v1723 = vmul.f32 %v1698, %v1612
        %v1724 = vmul.f32 %v1701, %v1612
        %v1725 = vmul.f32 %v1704, %v1612
        %v1726 = vmul.f32 %v1707, %v1612
        %v1727 = vmul.f32 %v1613, %v1613
        %v1728 = vmul.f32 %v1614, %v1614
        %v1729 = vmul.f32 %v1615, %v1615
        %v1730 = vmul.f32 %v1616, %v1616
        %v1731 = vmul.f32 %v1617, %v1617
        %v1732 = vmul.f32 %v1618, %v1618
        %v1733 = vmul.f32 %v1619, %v1619
        %v1734 = vmul.f32 %v1620, %v1620
        %v1735 = vmul.f32 %v1621, %v1621
        %v1736 = vmul.f32 %v1622, %v1622
        %v1737 = vmul.f32 %v1623, %v1623
        %v1738 = vmul.f32 %v1624, %v1624
        %v1739 = vmul.f32 %v1625, %v1625
        %v1740 = vmul.f32 %v1626, %v1626
        %v1741 = vmul.f32 %v1627, %v1627
        %v1742 = vmul.f32 %v1628, %v1628
        %v1743 = vmul.f32 %v1629, %v1629
        %v1744 = vmul.f32 %v1630, %v1630
        %v1745 = vmul.f32 %v1631, %v1631
        %v1746 = vsub.f32 %v1708, %v1727
        %v1747 = vsub.f32 %v1709, %v1728
        %v1748 = vsub.f32 %v1710, %v1729
        %v1749 = vsub.f32 %v1711, %v1730
        %v1750 = vsub.f32 %v1712, %v1731
        %v1751 = vsub.f32 %v1713, %v1732
        %v1752 = vsub.f32 %v1714, %v1733
        %v1753 = vsub.f32 %v1715, %v1734
        %v1754 = vsub.f32 %v1716, %v1735
        %v1755 = vsub.f32 %v1717, %v1736
        %v1756 = vsub.f32 %v1718, %v1737
        %v1757 = vsub.f32 %v1719, %v1738
        %v1758 = vsub.f32 %v1720, %v1739
        %v1759 = vsub.f32 %v1721, %v1740
        %v1760 = vsub.f32 %v1722, %v1741
        %v1761 = vsub.f32 %v1723, %v1742
        %v1762 = vsub.f32 %v1724, %v1743
        %v1763 = vsub.f32 %v1725, %v1744
        %v1764 = vsub.f32 %v1726, %v1745
        %v1765 = vsub.f32 %v1522, %v1613
        %v1766 = vsub.f32 %v1523, %v1614
        %v1767 = vsub.f32 %v1524, %v1615
        %v1768 = vsub.f32 %v1525, %v1616
        %v1769 = vsub.f32 %v1526, %v1617
        %v1770 = vsub.f32 %v1527, %v1618
        %v1771 = vsub.f32 %v1528, %v1619
        %v1772 = vsub.f32 %v1529, %v1620
        %v1773 = vsub.f32 %v1530, %v1621
        %v1774 = vsub.f32 %v1531, %v1622
        %v1775 = vsub.f32 %v1532, %v1623
        %v1776 = vsub.f32 %v1533, %v1624
        %v1777 = vsub.f32 %v1534, %v1625
        %v1778 = vsub.f32 %v1535, %v1626
        %v1779 = vsub.f32 %v1536, %v1627
        %v1780 = vsub.f32 %v1537, %v1628
        %v1781 = vsub.f32 %v1538, %v1629
        %v1782 = vsub.f32 %v1539, %v1630
        %v1783 = vsub.f32 %v1540, %v1631
        %v1784 = vadd.f32 %v1746, 1e-05
        %v1785 = vadd.f32 %v1747, 1e-05
        %v1786 = vadd.f32 %v1748, 1e-05
        %v1787 = vadd.f32 %v1749, 1e-05
        %v1788 = vadd.f32 %v1750, 1e-05
        %v1789 = vadd.f32 %v1751, 1e-05
        %v1790 = vadd.f32 %v1752, 1e-05
        %v1791 = vadd.f32 %v1753, 1e-05
        %v1792 = vadd.f32 %v1754, 1e-05
        %v1793 = vadd.f32 %v1755, 1e-05
        %v1794 = vadd.f32 %v1756, 1e-05
        %v1795 = vadd.f32 %v1757, 1e-05
        %v1796 = vadd.f32 %v1758, 1e-05
        %v1797 = vadd.f32 %v1759, 1e-05
        %v1798 = vadd.f32 %v1760, 1e-05
        %v1799 = vadd.f32 %v1761, 1e-05
        %v1800 = vadd.f32 %v1762, 1e-05
        %v1801 = vadd.f32 %v1763, 1e-05
        %v1802 = vadd.f32 %v1764, 1e-05
        %v1803 = vrsqrt.pop %v1784
        %v1804 = vmul.f32 %v1803, %v1784
        %v1805 = vmul.f32 %v1804, %v1803
        %v1806 = vmul.f32 0.5, %v1805
        %v1807 = vsub.f32 1.5, %v1806
        %v1808 = vmul.f32 %v1803, %v1807
        %vm1809 = vweird.f32 %v1784
        %vm1810 = vweird.f32 %v1803
        %vm1811 = vmor %vm1809, %vm1810
        %v1812 = vsel %vm1811, %v1803, %v1808
        %v1813 = vrsqrt.pop %v1785
        %v1814 = vmul.f32 %v1813, %v1785
        %v1815 = vmul.f32 %v1814, %v1813
        %v1816 = vmul.f32 0.5, %v1815
        %v1817 = vsub.f32 1.5, %v1816
        %v1818 = vmul.f32 %v1813, %v1817
        %vm1819 = vweird.f32 %v1785
        %vm1820 = vweird.f32 %v1813
        %vm1821 = vmor %vm1819, %vm1820
        %v1822 = vsel %vm1821, %v1813, %v1818
        %v1823 = vrsqrt.pop %v1786
        %v1824 = vmul.f32 %v1823, %v1786
        %v1825 = vmul.f32 %v1824, %v1823
        %v1826 = vmul.f32 0.5, %v1825
        %v1827 = vsub.f32 1.5, %v1826
        %v1828 = vmul.f32 %v1823, %v1827
        %vm1829 = vweird.f32 %v1786
        %vm1830 = vweird.f32 %v1823
        %vm1831 = vmor %vm1829, %vm1830
        %v1832 = vsel %vm1831, %v1823, %v1828
        %v1833 = vrsqrt.pop %v1787
        %v1834 = vmul.f32 %v1833, %v1787
        %v1835 = vmul.f32 %v1834, %v1833
        %v1836 = vmul.f32 0.5, %v1835
        %v1837 = vsub.f32 1.5, %v1836
        %v1838 = vmul.f32 %v1833, %v1837
        %vm1839 = vweird.f32 %v1787
        %vm1840 = vweird.f32 %v1833
        %vm1841 = vmor %vm1839, %vm1840
        %v1842 = vsel %vm1841, %v1833, %v1838
        %v1843 = vrsqrt.pop %v1788
        %v1844 = vmul.f32 %v1843, %v1788
        %v1845 = vmul.f32 %v1844, %v1843
        %v1846 = vmul.f32 0.5, %v1845
        %v1847 = vsub.f32 1.5, %v1846
        %v1848 = vmul.f32 %v1843, %v1847
        %vm1849 = vweird.f32 %v1788
        %vm1850 = vweird.f32 %v1843
        %vm1851 = vmor %vm1849, %vm1850
        %v1852 = vsel %vm1851, %v1843, %v1848
        %v1853 = vrsqrt.pop %v1789
        %v1854 = vmul.f32 %v1853, %v1789
        %v1855 = vmul.f32 %v1854, %v1853
        %v1856 = vmul.f32 0.5, %v1855
        %v1857 = vsub.f32 1.5, %v1856
        %v1858 = vmul.f32 %v1853, %v1857
        %vm1859 = vweird.f32 %v1789
        %vm1860 = vweird.f32 %v1853
        %vm1861 = vmor %vm1859, %vm1860
        %v1862 = vsel %vm1861, %v1853, %v1858
        %v1863 = vrsqrt.pop %v1790
        %v1864 = vmul.f32 %v1863, %v1790
        %v1865 = vmul.f32 %v1864, %v1863
        %v1866 = vmul.f32 0.5, %v1865
        %v1867 = vsub.f32 1.5, %v1866
        %v1868 = vmul.f32 %v1863, %v1867
        %vm1869 = vweird.f32 %v1790
        %vm1870 = vweird.f32 %v1863
        %vm1871 = vmor %vm1869, %vm1870
        %v1872 = vsel %vm1871, %v1863, %v1868
        %v1873 = vrsqrt.pop %v1791
        %v1874 = vmul.f32 %v1873, %v1791
        %v1875 = vmul.f32 %v1874, %v1873
        %v1876 = vmul.f32 0.5, %v1875
        %v1877 = vsub.f32 1.5, %v1876
        %v1878 = vmul.f32 %v1873, %v1877
        %vm1879 = vweird.f32 %v1791
        %vm1880 = vweird.f32 %v1873
        %vm1881 = vmor %vm1879, %vm1880
        %v1882 = vsel %vm1881, %v1873, %v1878
        %v1883 = vrsqrt.pop %v1792
        %v1884 = vmul.f32 %v1883, %v1792
        %v1885 = vmul.f32 %v1884, %v1883
        %v1886 = vmul.f32 0.5, %v1885
        %v1887 = vsub.f32 1.5, %v1886
        %v1888 = vmul.f32 %v1883, %v1887
        %vm1889 = vweird.f32 %v1792
        %vm1890 = vweird.f32 %v1883
        %vm1891 = vmor %vm1889, %vm1890
        %v1892 = vsel %vm1891, %v1883, %v1888
        %v1893 = vrsqrt.pop %v1793
        %v1894 = vmul.f32 %v1893, %v1793
        %v1895 = vmul.f32 %v1894, %v1893
        %v1896 = vmul.f32 0.5, %v1895
        %v1897 = vsub.f32 1.5, %v1896
        %v1898 = vmul.f32 %v1893, %v1897
        %vm1899 = vweird.f32 %v1793
        %vm1900 = vweird.f32 %v1893
        %vm1901 = vmor %vm1899, %vm1900
        %v1902 = vsel %vm1901, %v1893, %v1898
        %v1903 = vrsqrt.pop %v1794
        %v1904 = vmul.f32 %v1903, %v1794
        %v1905 = vmul.f32 %v1904, %v1903
        %v1906 = vmul.f32 0.5, %v1905
        %v1907 = vsub.f32 1.5, %v1906
        %v1908 = vmul.f32 %v1903, %v1907
        %vm1909 = vweird.f32 %v1794
        %vm1910 = vweird.f32 %v1903
        %vm1911 = vmor %vm1909, %vm1910
        %v1912 = vsel %vm1911, %v1903, %v1908
        %v1913 = vrsqrt.pop %v1795
        %v1914 = vmul.f32 %v1913, %v1795
        %v1915 = vmul.f32 %v1914, %v1913
        %v1916 = vmul.f32 0.5, %v1915
        %v1917 = vsub.f32 1.5, %v1916
        %v1918 = vmul.f32 %v1913, %v1917
        %vm1919 = vweird.f32 %v1795
        %vm1920 = vweird.f32 %v1913
        %vm1921 = vmor %vm1919, %vm1920
        %v1922 = vsel %vm1921, %v1913, %v1918
        %v1923 = vrsqrt.pop %v1796
        %v1924 = vmul.f32 %v1923, %v1796
        %v1925 = vmul.f32 %v1924, %v1923
        %v1926 = vmul.f32 0.5, %v1925
        %v1927 = vsub.f32 1.5, %v1926
        %v1928 = vmul.f32 %v1923, %v1927
        %vm1929 = vweird.f32 %v1796
        %vm1930 = vweird.f32 %v1923
        %vm1931 = vmor %vm1929, %vm1930
        %v1932 = vsel %vm1931, %v1923, %v1928
        %v1933 = vrsqrt.pop %v1797
        %v1934 = vmul.f32 %v1933, %v1797
        %v1935 = vmul.f32 %v1934, %v1933
        %v1936 = vmul.f32 0.5, %v1935
        %v1937 = vsub.f32 1.5, %v1936
        %v1938 = vmul.f32 %v1933, %v1937
        %vm1939 = vweird.f32 %v1797
        %vm1940 = vweird.f32 %v1933
        %vm1941 = vmor %vm1939, %vm1940
        %v1942 = vsel %vm1941, %v1933, %v1938
        %v1943 = vrsqrt.pop %v1798
        %v1944 = vmul.f32 %v1943, %v1798
        %v1945 = vmul.f32 %v1944, %v1943
        %v1946 = vmul.f32 0.5, %v1945
        %v1947 = vsub.f32 1.5, %v1946
        %v1948 = vmul.f32 %v1943, %v1947
        %vm1949 = vweird.f32 %v1798
        %vm1950 = vweird.f32 %v1943
        %vm1951 = vmor %vm1949, %vm1950
        %v1952 = vsel %vm1951, %v1943, %v1948
        %v1953 = vrsqrt.pop %v1799
        %v1954 = vmul.f32 %v1953, %v1799
        %v1955 = vmul.f32 %v1954, %v1953
        %v1956 = vmul.f32 0.5, %v1955
        %v1957 = vsub.f32 1.5, %v1956
        %v1958 = vmul.f32 %v1953, %v1957
        %vm1959 = vweird.f32 %v1799
        %vm1960 = vweird.f32 %v1953
        %vm1961 = vmor %vm1959, %vm1960
        %v1962 = vsel %vm1961, %v1953, %v1958
        %v1963 = vrsqrt.pop %v1800
        %v1964 = vmul.f32 %v1963, %v1800
        %v1965 = vmul.f32 %v1964, %v1963
        %v1966 = vmul.f32 0.5, %v1965
        %v1967 = vsub.f32 1.5, %v1966
        %v1968 = vmul.f32 %v1963, %v1967
        %vm1969 = vweird.f32 %v1800
        %vm1970 = vweird.f32 %v1963
        %vm1971 = vmor %vm1969, %vm1970
        %v1972 = vsel %vm1971, %v1963, %v1968
        %v1973 = vrsqrt.pop %v1801
        %v1974 = vmul.f32 %v1973, %v1801
        %v1975 = vmul.f32 %v1974, %v1973
        %v1976 = vmul.f32 0.5, %v1975
        %v1977 = vsub.f32 1.5, %v1976
        %v1978 = vmul.f32 %v1973, %v1977
        %vm1979 = vweird.f32 %v1801
        %vm1980 = vweird.f32 %v1973
        %vm1981 = vmor %vm1979, %vm1980
        %v1982 = vsel %vm1981, %v1973, %v1978
        %v1983 = vrsqrt.pop %v1802
        %v1984 = vmul.f32 %v1983, %v1802
        %v1985 = vmul.f32 %v1984, %v1983
        %v1986 = vmul.f32 0.5, %v1985
        %v1987 = vsub.f32 1.5, %v1986
        %v1988 = vmul.f32 %v1983, %v1987
        %vm1989 = vweird.f32 %v1802
        %vm1990 = vweird.f32 %v1983
        %vm1991 = vmor %vm1989, %vm1990
        %v1992 = vsel %vm1991, %v1983, %v1988
        %v1993 = vmul.f32 %v1765, %v1812
        %v1994 = vmul.f32 %v1766, %v1822
        %v1995 = vmul.f32 %v1767, %v1832
        %v1996 = vmul.f32 %v1768, %v1842
        %v1997 = vmul.f32 %v1769, %v1852
        %v1998 = vmul.f32 %v1770, %v1862
        %v1999 = vmul.f32 %v1771, %v1872
        %v2000 = vmul.f32 %v1772, %v1882
        %v2001 = vmul.f32 %v1773, %v1892
        %v2002 = vmul.f32 %v1774, %v1902
        %v2003 = vmul.f32 %v1775, %v1912
        %v2004 = vmul.f32 %v1776, %v1922
        %v2005 = vmul.f32 %v1777, %v1932
        %v2006 = vmul.f32 %v1778, %v1942
        %v2007 = vmul.f32 %v1779, %v1952
        %v2008 = vmul.f32 %v1780, %v1962
        %v2009 = vmul.f32 %v1781, %v1972
        %v2010 = vmul.f32 %v1782, %v1982
        %v2011 = vmul.f32 %v1783, %v1992
        %v2013 = vperm.slane %v1547, 0
        %v2016 = vsel %vm1548, %v1993, 0
        %v2019 = vsel %vm1548, %v1994, 0
        %v2022 = vsel %vm1548, %v1995, 0
        %v2025 = vsel %vm1548, %v1996, 0
        %v2028 = vsel %vm1548, %v1997, 0
        %v2031 = vsel %vm1548, %v1998, 0
        %v2034 = vsel %vm1548, %v1999, 0
        %v2037 = vsel %vm1548, %v2000, 0
        %v2040 = vsel %vm1548, %v2001, 0
        %v2043 = vsel %vm1548, %v2002, 0
        %v2046 = vsel %vm1548, %v2003, 0
        %v2049 = vsel %vm1548, %v2004, 0
        %v2052 = vsel %vm1548, %v2005, 0
        %v2055 = vsel %vm1548, %v2006, 0
        %v2058 = vsel %vm1548, %v2007, 0
        %v2061 = vsel %vm1548, %v2008, 0
        %v2064 = vsel %vm1548, %v2009, 0
        %v2067 = vsel %vm1548, %v2010, 0
        %v2070 = vsel %vm1548, %v2011, 0
        %2072 = vmatpush.msra.mxu0 0.0
        %2073 = vmatpush.msra.mxu0 0.0
        %2074 = vmatpush.msra.mxu0 0.0
        %2075 = vmatpush.msra.mxu0 0.0
        %2076 = vmatpush.msra.mxu0 0.0
        %2077 = vmatpush.msra.mxu0 0.0
        %2078 = vmatpush.msra.mxu0 0.0
        %2079 = vmatpush.msra.mxu0 0.0
        %2080 = vmatpush.msra.mxu0 0.0
        %2081 = vmatpush.msra.mxu0 0.0
        %2082 = vmatpush.msra.mxu0 %v1546
        %2083 = vmatpush.msra.mxu0 %v1545
        %2084 = vmatpush.msra.mxu0 %v1544
        %2085 = vmatpush.msra.mxu0 %v1543
        %2086 = vmatpush.msra.mxu0 %v1542
        %2087 = vmatpush.msra.mxu0 %v1541
        %2088 = vmatmul.f32.gmra.mxu0 %v2016
        %v2089 = vpop.f32.mrf.mxu0
        %v2090 = vadd.f32 %v2013, %v2089
        %2091 = vmatmul.f32.gmra.mxu0 %v2019
        %v2092 = vpop.f32.mrf.mxu0
        %v2093 = vadd.f32 %v2013, %v2092
        %2094 = vmatmul.f32.gmra.mxu0 %v2022
        %v2095 = vpop.f32.mrf.mxu0
        %v2096 = vadd.f32 %v2013, %v2095
        %2097 = vmatmul.f32.gmra.mxu0 %v2025
        %v2098 = vpop.f32.mrf.mxu0
        %v2099 = vadd.f32 %v2013, %v2098
        %2100 = vmatmul.f32.gmra.mxu0 %v2028
        %v2101 = vpop.f32.mrf.mxu0
        %v2102 = vadd.f32 %v2013, %v2101
        %2103 = vmatmul.f32.gmra.mxu0 %v2031
        %v2104 = vpop.f32.mrf.mxu0
        %v2105 = vadd.f32 %v2013, %v2104
        %2106 = vmatmul.f32.gmra.mxu0 %v2034
        %v2107 = vpop.f32.mrf.mxu0
        %v2108 = vadd.f32 %v2013, %v2107
        %2109 = vmatmul.f32.gmra.mxu0 %v2037
        %v2110 = vpop.f32.mrf.mxu0
        %v2111 = vadd.f32 %v2013, %v2110
        %2112 = vmatmul.f32.gmra.mxu0 %v2040
        %v2113 = vpop.f32.mrf.mxu0
        %v2114 = vadd.f32 %v2013, %v2113
        %2115 = vmatmul.f32.gmra.mxu0 %v2043
        %v2116 = vpop.f32.mrf.mxu0
        %v2117 = vadd.f32 %v2013, %v2116
        %2118 = vmatmul.f32.gmra.mxu0 %v2046
        %v2119 = vpop.f32.mrf.mxu0
        %v2120 = vadd.f32 %v2013, %v2119
        %2121 = vmatmul.f32.gmra.mxu0 %v2049
        %v2122 = vpop.f32.mrf.mxu0
        %v2123 = vadd.f32 %v2013, %v2122
        %2124 = vmatmul.f32.gmra.mxu0 %v2052
        %v2125 = vpop.f32.mrf.mxu0
        %v2126 = vadd.f32 %v2013, %v2125
        %2127 = vmatmul.f32.gmra.mxu0 %v2055
        %v2128 = vpop.f32.mrf.mxu0
        %v2129 = vadd.f32 %v2013, %v2128
        %2130 = vmatmul.f32.gmra.mxu0 %v2058
        %v2131 = vpop.f32.mrf.mxu0
        %v2132 = vadd.f32 %v2013, %v2131
        %2133 = vmatmul.f32.gmra.mxu0 %v2061
        %v2134 = vpop.f32.mrf.mxu0
        %v2135 = vadd.f32 %v2013, %v2134
        %2136 = vmatmul.f32.gmra.mxu0 %v2064
        %v2137 = vpop.f32.mrf.mxu0
        %v2138 = vadd.f32 %v2013, %v2137
        %2139 = vmatmul.f32.gmra.mxu0 %v2067
        %v2140 = vpop.f32.mrf.mxu0
        %v2141 = vadd.f32 %v2013, %v2140
        %2142 = vmatmul.f32.gmra.mxu0 %v2070
        %v2143 = vpop.f32.mrf.mxu0
        %v2144 = vadd.f32 %v2013, %v2143
        %2145 = vdwg.mxu0
        %2146 = vst [vmem:[%s272] sm:$0xff] %v2090
        %2147 = vst [vmem:[%s272 + $0x8] sm:$0xff] %v2093
        %2148 = vst [vmem:[%s272 + $0x10] sm:$0xff] %v2096
        %2149 = vst [vmem:[%s272 + $0x18] sm:$0xff] %v2099
        %2150 = vst [vmem:[%s272 + $0x20] sm:$0xff] %v2102
        %2151 = vst [vmem:[%s272 + $0x28] sm:$0xff] %v2105
        %2152 = vst [vmem:[%s272 + $0x30] sm:$0xff] %v2108
        %2153 = vst [vmem:[%s272 + $0x38] sm:$0xff] %v2111
        %2154 = vst [vmem:[%s272 + $0x40] sm:$0xff] %v2114
        %2155 = vst [vmem:[%s272 + $0x48] sm:$0xff] %v2117
        %2156 = vst [vmem:[%s272 + $0x50] sm:$0xff] %v2120
        %2157 = vst [vmem:[%s272 + $0x58] sm:$0xff] %v2123
        %2158 = vst [vmem:[%s272 + $0x60] sm:$0xff] %v2126
        %2159 = vst [vmem:[%s272 + $0x68] sm:$0xff] %v2129
        %2160 = vst [vmem:[%s272 + $0x70] sm:$0xff] %v2132
        %2161 = vst [vmem:[%s272 + $0x78] sm:$0xff] %v2135
        %2162 = vst [vmem:[%s272 + $0x80] sm:$0xff] %v2138
        %2163 = vst [vmem:[%s272 + $0x88] sm:$0xff] %v2141
        %2164 = vst [vmem:[%s272 + $0x90] sm:$0xff] %v2144
        %s2165 = sand.u32 %s181, 1
        %s2166 = scalar_lea.sflag [#allocation3], %s2165
        %s2167 = sand.u32 %s181, 1
        %s2168 = smul.addr %s2167, 152
        %s2169 = scalar_lea.vmem [#allocation2], %s2168
        // Predicated region
        $region49: #{tpu_custom_call.1} parent=47 // pred_check
          %p2170 = pneg %p191
        $region50: #{tpu_custom_call.1} parent=47 // pred_check_branch
          %2172 = sbr.rel (%p2170) target = $region52
        $region51: #{tpu_custom_call.1} parent=47 // pred_region
          %s2173 = smul.u32 19, %s21
          %2175 = vsyncadd %s2166, 0
          %s2176 = smul.addr %s2173, 8
          %s2177 = scalar_lea.hbm %s7, %s2176
          %s2178 = sshll.u32 %s2169, 4
          %s2179 = int_to_ptr.vmem [resolvable:$true] %s2178
          %s2180 = sshll.u32 %s2177, 4
          %s2181 = int_to_ptr.hbm [resolvable:$true] %s2180
          %2186 = dma.vmem_to_hbm [thread:$0]  %s2179, 2432, %s2181, %s2166, 128, 128, 8
        $region52: #{tpu_custom_call.1} parent=47 // pred_fallthru
          _
      $region48: #{tpu_custom_call.1} parent=5 // pred_fallthru
        _
      %p2187 = scmp.le.s32.totalorder 2, %s16
      // Predicated region
      $region53: #{tpu_custom_call.1} parent=5 // pred_check
        %p2188 = pneg %p2187
      $region54: #{tpu_custom_call.1} parent=5 // pred_check_branch
        %2190 = sbr.rel (%p2188) target = $region56
      $region55: #{tpu_custom_call.1} parent=5 // pred_region
        %s2191 = ssub.s32 %s16, 2
        // Predicated region
        $region57: #{tpu_custom_call.1} parent=55 // pred_check
          %p2192 = pneg %p197
        $region58: #{tpu_custom_call.1} parent=55 // pred_check_branch
          %2194 = sbr.rel (%p2192) target = $region60
        $region59: #{tpu_custom_call.1} parent=55 // pred_region
          %s2195 = sand.u32 %s182, 1
          %s2196 = scalar_lea.sflag [#allocation3], %s2195
          %s2197 = sand.u32 %s182, 1
          %s2198 = smul.addr %s2197, 152
          %s2199 = scalar_lea.vmem [#allocation2], %s2198
          %2201 = dma.done %s2196, 2432
        $region60: #{tpu_custom_call.1} parent=55 // pred_fallthru
          _
      $region56: #{tpu_custom_call.1} parent=5 // pred_fallthru
        _
    $region6: #{tpu_custom_call.1} parent=1 // loop_footer
      %s20 = sadd.s32 1, %s16
    $region7: #{tpu_custom_call.1} parent=1 // loop_footer_branch
      %15 = sbr.rel target = $region3
    $region8: #{tpu_custom_call.1} parent=1 // loop_exit
      _
    %2202 = vsyncpa [#allocation3], 1
    %s2203 = scalar_lea.sflag [#allocation3], 1
    %2204 = vsyncpa %s2203, 1

</llo_original>
